<compile_context>
chip_gen: v7x
topology: tpu7x:2x2x1
jax: 0.10.0
libtpu: 0.0.40
codegen_flags: <defaults>
</compile_context>

<pallas_src>
import functools

import jax
import jax.numpy as jnp
from jax.experimental import pallas as pl
from jax.experimental.pallas import tpu as pltpu


def _tensorcores_per_chip():
    """Best-effort query of TensorCores per chip (>=2 only on v7x/megacore)."""
    try:
        info = pltpu.get_tpu_info()
    except Exception:
        return 1
    for name in ("num_cores", "cores_per_chip", "core_count",
                 "num_tensorcores", "num_tensor_cores", "tensorcore_count"):
        v = getattr(info, name, None)
        if v is None:
            continue
        try:
            v = int(v)
        except (TypeError, ValueError):
            continue
        if v > 0:
            return v
    return 1


def _tap_masks(D, H, W, K):
    """Per-tap validity masks over the flattened (D*H*W) lane axis, f32 0/1."""
    r = K // 2
    L = D * H * W
    idx = jnp.arange(L, dtype=jnp.int32)
    d = idx // (H * W)
    h = (idx // W) % H
    w = idx % W
    rows = []
    for kd in range(-r, r + 1):
        for kh in range(-r, r + 1):
            for kw in range(-r, r + 1):
                m = ((d + kd >= 0) & (d + kd < D) &
                     (h + kh >= 0) & (h + kh < H) &
                     (w + kw >= 0) & (w + kw < W))
                rows.append(m)
    return jnp.stack(rows, axis=0).astype(jnp.float32)   # (K^3, L)


def _double_conv_kernel(x_ref, mask_ref, w1_ref, g1_ref, b1_ref,
                        w2_ref, g2_ref, b2_ref, o_ref, patch_ref,
                        *, NB, L, CM, C_in1, C_in2, offs, eps):
    LT = NB * L
    inv_l = 1.0 / L

    def build_patches(x, C):
        # Per-tap masked shift stored straight into the persistent VMEM patch
        # slab: the live range is one 8-row tap block (no 100+-vreg concat)
        # and every store is an aligned full-sublane-group write (C % 8 == 0
        # after the Cin 4->8 pad).  Rolls wrap across the sample boundary of
        # the merged lane axis only at positions that the mask zeroes anyway.
        for t, off in enumerate(offs):
            xs = x if off == 0 else pltpu.roll(x, shift=(-off) % LT, axis=1)
            patch_ref[t * C:(t + 1) * C, :] = xs * mask_ref[t * CM:t * CM + C, :]

    def conv_norm(x, C, w_ref, g_ref, b_ref):
        # Conv3d (stride 1, 'same' pad) as ONE im2col MXU matmul, followed by
        # InstanceNorm3d (biased variance, per-sample stats) + affine.
        build_patches(x, C)
        kc = len(offs) * C
        y = jnp.dot(w_ref[...], patch_ref[:kc, :],
                    preferred_element_type=jnp.float32)            # (Cout, LT)
        parts = []
        for s in range(NB):                      # per-sample stats; L=512 is
            ys = y[:, s * L:(s + 1) * L]         # 128-aligned -> free slices
            mean = jnp.sum(ys, axis=-1, keepdims=True) * inv_l
            var = jnp.sum(ys * ys, axis=-1, keepdims=True) * inv_l - mean * mean
            var = jnp.maximum(var, 0.0)          # guard tiny negative variance
            parts.append((ys - mean) * jax.lax.rsqrt(var + eps))
        yn = parts[0] if NB == 1 else jnp.concatenate(parts, axis=1)
        return yn * g_ref[...] + b_ref[...]

    # Native-dtype DMA, upcast after the DMA (cheap VPU op).
    x = x_ref[0].astype(jnp.float32)                                # (C_in1, LT)
    # ConvBlock 1 (Dropout3d is identity in eval mode).
    x1 = jnp.maximum(conv_norm(x, C_in1, w1_ref, g1_ref, b1_ref), 0.0)
    # ConvBlock 2 conv + norm, residual add before the ReLU (residue=True).
    y2 = conv_norm(x1, C_in2, w2_ref, g2_ref, b2_ref)
    o_ref[0] = jnp.maximum(y2 + x1, 0.0).astype(o_ref.dtype)


def double_conv_pallas(x_ncdhw, w1, g1, b1, w2, g2, b2, eps=1e-5,
                       samples_per_step=None):
    """DoubleConv forward (pre_activation=False, residue=True). NCDHW in/out."""
    N, Cin, D, H, W = x_ncdhw.shape
    K = w1.shape[-1]
    C1 = w1.shape[0]
    C2 = w2.shape[0]
    assert w2.shape[1] == C1, "conv2 in_channels must equal conv1 out_channels"
    L = D * H * W
    K3 = K * K * K

    # Batch policy: single-TC chips -> merge all samples into one grid step
    # (samples stacked on the lane axis); dual-TC chips -> one sample per
    # 'parallel' grid step so each core takes one sample.
    if samples_per_step is None:
        samples_per_step = 1 if (_tensorcores_per_chip() >= 2 and N > 1) else N
    NB = int(samples_per_step)
    if NB < 1 or N % NB != 0:
        NB = 1
    G = N // NB
    NBL = NB * L

    # Pad conv1 input channels up to a full 8-sublane group so every tap block
    # in the patch slab is an aligned whole-vreg row group.
    CP1 = ((Cin + 7) // 8) * 8
    CP2 = C1
    CM = max(CP1, CP2)
    KC1 = K3 * CP1
    KC2 = K3 * CP2

    # (N, C, D, H, W) -> (G, CP1, NB*L): reshape + channel zero-pad + sample
    # lane-stack.  Input stays in its native dtype (upcast happens in-kernel).
    x_flat = x_ncdhw.reshape(N, Cin, L)
    if CP1 > Cin:
        x_flat = jnp.pad(x_flat, ((0, 0), (0, CP1 - Cin), (0, 0)))
    x_g = (x_flat.reshape(G, NB, CP1, L)
           .transpose(0, 2, 1, 3)
           .reshape(G, CP1, NBL))

    # 'same'-padding folded into per-tap masks, tiled per sample on the lane
    # axis and pre-broadcast to CM rows per tap (no in-kernel broadcasts).
    base = _tap_masks(D, H, W, K)                      # (K^3, L)
    masks = jnp.tile(base, (1, NB))                    # (K^3, NB*L)
    masks = jnp.repeat(masks, CM, axis=0)              # (K^3*CM, NB*L)

    # Weights as lane-dense 2D slabs (Cout, K^3*Cin_pad), tap-major/cin-minor;
    # conv1's padded input channels get zero weight columns.
    w1p = w1 if CP1 == Cin else jnp.pad(
        w1, ((0, 0), (0, CP1 - Cin), (0, 0), (0, 0), (0, 0)))
    w1_2d = jnp.transpose(w1p, (0, 2, 3, 4, 1)).reshape(C1, KC1).astype(jnp.float32)
    w2_2d = jnp.transpose(w2, (0, 2, 3, 4, 1)).reshape(C2, KC2).astype(jnp.float32)
    g1c = g1.reshape(C1, 1).astype(jnp.float32)
    b1c = b1.reshape(C1, 1).astype(jnp.float32)
    g2c = g2.reshape(C2, 1).astype(jnp.float32)
    b2c = b2.reshape(C2, 1).astype(jnp.float32)

    # Static tap schedule; order matches the weight slabs and the mask rows.
    offs = []
    r = K // 2
    for kd in range(-r, r + 1):
        for kh in range(-r, r + 1):
            for kw in range(-r, r + 1):
                offs.append(kd * H * W + kh * W + kw)

    kernel = functools.partial(
        _double_conv_kernel, NB=NB, L=L, CM=CM, C_in1=CP1, C_in2=CP2,
        offs=tuple(offs), eps=eps)

    isz = lambda a: jnp.dtype(a.dtype).itemsize
    flops = 2 * N * L * (C1 * KC1 + C2 * KC2)
    bytes_accessed = (x_g.size * isz(x_g) + N * C2 * L * isz(x_ncdhw)
                      + masks.size * 4 + w1_2d.size * 4 + w2_2d.size * 4
                      + (g1c.size + b1c.size + g2c.size + b2c.size) * 4)

    out = pl.pallas_call(
        kernel,
        out_shape=jax.ShapeDtypeStruct((G, C2, NBL), x_ncdhw.dtype),
        grid=(G,),
        in_specs=[
            pl.BlockSpec((1, CP1, NBL), lambda g: (g, 0, 0)),
            pl.BlockSpec((K3 * CM, NBL), lambda g: (0, 0)),
            pl.BlockSpec((C1, KC1), lambda g: (0, 0)),
            pl.BlockSpec((C1, 1), lambda g: (0, 0)),
            pl.BlockSpec((C1, 1), lambda g: (0, 0)),
            pl.BlockSpec((C2, KC2), lambda g: (0, 0)),
            pl.BlockSpec((C2, 1), lambda g: (0, 0)),
            pl.BlockSpec((C2, 1), lambda g: (0, 0)),
        ],
        out_specs=pl.BlockSpec((1, C2, NBL), lambda g: (g, 0, 0)),
        scratch_shapes=[pltpu.VMEM((K3 * CM, NBL), jnp.float32)],
        compiler_params=pltpu.CompilerParams(
            dimension_semantics=("parallel",),
            vmem_limit_bytes=16 * 1024 * 1024),
        cost_estimate=pl.CostEstimate(
            flops=flops, transcendentals=N * (C1 + C2),
            bytes_accessed=bytes_accessed),
    )(x_g, masks, w1_2d, g1c, b1c, w2_2d, g2c, b2c)

    return (out.reshape(G, C2, NB, L)
            .transpose(0, 2, 1, 3)
            .reshape(N, C2, D, H, W))


# ---------------- pure-JAX reference (for correctness check only) -------------
def _ref_conv3d(x, w, pad):
    return jax.lax.conv_general_dilated(
        x, w, window_strides=(1, 1, 1), padding=[(pad, pad)] * 3,
        dimension_numbers=('NCDHW', 'OIDHW', 'NCDHW'))


def _ref_instance_norm(y, g, b, eps=1e-5):
    mean = y.mean(axis=(2, 3, 4), keepdims=True)
    var = ((y - mean) ** 2).mean(axis=(2, 3, 4), keepdims=True)
    yn = (y - mean) * jax.lax.rsqrt(var + eps)
    return yn * g.reshape(1, -1, 1, 1, 1) + b.reshape(1, -1, 1, 1, 1)


def double_conv_ref(x, w1, g1, b1, w2, g2, b2):
    x1 = jax.nn.relu(_ref_instance_norm(_ref_conv3d(x, w1, 1), g1, b1))
    y2 = _ref_instance_norm(_ref_conv3d(x1, w2, 1), g2, b2)
    return jax.nn.relu(y2 + x1)


if __name__ == "__main__":
    key = jax.random.PRNGKey(0)
    k1, k2, k3, k4, k5, k6, k7 = jax.random.split(key, 7)

    N, Cin, Cout1, Cout2 = 2, 4, 8, 8
    D = H = W = 8
    K = 3

    # PyTorch-layout tensors (NCDHW input, OIDHW weights), deterministic init.
    x = jax.random.normal(k1, (N, Cin, D, H, W), jnp.float32)
    w1 = 0.1 * jax.random.normal(k2, (Cout1, Cin, K, K, K), jnp.float32)
    g1 = 1.0 + 0.1 * jax.random.normal(k3, (Cout1,), jnp.float32)
    b1 = 0.1 * jax.random.normal(k4, (Cout1,), jnp.float32)
    w2 = 0.1 * jax.random.normal(k5, (Cout2, Cout1, K, K, K), jnp.float32)
    g2 = 1.0 + 0.1 * jax.random.normal(k6, (Cout2,), jnp.float32)
    b2 = 0.1 * jax.random.normal(k7, (Cout2,), jnp.float32)

    ref = double_conv_ref(x, w1, g1, b1, w2, g2, b2)

    # Hardware-gated default (merged batch on single-TC chips, per-sample
    # parallel grid on dual-TC chips).
    dc_auto = jax.jit(double_conv_pallas)
    out = jax.block_until_ready(dc_auto(x, w1, g1, b1, w2, g2, b2))
    assert out.shape == (N, Cout2, D, H, W), out.shape
    err = float(jnp.max(jnp.abs(out - ref)))
    assert jnp.allclose(out, ref, atol=1e-3, rtol=1e-3), f"auto max abs err {err}"

    # Exercise both explicit batch policies so each code path is compiled and
    # checked regardless of which chip generation runs this script.
    for nb in (1, N):
        dc = jax.jit(functools.partial(double_conv_pallas, samples_per_step=nb))
        o = jax.block_until_ready(dc(x, w1, g1, b1, w2, g2, b2))
        e = float(jnp.max(jnp.abs(o - ref)))
        assert jnp.allclose(o, ref, atol=1e-3, rtol=1e-3), f"NB={nb} max abs err {e}"

    print("KERNEL_OK")
</pallas_src>

<mosaic_0001>
module attributes {stable_mosaic.version = 11 : i64} {
  func.func @_double_conv_kernel(%arg0: i32, %arg1: memref<1x8x1024xf32, #tpu.memory_space<vmem>>, %arg2: memref<216x1024xf32, #tpu.memory_space<vmem>>, %arg3: memref<8x216xf32, #tpu.memory_space<vmem>>, %arg4: memref<8x1xf32, #tpu.memory_space<vmem>>, %arg5: memref<8x1xf32, #tpu.memory_space<vmem>>, %arg6: memref<8x216xf32, #tpu.memory_space<vmem>>, %arg7: memref<8x1xf32, #tpu.memory_space<vmem>>, %arg8: memref<8x1xf32, #tpu.memory_space<vmem>>, %arg9: memref<1x8x1024xf32, #tpu.memory_space<vmem>>, %arg10: memref<216x1024xf32, #tpu.memory_space<vmem>>) attributes {dimension_semantics = [#tpu.dimension_semantics<parallel>], iteration_bounds = array<i64: 1>, scalar_prefetch = 0 : i64, scratch_operands = 1 : i64, tpu.core_type = #tpu.core_type<tc>, window_params = [{transform_indices = @transform_0, window_bounds = array<i64: 1, 8, 1024>}, {pipeline_mode = #tpu.pipeline_mode<synchronous>, transform_indices = @transform_1, window_bounds = array<i64: 216, 1024>}, {pipeline_mode = #tpu.pipeline_mode<synchronous>, transform_indices = @transform_2, window_bounds = array<i64: 8, 216>}, {pipeline_mode = #tpu.pipeline_mode<synchronous>, transform_indices = @transform_3, window_bounds = array<i64: 8, 1>}, {pipeline_mode = #tpu.pipeline_mode<synchronous>, transform_indices = @transform_4, window_bounds = array<i64: 8, 1>}, {pipeline_mode = #tpu.pipeline_mode<synchronous>, transform_indices = @transform_5, window_bounds = array<i64: 8, 216>}, {pipeline_mode = #tpu.pipeline_mode<synchronous>, transform_indices = @transform_6, window_bounds = array<i64: 8, 1>}, {pipeline_mode = #tpu.pipeline_mode<synchronous>, transform_indices = @transform_7, window_bounds = array<i64: 8, 1>}, {transform_indices = @transform_8, window_bounds = array<i64: 1, 8, 1024>}]} {
    %c0 = arith.constant 0 : index
    %c0_0 = arith.constant 0 : index
    %c0_1 = arith.constant 0 : index
    %0 = vector.load %arg1[%c0, %c0_0, %c0_1] : memref<1x8x1024xf32, #tpu.memory_space<vmem>>, vector<1x8x1024xf32>
    %1 = vector.shape_cast %0 : vector<1x8x1024xf32> to vector<8x1024xf32>
    %c73_i32 = arith.constant 73 : i32
    %2 = tpu.dynamic_rotate %1 by %c73_i32 dim 1 : vector<8x1024xf32>, i32 -> vector<8x1024xf32>
    %c0_2 = arith.constant 0 : index
    %c0_3 = arith.constant 0 : index
    %3 = vector.load %arg2[%c0_2, %c0_3] : memref<216x1024xf32, #tpu.memory_space<vmem>>, vector<8x1024xf32>
    %4 = arith.mulf %2, %3 : vector<8x1024xf32>
    %c0_4 = arith.constant 0 : index
    %c0_5 = arith.constant 0 : index
    %5 = vector.load %arg10[%c0_4, %c0_5] : memref<216x1024xf32, #tpu.memory_space<vmem>>, vector<8x1024xf32>
    tpu.vector_store %arg10[%c0_4, %c0_5], %4 {strides = array<i32>} : memref<216x1024xf32, #tpu.memory_space<vmem>>, vector<8x1024xf32>,
    %c72_i32 = arith.constant 72 : i32
    %6 = tpu.dynamic_rotate %1 by %c72_i32 dim 1 : vector<8x1024xf32>, i32 -> vector<8x1024xf32>
    %c8 = arith.constant 8 : index
    %c0_6 = arith.constant 0 : index
    %7 = vector.load %arg2[%c8, %c0_6] : memref<216x1024xf32, #tpu.memory_space<vmem>>, vector<8x1024xf32>
    %8 = arith.mulf %6, %7 : vector<8x1024xf32>
    %c8_7 = arith.constant 8 : index
    %c0_8 = arith.constant 0 : index
    %9 = vector.load %arg10[%c8_7, %c0_8] : memref<216x1024xf32, #tpu.memory_space<vmem>>, vector<8x1024xf32>
    tpu.vector_store %arg10[%c8_7, %c0_8], %8 {strides = array<i32>} : memref<216x1024xf32, #tpu.memory_space<vmem>>, vector<8x1024xf32>,
    %c71_i32 = arith.constant 71 : i32
    %10 = tpu.dynamic_rotate %1 by %c71_i32 dim 1 : vector<8x1024xf32>, i32 -> vector<8x1024xf32>
    %c16 = arith.constant 16 : index
    %c0_9 = arith.constant 0 : index
    %11 = vector.load %arg2[%c16, %c0_9] : memref<216x1024xf32, #tpu.memory_space<vmem>>, vector<8x1024xf32>
    %12 = arith.mulf %10, %11 : vector<8x1024xf32>
    %c16_10 = arith.constant 16 : index
    %c0_11 = arith.constant 0 : index
    %13 = vector.load %arg10[%c16_10, %c0_11] : memref<216x1024xf32, #tpu.memory_space<vmem>>, vector<8x1024xf32>
    tpu.vector_store %arg10[%c16_10, %c0_11], %12 {strides = array<i32>} : memref<216x1024xf32, #tpu.memory_space<vmem>>, vector<8x1024xf32>,
    %c65_i32 = arith.constant 65 : i32
    %14 = tpu.dynamic_rotate %1 by %c65_i32 dim 1 : vector<8x1024xf32>, i32 -> vector<8x1024xf32>
    %c24 = arith.constant 24 : index
    %c0_12 = arith.constant 0 : index
    %15 = vector.load %arg2[%c24, %c0_12] : memref<216x1024xf32, #tpu.memory_space<vmem>>, vector<8x1024xf32>
    %16 = arith.mulf %14, %15 : vector<8x1024xf32>
    %c24_13 = arith.constant 24 : index
    %c0_14 = arith.constant 0 : index
    %17 = vector.load %arg10[%c24_13, %c0_14] : memref<216x1024xf32, #tpu.memory_space<vmem>>, vector<8x1024xf32>
    tpu.vector_store %arg10[%c24_13, %c0_14], %16 {strides = array<i32>} : memref<216x1024xf32, #tpu.memory_space<vmem>>, vector<8x1024xf32>,
    %c64_i32 = arith.constant 64 : i32
    %18 = tpu.dynamic_rotate %1 by %c64_i32 dim 1 : vector<8x1024xf32>, i32 -> vector<8x1024xf32>
    %c32 = arith.constant 32 : index
    %c0_15 = arith.constant 0 : index
    %19 = vector.load %arg2[%c32, %c0_15] : memref<216x1024xf32, #tpu.memory_space<vmem>>, vector<8x1024xf32>
    %20 = arith.mulf %18, %19 : vector<8x1024xf32>
    %c32_16 = arith.constant 32 : index
    %c0_17 = arith.constant 0 : index
    %21 = vector.load %arg10[%c32_16, %c0_17] : memref<216x1024xf32, #tpu.memory_space<vmem>>, vector<8x1024xf32>
    tpu.vector_store %arg10[%c32_16, %c0_17], %20 {strides = array<i32>} : memref<216x1024xf32, #tpu.memory_space<vmem>>, vector<8x1024xf32>,
    %c63_i32 = arith.constant 63 : i32
    %22 = tpu.dynamic_rotate %1 by %c63_i32 dim 1 : vector<8x1024xf32>, i32 -> vector<8x1024xf32>
    %c40 = arith.constant 40 : index
    %c0_18 = arith.constant 0 : index
    %23 = vector.load %arg2[%c40, %c0_18] : memref<216x1024xf32, #tpu.memory_space<vmem>>, vector<8x1024xf32>
    %24 = arith.mulf %22, %23 : vector<8x1024xf32>
    %c40_19 = arith.constant 40 : index
    %c0_20 = arith.constant 0 : index
    %25 = vector.load %arg10[%c40_19, %c0_20] : memref<216x1024xf32, #tpu.memory_space<vmem>>, vector<8x1024xf32>
    tpu.vector_store %arg10[%c40_19, %c0_20], %24 {strides = array<i32>} : memref<216x1024xf32, #tpu.memory_space<vmem>>, vector<8x1024xf32>,
    %c57_i32 = arith.constant 57 : i32
    %26 = tpu.dynamic_rotate %1 by %c57_i32 dim 1 : vector<8x1024xf32>, i32 -> vector<8x1024xf32>
    %c48 = arith.constant 48 : index
    %c0_21 = arith.constant 0 : index
    %27 = vector.load %arg2[%c48, %c0_21] : memref<216x1024xf32, #tpu.memory_space<vmem>>, vector<8x1024xf32>
    %28 = arith.mulf %26, %27 : vector<8x1024xf32>
    %c48_22 = arith.constant 48 : index
    %c0_23 = arith.constant 0 : index
    %29 = vector.load %arg10[%c48_22, %c0_23] : memref<216x1024xf32, #tpu.memory_space<vmem>>, vector<8x1024xf32>
    tpu.vector_store %arg10[%c48_22, %c0_23], %28 {strides = array<i32>} : memref<216x1024xf32, #tpu.memory_space<vmem>>, vector<8x1024xf32>,
    %c56_i32 = arith.constant 56 : i32
    %30 = tpu.dynamic_rotate %1 by %c56_i32 dim 1 : vector<8x1024xf32>, i32 -> vector<8x1024xf32>
    %c56 = arith.constant 56 : index
    %c0_24 = arith.constant 0 : index
    %31 = vector.load %arg2[%c56, %c0_24] : memref<216x1024xf32, #tpu.memory_space<vmem>>, vector<8x1024xf32>
    %32 = arith.mulf %30, %31 : vector<8x1024xf32>
    %c56_25 = arith.constant 56 : index
    %c0_26 = arith.constant 0 : index
    %33 = vector.load %arg10[%c56_25, %c0_26] : memref<216x1024xf32, #tpu.memory_space<vmem>>, vector<8x1024xf32>
    tpu.vector_store %arg10[%c56_25, %c0_26], %32 {strides = array<i32>} : memref<216x1024xf32, #tpu.memory_space<vmem>>, vector<8x1024xf32>,
    %c55_i32 = arith.constant 55 : i32
    %34 = tpu.dynamic_rotate %1 by %c55_i32 dim 1 : vector<8x1024xf32>, i32 -> vector<8x1024xf32>
    %c64 = arith.constant 64 : index
    %c0_27 = arith.constant 0 : index
    %35 = vector.load %arg2[%c64, %c0_27] : memref<216x1024xf32, #tpu.memory_space<vmem>>, vector<8x1024xf32>
    %36 = arith.mulf %34, %35 : vector<8x1024xf32>
    %c64_28 = arith.constant 64 : index
    %c0_29 = arith.constant 0 : index
    %37 = vector.load %arg10[%c64_28, %c0_29] : memref<216x1024xf32, #tpu.memory_space<vmem>>, vector<8x1024xf32>
    tpu.vector_store %arg10[%c64_28, %c0_29], %36 {strides = array<i32>} : memref<216x1024xf32, #tpu.memory_space<vmem>>, vector<8x1024xf32>,
    %c9_i32 = arith.constant 9 : i32
    %38 = tpu.dynamic_rotate %1 by %c9_i32 dim 1 : vector<8x1024xf32>, i32 -> vector<8x1024xf32>
    %c72 = arith.constant 72 : index
    %c0_30 = arith.constant 0 : index
    %39 = vector.load %arg2[%c72, %c0_30] : memref<216x1024xf32, #tpu.memory_space<vmem>>, vector<8x1024xf32>
    %40 = arith.mulf %38, %39 : vector<8x1024xf32>
    %c72_31 = arith.constant 72 : index
    %c0_32 = arith.constant 0 : index
    %41 = vector.load %arg10[%c72_31, %c0_32] : memref<216x1024xf32, #tpu.memory_space<vmem>>, vector<8x1024xf32>
    tpu.vector_store %arg10[%c72_31, %c0_32], %40 {strides = array<i32>} : memref<216x1024xf32, #tpu.memory_space<vmem>>, vector<8x1024xf32>,
    %c8_i32 = arith.constant 8 : i32
    %42 = tpu.dynamic_rotate %1 by %c8_i32 dim 1 : vector<8x1024xf32>, i32 -> vector<8x1024xf32>
    %c80 = arith.constant 80 : index
    %c0_33 = arith.constant 0 : index
    %43 = vector.load %arg2[%c80, %c0_33] : memref<216x1024xf32, #tpu.memory_space<vmem>>, vector<8x1024xf32>
    %44 = arith.mulf %42, %43 : vector<8x1024xf32>
    %c80_34 = arith.constant 80 : index
    %c0_35 = arith.constant 0 : index
    %45 = vector.load %arg10[%c80_34, %c0_35] : memref<216x1024xf32, #tpu.memory_space<vmem>>, vector<8x1024xf32>
    tpu.vector_store %arg10[%c80_34, %c0_35], %44 {strides = array<i32>} : memref<216x1024xf32, #tpu.memory_space<vmem>>, vector<8x1024xf32>,
    %c7_i32 = arith.constant 7 : i32
    %46 = tpu.dynamic_rotate %1 by %c7_i32 dim 1 : vector<8x1024xf32>, i32 -> vector<8x1024xf32>
    %c88 = arith.constant 88 : index
    %c0_36 = arith.constant 0 : index
    %47 = vector.load %arg2[%c88, %c0_36] : memref<216x1024xf32, #tpu.memory_space<vmem>>, vector<8x1024xf32>
    %48 = arith.mulf %46, %47 : vector<8x1024xf32>
    %c88_37 = arith.constant 88 : index
    %c0_38 = arith.constant 0 : index
    %49 = vector.load %arg10[%c88_37, %c0_38] : memref<216x1024xf32, #tpu.memory_space<vmem>>, vector<8x1024xf32>
    tpu.vector_store %arg10[%c88_37, %c0_38], %48 {strides = array<i32>} : memref<216x1024xf32, #tpu.memory_space<vmem>>, vector<8x1024xf32>,
    %c1_i32 = arith.constant 1 : i32
    %50 = tpu.dynamic_rotate %1 by %c1_i32 dim 1 : vector<8x1024xf32>, i32 -> vector<8x1024xf32>
    %c96 = arith.constant 96 : index
    %c0_39 = arith.constant 0 : index
    %51 = vector.load %arg2[%c96, %c0_39] : memref<216x1024xf32, #tpu.memory_space<vmem>>, vector<8x1024xf32>
    %52 = arith.mulf %50, %51 : vector<8x1024xf32>
    %c96_40 = arith.constant 96 : index
    %c0_41 = arith.constant 0 : index
    %53 = vector.load %arg10[%c96_40, %c0_41] : memref<216x1024xf32, #tpu.memory_space<vmem>>, vector<8x1024xf32>
    tpu.vector_store %arg10[%c96_40, %c0_41], %52 {strides = array<i32>} : memref<216x1024xf32, #tpu.memory_space<vmem>>, vector<8x1024xf32>,
    %c104 = arith.constant 104 : index
    %c0_42 = arith.constant 0 : index
    %54 = vector.load %arg2[%c104, %c0_42] : memref<216x1024xf32, #tpu.memory_space<vmem>>, vector<8x1024xf32>
    %55 = arith.mulf %1, %54 : vector<8x1024xf32>
    %c104_43 = arith.constant 104 : index
    %c0_44 = arith.constant 0 : index
    %56 = vector.load %arg10[%c104_43, %c0_44] : memref<216x1024xf32, #tpu.memory_space<vmem>>, vector<8x1024xf32>
    tpu.vector_store %arg10[%c104_43, %c0_44], %55 {strides = array<i32>} : memref<216x1024xf32, #tpu.memory_space<vmem>>, vector<8x1024xf32>,
    %c1023_i32 = arith.constant 1023 : i32
    %57 = tpu.dynamic_rotate %1 by %c1023_i32 dim 1 : vector<8x1024xf32>, i32 -> vector<8x1024xf32>
    %c112 = arith.constant 112 : index
    %c0_45 = arith.constant 0 : index
    %58 = vector.load %arg2[%c112, %c0_45] : memref<216x1024xf32, #tpu.memory_space<vmem>>, vector<8x1024xf32>
    %59 = arith.mulf %57, %58 : vector<8x1024xf32>
    %c112_46 = arith.constant 112 : index
    %c0_47 = arith.constant 0 : index
    %60 = vector.load %arg10[%c112_46, %c0_47] : memref<216x1024xf32, #tpu.memory_space<vmem>>, vector<8x1024xf32>
    tpu.vector_store %arg10[%c112_46, %c0_47], %59 {strides = array<i32>} : memref<216x1024xf32, #tpu.memory_space<vmem>>, vector<8x1024xf32>,
    %c1017_i32 = arith.constant 1017 : i32
    %61 = tpu.dynamic_rotate %1 by %c1017_i32 dim 1 : vector<8x1024xf32>, i32 -> vector<8x1024xf32>
    %c120 = arith.constant 120 : index
    %c0_48 = arith.constant 0 : index
    %62 = vector.load %arg2[%c120, %c0_48] : memref<216x1024xf32, #tpu.memory_space<vmem>>, vector<8x1024xf32>
    %63 = arith.mulf %61, %62 : vector<8x1024xf32>
    %c120_49 = arith.constant 120 : index
    %c0_50 = arith.constant 0 : index
    %64 = vector.load %arg10[%c120_49, %c0_50] : memref<216x1024xf32, #tpu.memory_space<vmem>>, vector<8x1024xf32>
    tpu.vector_store %arg10[%c120_49, %c0_50], %63 {strides = array<i32>} : memref<216x1024xf32, #tpu.memory_space<vmem>>, vector<8x1024xf32>,
    %c1016_i32 = arith.constant 1016 : i32
    %65 = tpu.dynamic_rotate %1 by %c1016_i32 dim 1 : vector<8x1024xf32>, i32 -> vector<8x1024xf32>
    %c128 = arith.constant 128 : index
    %c0_51 = arith.constant 0 : index
    %66 = vector.load %arg2[%c128, %c0_51] : memref<216x1024xf32, #tpu.memory_space<vmem>>, vector<8x1024xf32>
    %67 = arith.mulf %65, %66 : vector<8x1024xf32>
    %c128_52 = arith.constant 128 : index
    %c0_53 = arith.constant 0 : index
    %68 = vector.load %arg10[%c128_52, %c0_53] : memref<216x1024xf32, #tpu.memory_space<vmem>>, vector<8x1024xf32>
    tpu.vector_store %arg10[%c128_52, %c0_53], %67 {strides = array<i32>} : memref<216x1024xf32, #tpu.memory_space<vmem>>, vector<8x1024xf32>,
    %c1015_i32 = arith.constant 1015 : i32
    %69 = tpu.dynamic_rotate %1 by %c1015_i32 dim 1 : vector<8x1024xf32>, i32 -> vector<8x1024xf32>
    %c136 = arith.constant 136 : index
    %c0_54 = arith.constant 0 : index
    %70 = vector.load %arg2[%c136, %c0_54] : memref<216x1024xf32, #tpu.memory_space<vmem>>, vector<8x1024xf32>
    %71 = arith.mulf %69, %70 : vector<8x1024xf32>
    %c136_55 = arith.constant 136 : index
    %c0_56 = arith.constant 0 : index
    %72 = vector.load %arg10[%c136_55, %c0_56] : memref<216x1024xf32, #tpu.memory_space<vmem>>, vector<8x1024xf32>
    tpu.vector_store %arg10[%c136_55, %c0_56], %71 {strides = array<i32>} : memref<216x1024xf32, #tpu.memory_space<vmem>>, vector<8x1024xf32>,
    %c969_i32 = arith.constant 969 : i32
    %73 = tpu.dynamic_rotate %1 by %c969_i32 dim 1 : vector<8x1024xf32>, i32 -> vector<8x1024xf32>
    %c144 = arith.constant 144 : index
    %c0_57 = arith.constant 0 : index
    %74 = vector.load %arg2[%c144, %c0_57] : memref<216x1024xf32, #tpu.memory_space<vmem>>, vector<8x1024xf32>
    %75 = arith.mulf %73, %74 : vector<8x1024xf32>
    %c144_58 = arith.constant 144 : index
    %c0_59 = arith.constant 0 : index
    %76 = vector.load %arg10[%c144_58, %c0_59] : memref<216x1024xf32, #tpu.memory_space<vmem>>, vector<8x1024xf32>
    tpu.vector_store %arg10[%c144_58, %c0_59], %75 {strides = array<i32>} : memref<216x1024xf32, #tpu.memory_space<vmem>>, vector<8x1024xf32>,
    %c968_i32 = arith.constant 968 : i32
    %77 = tpu.dynamic_rotate %1 by %c968_i32 dim 1 : vector<8x1024xf32>, i32 -> vector<8x1024xf32>
    %c152 = arith.constant 152 : index
    %c0_60 = arith.constant 0 : index
    %78 = vector.load %arg2[%c152, %c0_60] : memref<216x1024xf32, #tpu.memory_space<vmem>>, vector<8x1024xf32>
    %79 = arith.mulf %77, %78 : vector<8x1024xf32>
    %c152_61 = arith.constant 152 : index
    %c0_62 = arith.constant 0 : index
    %80 = vector.load %arg10[%c152_61, %c0_62] : memref<216x1024xf32, #tpu.memory_space<vmem>>, vector<8x1024xf32>
    tpu.vector_store %arg10[%c152_61, %c0_62], %79 {strides = array<i32>} : memref<216x1024xf32, #tpu.memory_space<vmem>>, vector<8x1024xf32>,
    %c967_i32 = arith.constant 967 : i32
    %81 = tpu.dynamic_rotate %1 by %c967_i32 dim 1 : vector<8x1024xf32>, i32 -> vector<8x1024xf32>
    %c160 = arith.constant 160 : index
    %c0_63 = arith.constant 0 : index
    %82 = vector.load %arg2[%c160, %c0_63] : memref<216x1024xf32, #tpu.memory_space<vmem>>, vector<8x1024xf32>
    %83 = arith.mulf %81, %82 : vector<8x1024xf32>
    %c160_64 = arith.constant 160 : index
    %c0_65 = arith.constant 0 : index
    %84 = vector.load %arg10[%c160_64, %c0_65] : memref<216x1024xf32, #tpu.memory_space<vmem>>, vector<8x1024xf32>
    tpu.vector_store %arg10[%c160_64, %c0_65], %83 {strides = array<i32>} : memref<216x1024xf32, #tpu.memory_space<vmem>>, vector<8x1024xf32>,
    %c961_i32 = arith.constant 961 : i32
    %85 = tpu.dynamic_rotate %1 by %c961_i32 dim 1 : vector<8x1024xf32>, i32 -> vector<8x1024xf32>
    %c168 = arith.constant 168 : index
    %c0_66 = arith.constant 0 : index
    %86 = vector.load %arg2[%c168, %c0_66] : memref<216x1024xf32, #tpu.memory_space<vmem>>, vector<8x1024xf32>
    %87 = arith.mulf %85, %86 : vector<8x1024xf32>
    %c168_67 = arith.constant 168 : index
    %c0_68 = arith.constant 0 : index
    %88 = vector.load %arg10[%c168_67, %c0_68] : memref<216x1024xf32, #tpu.memory_space<vmem>>, vector<8x1024xf32>
    tpu.vector_store %arg10[%c168_67, %c0_68], %87 {strides = array<i32>} : memref<216x1024xf32, #tpu.memory_space<vmem>>, vector<8x1024xf32>,
    %c960_i32 = arith.constant 960 : i32
    %89 = tpu.dynamic_rotate %1 by %c960_i32 dim 1 : vector<8x1024xf32>, i32 -> vector<8x1024xf32>
    %c176 = arith.constant 176 : index
    %c0_69 = arith.constant 0 : index
    %90 = vector.load %arg2[%c176, %c0_69] : memref<216x1024xf32, #tpu.memory_space<vmem>>, vector<8x1024xf32>
    %91 = arith.mulf %89, %90 : vector<8x1024xf32>
    %c176_70 = arith.constant 176 : index
    %c0_71 = arith.constant 0 : index
    %92 = vector.load %arg10[%c176_70, %c0_71] : memref<216x1024xf32, #tpu.memory_space<vmem>>, vector<8x1024xf32>
    tpu.vector_store %arg10[%c176_70, %c0_71], %91 {strides = array<i32>} : memref<216x1024xf32, #tpu.memory_space<vmem>>, vector<8x1024xf32>,
    %c959_i32 = arith.constant 959 : i32
    %93 = tpu.dynamic_rotate %1 by %c959_i32 dim 1 : vector<8x1024xf32>, i32 -> vector<8x1024xf32>
    %c184 = arith.constant 184 : index
    %c0_72 = arith.constant 0 : index
    %94 = vector.load %arg2[%c184, %c0_72] : memref<216x1024xf32, #tpu.memory_space<vmem>>, vector<8x1024xf32>
    %95 = arith.mulf %93, %94 : vector<8x1024xf32>
    %c184_73 = arith.constant 184 : index
    %c0_74 = arith.constant 0 : index
    %96 = vector.load %arg10[%c184_73, %c0_74] : memref<216x1024xf32, #tpu.memory_space<vmem>>, vector<8x1024xf32>
    tpu.vector_store %arg10[%c184_73, %c0_74], %95 {strides = array<i32>} : memref<216x1024xf32, #tpu.memory_space<vmem>>, vector<8x1024xf32>,
    %c953_i32 = arith.constant 953 : i32
    %97 = tpu.dynamic_rotate %1 by %c953_i32 dim 1 : vector<8x1024xf32>, i32 -> vector<8x1024xf32>
    %c192 = arith.constant 192 : index
    %c0_75 = arith.constant 0 : index
    %98 = vector.load %arg2[%c192, %c0_75] : memref<216x1024xf32, #tpu.memory_space<vmem>>, vector<8x1024xf32>
    %99 = arith.mulf %97, %98 : vector<8x1024xf32>
    %c192_76 = arith.constant 192 : index
    %c0_77 = arith.constant 0 : index
    %100 = vector.load %arg10[%c192_76, %c0_77] : memref<216x1024xf32, #tpu.memory_space<vmem>>, vector<8x1024xf32>
    tpu.vector_store %arg10[%c192_76, %c0_77], %99 {strides = array<i32>} : memref<216x1024xf32, #tpu.memory_space<vmem>>, vector<8x1024xf32>,
    %c952_i32 = arith.constant 952 : i32
    %101 = tpu.dynamic_rotate %1 by %c952_i32 dim 1 : vector<8x1024xf32>, i32 -> vector<8x1024xf32>
    %c200 = arith.constant 200 : index
    %c0_78 = arith.constant 0 : index
    %102 = vector.load %arg2[%c200, %c0_78] : memref<216x1024xf32, #tpu.memory_space<vmem>>, vector<8x1024xf32>
    %103 = arith.mulf %101, %102 : vector<8x1024xf32>
    %c200_79 = arith.constant 200 : index
    %c0_80 = arith.constant 0 : index
    %104 = vector.load %arg10[%c200_79, %c0_80] : memref<216x1024xf32, #tpu.memory_space<vmem>>, vector<8x1024xf32>
    tpu.vector_store %arg10[%c200_79, %c0_80], %103 {strides = array<i32>} : memref<216x1024xf32, #tpu.memory_space<vmem>>, vector<8x1024xf32>,
    %c951_i32 = arith.constant 951 : i32
    %105 = tpu.dynamic_rotate %1 by %c951_i32 dim 1 : vector<8x1024xf32>, i32 -> vector<8x1024xf32>
    %c208 = arith.constant 208 : index
    %c0_81 = arith.constant 0 : index
    %106 = vector.load %arg2[%c208, %c0_81] : memref<216x1024xf32, #tpu.memory_space<vmem>>, vector<8x1024xf32>
    %107 = arith.mulf %105, %106 : vector<8x1024xf32>
    %c208_82 = arith.constant 208 : index
    %c0_83 = arith.constant 0 : index
    %108 = vector.load %arg10[%c208_82, %c0_83] : memref<216x1024xf32, #tpu.memory_space<vmem>>, vector<8x1024xf32>
    tpu.vector_store %arg10[%c208_82, %c0_83], %107 {strides = array<i32>} : memref<216x1024xf32, #tpu.memory_space<vmem>>, vector<8x1024xf32>,
    %c0_84 = arith.constant 0 : index
    %c0_85 = arith.constant 0 : index
    %109 = vector.load %arg3[%c0_84, %c0_85] : memref<8x216xf32, #tpu.memory_space<vmem>>, vector<8x216xf32>
    %c0_86 = arith.constant 0 : index
    %c0_87 = arith.constant 0 : index
    %110 = vector.load %arg10[%c0_86, %c0_87] : memref<216x1024xf32, #tpu.memory_space<vmem>>, vector<216x1024xf32>
    %cst = arith.constant dense<0.000000e+00> : vector<8x1024xf32>
    %111 = tpu.matmul %109, %110, %cst {dimension_numbers = #tpu.dot_dimension_numbers<[1], [0], [0], [1], [0, 0, 1, 1], [], []>} : vector<8x216xf32>, vector<216x1024xf32>, vector<8x1024xf32> -> vector<8x1024xf32>
    %112 = vector.extract_strided_slice %111 {offsets = [0, 0], sizes = [8, 512], strides = [1, 1]} : vector<8x1024xf32> to vector<8x512xf32>
    %cst_88 = arith.constant dense<0.000000e+00> : vector<8xf32>
    %113 = vector.multi_reduction <add>, %112, %cst_88 [1] : vector<8x512xf32> to vector<8xf32>
    %114 = vector.shape_cast %113 : vector<8xf32> to vector<8x1xf32>
    %cst_89 = arith.constant 0.001953125 : f32
    %115 = vector.broadcast %cst_89 : f32 to vector<8x1xf32>
    %116 = arith.mulf %114, %115 : vector<8x1xf32>
    %117 = arith.mulf %112, %112 : vector<8x512xf32>
    %cst_90 = arith.constant dense<0.000000e+00> : vector<8xf32>
    %118 = vector.multi_reduction <add>, %117, %cst_90 [1] : vector<8x512xf32> to vector<8xf32>
    %119 = vector.shape_cast %118 : vector<8xf32> to vector<8x1xf32>
    %cst_91 = arith.constant 0.001953125 : f32
    %120 = vector.broadcast %cst_91 : f32 to vector<8x1xf32>
    %121 = arith.mulf %119, %120 : vector<8x1xf32>
    %122 = arith.mulf %116, %116 : vector<8x1xf32>
    %123 = arith.subf %121, %122 : vector<8x1xf32>
    %cst_92 = arith.constant 0.000000e+00 : f32
    %124 = vector.broadcast %cst_92 : f32 to vector<8x1xf32>
    %125 = arith.maximumf %123, %124 : vector<8x1xf32>
    %126 = vector.broadcast %116 : vector<8x1xf32> to vector<8x512xf32>
    %127 = arith.subf %112, %126 : vector<8x512xf32>
    %cst_93 = arith.constant 9.99999974E-6 : f32
    %128 = vector.broadcast %cst_93 : f32 to vector<8x1xf32>
    %129 = arith.addf %125, %128 : vector<8x1xf32>
    %130 = math.rsqrt %129 : vector<8x1xf32>
    %131 = vector.broadcast %130 : vector<8x1xf32> to vector<8x512xf32>
    %132 = arith.mulf %127, %131 : vector<8x512xf32>
    %133 = vector.extract_strided_slice %111 {offsets = [0, 512], sizes = [8, 512], strides = [1, 1]} : vector<8x1024xf32> to vector<8x512xf32>
    %cst_94 = arith.constant dense<0.000000e+00> : vector<8xf32>
    %134 = vector.multi_reduction <add>, %133, %cst_94 [1] : vector<8x512xf32> to vector<8xf32>
    %135 = vector.shape_cast %134 : vector<8xf32> to vector<8x1xf32>
    %cst_95 = arith.constant 0.001953125 : f32
    %136 = vector.broadcast %cst_95 : f32 to vector<8x1xf32>
    %137 = arith.mulf %135, %136 : vector<8x1xf32>
    %138 = arith.mulf %133, %133 : vector<8x512xf32>
    %cst_96 = arith.constant dense<0.000000e+00> : vector<8xf32>
    %139 = vector.multi_reduction <add>, %138, %cst_96 [1] : vector<8x512xf32> to vector<8xf32>
    %140 = vector.shape_cast %139 : vector<8xf32> to vector<8x1xf32>
    %cst_97 = arith.constant 0.001953125 : f32
    %141 = vector.broadcast %cst_97 : f32 to vector<8x1xf32>
    %142 = arith.mulf %140, %141 : vector<8x1xf32>
    %143 = arith.mulf %137, %137 : vector<8x1xf32>
    %144 = arith.subf %142, %143 : vector<8x1xf32>
    %cst_98 = arith.constant 0.000000e+00 : f32
    %145 = vector.broadcast %cst_98 : f32 to vector<8x1xf32>
    %146 = arith.maximumf %144, %145 : vector<8x1xf32>
    %147 = vector.broadcast %137 : vector<8x1xf32> to vector<8x512xf32>
    %148 = arith.subf %133, %147 : vector<8x512xf32>
    %cst_99 = arith.constant 9.99999974E-6 : f32
    %149 = vector.broadcast %cst_99 : f32 to vector<8x1xf32>
    %150 = arith.addf %146, %149 : vector<8x1xf32>
    %151 = math.rsqrt %150 : vector<8x1xf32>
    %152 = vector.broadcast %151 : vector<8x1xf32> to vector<8x512xf32>
    %153 = arith.mulf %148, %152 : vector<8x512xf32>
    %154 = tpu.concatenate %132, %153 in 1 : vector<8x512xf32>, vector<8x512xf32> -> vector<8x1024xf32>
    %c0_100 = arith.constant 0 : index
    %c0_101 = arith.constant 0 : index
    %155 = vector.load %arg4[%c0_100, %c0_101] : memref<8x1xf32, #tpu.memory_space<vmem>>, vector<8x1xf32>
    %156 = vector.broadcast %155 : vector<8x1xf32> to vector<8x1024xf32>
    %157 = arith.mulf %154, %156 : vector<8x1024xf32>
    %c0_102 = arith.constant 0 : index
    %c0_103 = arith.constant 0 : index
    %158 = vector.load %arg5[%c0_102, %c0_103] : memref<8x1xf32, #tpu.memory_space<vmem>>, vector<8x1xf32>
    %159 = vector.broadcast %158 : vector<8x1xf32> to vector<8x1024xf32>
    %160 = arith.addf %157, %159 : vector<8x1024xf32>
    %cst_104 = arith.constant 0.000000e+00 : f32
    %161 = vector.broadcast %cst_104 : f32 to vector<8x1024xf32>
    %162 = arith.maximumf %160, %161 : vector<8x1024xf32>
    %c73_i32_105 = arith.constant 73 : i32
    %163 = tpu.dynamic_rotate %162 by %c73_i32_105 dim 1 : vector<8x1024xf32>, i32 -> vector<8x1024xf32>
    %c0_106 = arith.constant 0 : index
    %c0_107 = arith.constant 0 : index
    %164 = vector.load %arg2[%c0_106, %c0_107] : memref<216x1024xf32, #tpu.memory_space<vmem>>, vector<8x1024xf32>
    %165 = arith.mulf %163, %164 : vector<8x1024xf32>
    %c0_108 = arith.constant 0 : index
    %c0_109 = arith.constant 0 : index
    %166 = vector.load %arg10[%c0_108, %c0_109] : memref<216x1024xf32, #tpu.memory_space<vmem>>, vector<8x1024xf32>
    tpu.vector_store %arg10[%c0_108, %c0_109], %165 {strides = array<i32>} : memref<216x1024xf32, #tpu.memory_space<vmem>>, vector<8x1024xf32>,
    %c72_i32_110 = arith.constant 72 : i32
    %167 = tpu.dynamic_rotate %162 by %c72_i32_110 dim 1 : vector<8x1024xf32>, i32 -> vector<8x1024xf32>
    %c8_111 = arith.constant 8 : index
    %c0_112 = arith.constant 0 : index
    %168 = vector.load %arg2[%c8_111, %c0_112] : memref<216x1024xf32, #tpu.memory_space<vmem>>, vector<8x1024xf32>
    %169 = arith.mulf %167, %168 : vector<8x1024xf32>
    %c8_113 = arith.constant 8 : index
    %c0_114 = arith.constant 0 : index
    %170 = vector.load %arg10[%c8_113, %c0_114] : memref<216x1024xf32, #tpu.memory_space<vmem>>, vector<8x1024xf32>
    tpu.vector_store %arg10[%c8_113, %c0_114], %169 {strides = array<i32>} : memref<216x1024xf32, #tpu.memory_space<vmem>>, vector<8x1024xf32>,
    %c71_i32_115 = arith.constant 71 : i32
    %171 = tpu.dynamic_rotate %162 by %c71_i32_115 dim 1 : vector<8x1024xf32>, i32 -> vector<8x1024xf32>
    %c16_116 = arith.constant 16 : index
    %c0_117 = arith.constant 0 : index
    %172 = vector.load %arg2[%c16_116, %c0_117] : memref<216x1024xf32, #tpu.memory_space<vmem>>, vector<8x1024xf32>
    %173 = arith.mulf %171, %172 : vector<8x1024xf32>
    %c16_118 = arith.constant 16 : index
    %c0_119 = arith.constant 0 : index
    %174 = vector.load %arg10[%c16_118, %c0_119] : memref<216x1024xf32, #tpu.memory_space<vmem>>, vector<8x1024xf32>
    tpu.vector_store %arg10[%c16_118, %c0_119], %173 {strides = array<i32>} : memref<216x1024xf32, #tpu.memory_space<vmem>>, vector<8x1024xf32>,
    %c65_i32_120 = arith.constant 65 : i32
    %175 = tpu.dynamic_rotate %162 by %c65_i32_120 dim 1 : vector<8x1024xf32>, i32 -> vector<8x1024xf32>
    %c24_121 = arith.constant 24 : index
    %c0_122 = arith.constant 0 : index
    %176 = vector.load %arg2[%c24_121, %c0_122] : memref<216x1024xf32, #tpu.memory_space<vmem>>, vector<8x1024xf32>
    %177 = arith.mulf %175, %176 : vector<8x1024xf32>
    %c24_123 = arith.constant 24 : index
    %c0_124 = arith.constant 0 : index
    %178 = vector.load %arg10[%c24_123, %c0_124] : memref<216x1024xf32, #tpu.memory_space<vmem>>, vector<8x1024xf32>
    tpu.vector_store %arg10[%c24_123, %c0_124], %177 {strides = array<i32>} : memref<216x1024xf32, #tpu.memory_space<vmem>>, vector<8x1024xf32>,
    %c64_i32_125 = arith.constant 64 : i32
    %179 = tpu.dynamic_rotate %162 by %c64_i32_125 dim 1 : vector<8x1024xf32>, i32 -> vector<8x1024xf32>
    %c32_126 = arith.constant 32 : index
    %c0_127 = arith.constant 0 : index
    %180 = vector.load %arg2[%c32_126, %c0_127] : memref<216x1024xf32, #tpu.memory_space<vmem>>, vector<8x1024xf32>
    %181 = arith.mulf %179, %180 : vector<8x1024xf32>
    %c32_128 = arith.constant 32 : index
    %c0_129 = arith.constant 0 : index
    %182 = vector.load %arg10[%c32_128, %c0_129] : memref<216x1024xf32, #tpu.memory_space<vmem>>, vector<8x1024xf32>
    tpu.vector_store %arg10[%c32_128, %c0_129], %181 {strides = array<i32>} : memref<216x1024xf32, #tpu.memory_space<vmem>>, vector<8x1024xf32>,
    %c63_i32_130 = arith.constant 63 : i32
    %183 = tpu.dynamic_rotate %162 by %c63_i32_130 dim 1 : vector<8x1024xf32>, i32 -> vector<8x1024xf32>
    %c40_131 = arith.constant 40 : index
    %c0_132 = arith.constant 0 : index
    %184 = vector.load %arg2[%c40_131, %c0_132] : memref<216x1024xf32, #tpu.memory_space<vmem>>, vector<8x1024xf32>
    %185 = arith.mulf %183, %184 : vector<8x1024xf32>
    %c40_133 = arith.constant 40 : index
    %c0_134 = arith.constant 0 : index
    %186 = vector.load %arg10[%c40_133, %c0_134] : memref<216x1024xf32, #tpu.memory_space<vmem>>, vector<8x1024xf32>
    tpu.vector_store %arg10[%c40_133, %c0_134], %185 {strides = array<i32>} : memref<216x1024xf32, #tpu.memory_space<vmem>>, vector<8x1024xf32>,
    %c57_i32_135 = arith.constant 57 : i32
    %187 = tpu.dynamic_rotate %162 by %c57_i32_135 dim 1 : vector<8x1024xf32>, i32 -> vector<8x1024xf32>
    %c48_136 = arith.constant 48 : index
    %c0_137 = arith.constant 0 : index
    %188 = vector.load %arg2[%c48_136, %c0_137] : memref<216x1024xf32, #tpu.memory_space<vmem>>, vector<8x1024xf32>
    %189 = arith.mulf %187, %188 : vector<8x1024xf32>
    %c48_138 = arith.constant 48 : index
    %c0_139 = arith.constant 0 : index
    %190 = vector.load %arg10[%c48_138, %c0_139] : memref<216x1024xf32, #tpu.memory_space<vmem>>, vector<8x1024xf32>
    tpu.vector_store %arg10[%c48_138, %c0_139], %189 {strides = array<i32>} : memref<216x1024xf32, #tpu.memory_space<vmem>>, vector<8x1024xf32>,
    %c56_i32_140 = arith.constant 56 : i32
    %191 = tpu.dynamic_rotate %162 by %c56_i32_140 dim 1 : vector<8x1024xf32>, i32 -> vector<8x1024xf32>
    %c56_141 = arith.constant 56 : index
    %c0_142 = arith.constant 0 : index
    %192 = vector.load %arg2[%c56_141, %c0_142] : memref<216x1024xf32, #tpu.memory_space<vmem>>, vector<8x1024xf32>
    %193 = arith.mulf %191, %192 : vector<8x1024xf32>
    %c56_143 = arith.constant 56 : index
    %c0_144 = arith.constant 0 : index
    %194 = vector.load %arg10[%c56_143, %c0_144] : memref<216x1024xf32, #tpu.memory_space<vmem>>, vector<8x1024xf32>
    tpu.vector_store %arg10[%c56_143, %c0_144], %193 {strides = array<i32>} : memref<216x1024xf32, #tpu.memory_space<vmem>>, vector<8x1024xf32>,
    %c55_i32_145 = arith.constant 55 : i32
    %195 = tpu.dynamic_rotate %162 by %c55_i32_145 dim 1 : vector<8x1024xf32>, i32 -> vector<8x1024xf32>
    %c64_146 = arith.constant 64 : index
    %c0_147 = arith.constant 0 : index
    %196 = vector.load %arg2[%c64_146, %c0_147] : memref<216x1024xf32, #tpu.memory_space<vmem>>, vector<8x1024xf32>
    %197 = arith.mulf %195, %196 : vector<8x1024xf32>
    %c64_148 = arith.constant 64 : index
    %c0_149 = arith.constant 0 : index
    %198 = vector.load %arg10[%c64_148, %c0_149] : memref<216x1024xf32, #tpu.memory_space<vmem>>, vector<8x1024xf32>
    tpu.vector_store %arg10[%c64_148, %c0_149], %197 {strides = array<i32>} : memref<216x1024xf32, #tpu.memory_space<vmem>>, vector<8x1024xf32>,
    %c9_i32_150 = arith.constant 9 : i32
    %199 = tpu.dynamic_rotate %162 by %c9_i32_150 dim 1 : vector<8x1024xf32>, i32 -> vector<8x1024xf32>
    %c72_151 = arith.constant 72 : index
    %c0_152 = arith.constant 0 : index
    %200 = vector.load %arg2[%c72_151, %c0_152] : memref<216x1024xf32, #tpu.memory_space<vmem>>, vector<8x1024xf32>
    %201 = arith.mulf %199, %200 : vector<8x1024xf32>
    %c72_153 = arith.constant 72 : index
    %c0_154 = arith.constant 0 : index
    %202 = vector.load %arg10[%c72_153, %c0_154] : memref<216x1024xf32, #tpu.memory_space<vmem>>, vector<8x1024xf32>
    tpu.vector_store %arg10[%c72_153, %c0_154], %201 {strides = array<i32>} : memref<216x1024xf32, #tpu.memory_space<vmem>>, vector<8x1024xf32>,
    %c8_i32_155 = arith.constant 8 : i32
    %203 = tpu.dynamic_rotate %162 by %c8_i32_155 dim 1 : vector<8x1024xf32>, i32 -> vector<8x1024xf32>
    %c80_156 = arith.constant 80 : index
    %c0_157 = arith.constant 0 : index
    %204 = vector.load %arg2[%c80_156, %c0_157] : memref<216x1024xf32, #tpu.memory_space<vmem>>, vector<8x1024xf32>
    %205 = arith.mulf %203, %204 : vector<8x1024xf32>
    %c80_158 = arith.constant 80 : index
    %c0_159 = arith.constant 0 : index
    %206 = vector.load %arg10[%c80_158, %c0_159] : memref<216x1024xf32, #tpu.memory_space<vmem>>, vector<8x1024xf32>
    tpu.vector_store %arg10[%c80_158, %c0_159], %205 {strides = array<i32>} : memref<216x1024xf32, #tpu.memory_space<vmem>>, vector<8x1024xf32>,
    %c7_i32_160 = arith.constant 7 : i32
    %207 = tpu.dynamic_rotate %162 by %c7_i32_160 dim 1 : vector<8x1024xf32>, i32 -> vector<8x1024xf32>
    %c88_161 = arith.constant 88 : index
    %c0_162 = arith.constant 0 : index
    %208 = vector.load %arg2[%c88_161, %c0_162] : memref<216x1024xf32, #tpu.memory_space<vmem>>, vector<8x1024xf32>
    %209 = arith.mulf %207, %208 : vector<8x1024xf32>
    %c88_163 = arith.constant 88 : index
    %c0_164 = arith.constant 0 : index
    %210 = vector.load %arg10[%c88_163, %c0_164] : memref<216x1024xf32, #tpu.memory_space<vmem>>, vector<8x1024xf32>
    tpu.vector_store %arg10[%c88_163, %c0_164], %209 {strides = array<i32>} : memref<216x1024xf32, #tpu.memory_space<vmem>>, vector<8x1024xf32>,
    %c1_i32_165 = arith.constant 1 : i32
    %211 = tpu.dynamic_rotate %162 by %c1_i32_165 dim 1 : vector<8x1024xf32>, i32 -> vector<8x1024xf32>
    %c96_166 = arith.constant 96 : index
    %c0_167 = arith.constant 0 : index
    %212 = vector.load %arg2[%c96_166, %c0_167] : memref<216x1024xf32, #tpu.memory_space<vmem>>, vector<8x1024xf32>
    %213 = arith.mulf %211, %212 : vector<8x1024xf32>
    %c96_168 = arith.constant 96 : index
    %c0_169 = arith.constant 0 : index
    %214 = vector.load %arg10[%c96_168, %c0_169] : memref<216x1024xf32, #tpu.memory_space<vmem>>, vector<8x1024xf32>
    tpu.vector_store %arg10[%c96_168, %c0_169], %213 {strides = array<i32>} : memref<216x1024xf32, #tpu.memory_space<vmem>>, vector<8x1024xf32>,
    %c104_170 = arith.constant 104 : index
    %c0_171 = arith.constant 0 : index
    %215 = vector.load %arg2[%c104_170, %c0_171] : memref<216x1024xf32, #tpu.memory_space<vmem>>, vector<8x1024xf32>
    %216 = arith.mulf %162, %215 : vector<8x1024xf32>
    %c104_172 = arith.constant 104 : index
    %c0_173 = arith.constant 0 : index
    %217 = vector.load %arg10[%c104_172, %c0_173] : memref<216x1024xf32, #tpu.memory_space<vmem>>, vector<8x1024xf32>
    tpu.vector_store %arg10[%c104_172, %c0_173], %216 {strides = array<i32>} : memref<216x1024xf32, #tpu.memory_space<vmem>>, vector<8x1024xf32>,
    %c1023_i32_174 = arith.constant 1023 : i32
    %218 = tpu.dynamic_rotate %162 by %c1023_i32_174 dim 1 : vector<8x1024xf32>, i32 -> vector<8x1024xf32>
    %c112_175 = arith.constant 112 : index
    %c0_176 = arith.constant 0 : index
    %219 = vector.load %arg2[%c112_175, %c0_176] : memref<216x1024xf32, #tpu.memory_space<vmem>>, vector<8x1024xf32>
    %220 = arith.mulf %218, %219 : vector<8x1024xf32>
    %c112_177 = arith.constant 112 : index
    %c0_178 = arith.constant 0 : index
    %221 = vector.load %arg10[%c112_177, %c0_178] : memref<216x1024xf32, #tpu.memory_space<vmem>>, vector<8x1024xf32>
    tpu.vector_store %arg10[%c112_177, %c0_178], %220 {strides = array<i32>} : memref<216x1024xf32, #tpu.memory_space<vmem>>, vector<8x1024xf32>,
    %c1017_i32_179 = arith.constant 1017 : i32
    %222 = tpu.dynamic_rotate %162 by %c1017_i32_179 dim 1 : vector<8x1024xf32>, i32 -> vector<8x1024xf32>
    %c120_180 = arith.constant 120 : index
    %c0_181 = arith.constant 0 : index
    %223 = vector.load %arg2[%c120_180, %c0_181] : memref<216x1024xf32, #tpu.memory_space<vmem>>, vector<8x1024xf32>
    %224 = arith.mulf %222, %223 : vector<8x1024xf32>
    %c120_182 = arith.constant 120 : index
    %c0_183 = arith.constant 0 : index
    %225 = vector.load %arg10[%c120_182, %c0_183] : memref<216x1024xf32, #tpu.memory_space<vmem>>, vector<8x1024xf32>
    tpu.vector_store %arg10[%c120_182, %c0_183], %224 {strides = array<i32>} : memref<216x1024xf32, #tpu.memory_space<vmem>>, vector<8x1024xf32>,
    %c1016_i32_184 = arith.constant 1016 : i32
    %226 = tpu.dynamic_rotate %162 by %c1016_i32_184 dim 1 : vector<8x1024xf32>, i32 -> vector<8x1024xf32>
    %c128_185 = arith.constant 128 : index
    %c0_186 = arith.constant 0 : index
    %227 = vector.load %arg2[%c128_185, %c0_186] : memref<216x1024xf32, #tpu.memory_space<vmem>>, vector<8x1024xf32>
    %228 = arith.mulf %226, %227 : vector<8x1024xf32>
    %c128_187 = arith.constant 128 : index
    %c0_188 = arith.constant 0 : index
    %229 = vector.load %arg10[%c128_187, %c0_188] : memref<216x1024xf32, #tpu.memory_space<vmem>>, vector<8x1024xf32>
    tpu.vector_store %arg10[%c128_187, %c0_188], %228 {strides = array<i32>} : memref<216x1024xf32, #tpu.memory_space<vmem>>, vector<8x1024xf32>,
    %c1015_i32_189 = arith.constant 1015 : i32
    %230 = tpu.dynamic_rotate %162 by %c1015_i32_189 dim 1 : vector<8x1024xf32>, i32 -> vector<8x1024xf32>
    %c136_190 = arith.constant 136 : index
    %c0_191 = arith.constant 0 : index
    %231 = vector.load %arg2[%c136_190, %c0_191] : memref<216x1024xf32, #tpu.memory_space<vmem>>, vector<8x1024xf32>
    %232 = arith.mulf %230, %231 : vector<8x1024xf32>
    %c136_192 = arith.constant 136 : index
    %c0_193 = arith.constant 0 : index
    %233 = vector.load %arg10[%c136_192, %c0_193] : memref<216x1024xf32, #tpu.memory_space<vmem>>, vector<8x1024xf32>
    tpu.vector_store %arg10[%c136_192, %c0_193], %232 {strides = array<i32>} : memref<216x1024xf32, #tpu.memory_space<vmem>>, vector<8x1024xf32>,
    %c969_i32_194 = arith.constant 969 : i32
    %234 = tpu.dynamic_rotate %162 by %c969_i32_194 dim 1 : vector<8x1024xf32>, i32 -> vector<8x1024xf32>
    %c144_195 = arith.constant 144 : index
    %c0_196 = arith.constant 0 : index
    %235 = vector.load %arg2[%c144_195, %c0_196] : memref<216x1024xf32, #tpu.memory_space<vmem>>, vector<8x1024xf32>
    %236 = arith.mulf %234, %235 : vector<8x1024xf32>
    %c144_197 = arith.constant 144 : index
    %c0_198 = arith.constant 0 : index
    %237 = vector.load %arg10[%c144_197, %c0_198] : memref<216x1024xf32, #tpu.memory_space<vmem>>, vector<8x1024xf32>
    tpu.vector_store %arg10[%c144_197, %c0_198], %236 {strides = array<i32>} : memref<216x1024xf32, #tpu.memory_space<vmem>>, vector<8x1024xf32>,
    %c968_i32_199 = arith.constant 968 : i32
    %238 = tpu.dynamic_rotate %162 by %c968_i32_199 dim 1 : vector<8x1024xf32>, i32 -> vector<8x1024xf32>
    %c152_200 = arith.constant 152 : index
    %c0_201 = arith.constant 0 : index
    %239 = vector.load %arg2[%c152_200, %c0_201] : memref<216x1024xf32, #tpu.memory_space<vmem>>, vector<8x1024xf32>
    %240 = arith.mulf %238, %239 : vector<8x1024xf32>
    %c152_202 = arith.constant 152 : index
    %c0_203 = arith.constant 0 : index
    %241 = vector.load %arg10[%c152_202, %c0_203] : memref<216x1024xf32, #tpu.memory_space<vmem>>, vector<8x1024xf32>
    tpu.vector_store %arg10[%c152_202, %c0_203], %240 {strides = array<i32>} : memref<216x1024xf32, #tpu.memory_space<vmem>>, vector<8x1024xf32>,
    %c967_i32_204 = arith.constant 967 : i32
    %242 = tpu.dynamic_rotate %162 by %c967_i32_204 dim 1 : vector<8x1024xf32>, i32 -> vector<8x1024xf32>
    %c160_205 = arith.constant 160 : index
    %c0_206 = arith.constant 0 : index
    %243 = vector.load %arg2[%c160_205, %c0_206] : memref<216x1024xf32, #tpu.memory_space<vmem>>, vector<8x1024xf32>
    %244 = arith.mulf %242, %243 : vector<8x1024xf32>
    %c160_207 = arith.constant 160 : index
    %c0_208 = arith.constant 0 : index
    %245 = vector.load %arg10[%c160_207, %c0_208] : memref<216x1024xf32, #tpu.memory_space<vmem>>, vector<8x1024xf32>
    tpu.vector_store %arg10[%c160_207, %c0_208], %244 {strides = array<i32>} : memref<216x1024xf32, #tpu.memory_space<vmem>>, vector<8x1024xf32>,
    %c961_i32_209 = arith.constant 961 : i32
    %246 = tpu.dynamic_rotate %162 by %c961_i32_209 dim 1 : vector<8x1024xf32>, i32 -> vector<8x1024xf32>
    %c168_210 = arith.constant 168 : index
    %c0_211 = arith.constant 0 : index
    %247 = vector.load %arg2[%c168_210, %c0_211] : memref<216x1024xf32, #tpu.memory_space<vmem>>, vector<8x1024xf32>
    %248 = arith.mulf %246, %247 : vector<8x1024xf32>
    %c168_212 = arith.constant 168 : index
    %c0_213 = arith.constant 0 : index
    %249 = vector.load %arg10[%c168_212, %c0_213] : memref<216x1024xf32, #tpu.memory_space<vmem>>, vector<8x1024xf32>
    tpu.vector_store %arg10[%c168_212, %c0_213], %248 {strides = array<i32>} : memref<216x1024xf32, #tpu.memory_space<vmem>>, vector<8x1024xf32>,
    %c960_i32_214 = arith.constant 960 : i32
    %250 = tpu.dynamic_rotate %162 by %c960_i32_214 dim 1 : vector<8x1024xf32>, i32 -> vector<8x1024xf32>
    %c176_215 = arith.constant 176 : index
    %c0_216 = arith.constant 0 : index
    %251 = vector.load %arg2[%c176_215, %c0_216] : memref<216x1024xf32, #tpu.memory_space<vmem>>, vector<8x1024xf32>
    %252 = arith.mulf %250, %251 : vector<8x1024xf32>
    %c176_217 = arith.constant 176 : index
    %c0_218 = arith.constant 0 : index
    %253 = vector.load %arg10[%c176_217, %c0_218] : memref<216x1024xf32, #tpu.memory_space<vmem>>, vector<8x1024xf32>
    tpu.vector_store %arg10[%c176_217, %c0_218], %252 {strides = array<i32>} : memref<216x1024xf32, #tpu.memory_space<vmem>>, vector<8x1024xf32>,
    %c959_i32_219 = arith.constant 959 : i32
    %254 = tpu.dynamic_rotate %162 by %c959_i32_219 dim 1 : vector<8x1024xf32>, i32 -> vector<8x1024xf32>
    %c184_220 = arith.constant 184 : index
    %c0_221 = arith.constant 0 : index
    %255 = vector.load %arg2[%c184_220, %c0_221] : memref<216x1024xf32, #tpu.memory_space<vmem>>, vector<8x1024xf32>
    %256 = arith.mulf %254, %255 : vector<8x1024xf32>
    %c184_222 = arith.constant 184 : index
    %c0_223 = arith.constant 0 : index
    %257 = vector.load %arg10[%c184_222, %c0_223] : memref<216x1024xf32, #tpu.memory_space<vmem>>, vector<8x1024xf32>
    tpu.vector_store %arg10[%c184_222, %c0_223], %256 {strides = array<i32>} : memref<216x1024xf32, #tpu.memory_space<vmem>>, vector<8x1024xf32>,
    %c953_i32_224 = arith.constant 953 : i32
    %258 = tpu.dynamic_rotate %162 by %c953_i32_224 dim 1 : vector<8x1024xf32>, i32 -> vector<8x1024xf32>
    %c192_225 = arith.constant 192 : index
    %c0_226 = arith.constant 0 : index
    %259 = vector.load %arg2[%c192_225, %c0_226] : memref<216x1024xf32, #tpu.memory_space<vmem>>, vector<8x1024xf32>
    %260 = arith.mulf %258, %259 : vector<8x1024xf32>
    %c192_227 = arith.constant 192 : index
    %c0_228 = arith.constant 0 : index
    %261 = vector.load %arg10[%c192_227, %c0_228] : memref<216x1024xf32, #tpu.memory_space<vmem>>, vector<8x1024xf32>
    tpu.vector_store %arg10[%c192_227, %c0_228], %260 {strides = array<i32>} : memref<216x1024xf32, #tpu.memory_space<vmem>>, vector<8x1024xf32>,
    %c952_i32_229 = arith.constant 952 : i32
    %262 = tpu.dynamic_rotate %162 by %c952_i32_229 dim 1 : vector<8x1024xf32>, i32 -> vector<8x1024xf32>
    %c200_230 = arith.constant 200 : index
    %c0_231 = arith.constant 0 : index
    %263 = vector.load %arg2[%c200_230, %c0_231] : memref<216x1024xf32, #tpu.memory_space<vmem>>, vector<8x1024xf32>
    %264 = arith.mulf %262, %263 : vector<8x1024xf32>
    %c200_232 = arith.constant 200 : index
    %c0_233 = arith.constant 0 : index
    %265 = vector.load %arg10[%c200_232, %c0_233] : memref<216x1024xf32, #tpu.memory_space<vmem>>, vector<8x1024xf32>
    tpu.vector_store %arg10[%c200_232, %c0_233], %264 {strides = array<i32>} : memref<216x1024xf32, #tpu.memory_space<vmem>>, vector<8x1024xf32>,
    %c951_i32_234 = arith.constant 951 : i32
    %266 = tpu.dynamic_rotate %162 by %c951_i32_234 dim 1 : vector<8x1024xf32>, i32 -> vector<8x1024xf32>
    %c208_235 = arith.constant 208 : index
    %c0_236 = arith.constant 0 : index
    %267 = vector.load %arg2[%c208_235, %c0_236] : memref<216x1024xf32, #tpu.memory_space<vmem>>, vector<8x1024xf32>
    %268 = arith.mulf %266, %267 : vector<8x1024xf32>
    %c208_237 = arith.constant 208 : index
    %c0_238 = arith.constant 0 : index
    %269 = vector.load %arg10[%c208_237, %c0_238] : memref<216x1024xf32, #tpu.memory_space<vmem>>, vector<8x1024xf32>
    tpu.vector_store %arg10[%c208_237, %c0_238], %268 {strides = array<i32>} : memref<216x1024xf32, #tpu.memory_space<vmem>>, vector<8x1024xf32>,
    %c0_239 = arith.constant 0 : index
    %c0_240 = arith.constant 0 : index
    %270 = vector.load %arg6[%c0_239, %c0_240] : memref<8x216xf32, #tpu.memory_space<vmem>>, vector<8x216xf32>
    %c0_241 = arith.constant 0 : index
    %c0_242 = arith.constant 0 : index
    %271 = vector.load %arg10[%c0_241, %c0_242] : memref<216x1024xf32, #tpu.memory_space<vmem>>, vector<216x1024xf32>
    %cst_243 = arith.constant dense<0.000000e+00> : vector<8x1024xf32>
    %272 = tpu.matmul %270, %271, %cst_243 {dimension_numbers = #tpu.dot_dimension_numbers<[1], [0], [0], [1], [0, 0, 1, 1], [], []>} : vector<8x216xf32>, vector<216x1024xf32>, vector<8x1024xf32> -> vector<8x1024xf32>
    %273 = vector.extract_strided_slice %272 {offsets = [0, 0], sizes = [8, 512], strides = [1, 1]} : vector<8x1024xf32> to vector<8x512xf32>
    %cst_244 = arith.constant dense<0.000000e+00> : vector<8xf32>
    %274 = vector.multi_reduction <add>, %273, %cst_244 [1] : vector<8x512xf32> to vector<8xf32>
    %275 = vector.shape_cast %274 : vector<8xf32> to vector<8x1xf32>
    %cst_245 = arith.constant 0.001953125 : f32
    %276 = vector.broadcast %cst_245 : f32 to vector<8x1xf32>
    %277 = arith.mulf %275, %276 : vector<8x1xf32>
    %278 = arith.mulf %273, %273 : vector<8x512xf32>
    %cst_246 = arith.constant dense<0.000000e+00> : vector<8xf32>
    %279 = vector.multi_reduction <add>, %278, %cst_246 [1] : vector<8x512xf32> to vector<8xf32>
    %280 = vector.shape_cast %279 : vector<8xf32> to vector<8x1xf32>
    %cst_247 = arith.constant 0.001953125 : f32
    %281 = vector.broadcast %cst_247 : f32 to vector<8x1xf32>
    %282 = arith.mulf %280, %281 : vector<8x1xf32>
    %283 = arith.mulf %277, %277 : vector<8x1xf32>
    %284 = arith.subf %282, %283 : vector<8x1xf32>
    %cst_248 = arith.constant 0.000000e+00 : f32
    %285 = vector.broadcast %cst_248 : f32 to vector<8x1xf32>
    %286 = arith.maximumf %284, %285 : vector<8x1xf32>
    %287 = vector.broadcast %277 : vector<8x1xf32> to vector<8x512xf32>
    %288 = arith.subf %273, %287 : vector<8x512xf32>
    %cst_249 = arith.constant 9.99999974E-6 : f32
    %289 = vector.broadcast %cst_249 : f32 to vector<8x1xf32>
    %290 = arith.addf %286, %289 : vector<8x1xf32>
    %291 = math.rsqrt %290 : vector<8x1xf32>
    %292 = vector.broadcast %291 : vector<8x1xf32> to vector<8x512xf32>
    %293 = arith.mulf %288, %292 : vector<8x512xf32>
    %294 = vector.extract_strided_slice %272 {offsets = [0, 512], sizes = [8, 512], strides = [1, 1]} : vector<8x1024xf32> to vector<8x512xf32>
    %cst_250 = arith.constant dense<0.000000e+00> : vector<8xf32>
    %295 = vector.multi_reduction <add>, %294, %cst_250 [1] : vector<8x512xf32> to vector<8xf32>
    %296 = vector.shape_cast %295 : vector<8xf32> to vector<8x1xf32>
    %cst_251 = arith.constant 0.001953125 : f32
    %297 = vector.broadcast %cst_251 : f32 to vector<8x1xf32>
    %298 = arith.mulf %296, %297 : vector<8x1xf32>
    %299 = arith.mulf %294, %294 : vector<8x512xf32>
    %cst_252 = arith.constant dense<0.000000e+00> : vector<8xf32>
    %300 = vector.multi_reduction <add>, %299, %cst_252 [1] : vector<8x512xf32> to vector<8xf32>
    %301 = vector.shape_cast %300 : vector<8xf32> to vector<8x1xf32>
    %cst_253 = arith.constant 0.001953125 : f32
    %302 = vector.broadcast %cst_253 : f32 to vector<8x1xf32>
    %303 = arith.mulf %301, %302 : vector<8x1xf32>
    %304 = arith.mulf %298, %298 : vector<8x1xf32>
    %305 = arith.subf %303, %304 : vector<8x1xf32>
    %cst_254 = arith.constant 0.000000e+00 : f32
    %306 = vector.broadcast %cst_254 : f32 to vector<8x1xf32>
    %307 = arith.maximumf %305, %306 : vector<8x1xf32>
    %308 = vector.broadcast %298 : vector<8x1xf32> to vector<8x512xf32>
    %309 = arith.subf %294, %308 : vector<8x512xf32>
    %cst_255 = arith.constant 9.99999974E-6 : f32
    %310 = vector.broadcast %cst_255 : f32 to vector<8x1xf32>
    %311 = arith.addf %307, %310 : vector<8x1xf32>
    %312 = math.rsqrt %311 : vector<8x1xf32>
    %313 = vector.broadcast %312 : vector<8x1xf32> to vector<8x512xf32>
    %314 = arith.mulf %309, %313 : vector<8x512xf32>
    %315 = tpu.concatenate %293, %314 in 1 : vector<8x512xf32>, vector<8x512xf32> -> vector<8x1024xf32>
    %c0_256 = arith.constant 0 : index
    %c0_257 = arith.constant 0 : index
    %316 = vector.load %arg7[%c0_256, %c0_257] : memref<8x1xf32, #tpu.memory_space<vmem>>, vector<8x1xf32>
    %317 = vector.broadcast %316 : vector<8x1xf32> to vector<8x1024xf32>
    %318 = arith.mulf %315, %317 : vector<8x1024xf32>
    %c0_258 = arith.constant 0 : index
    %c0_259 = arith.constant 0 : index
    %319 = vector.load %arg8[%c0_258, %c0_259] : memref<8x1xf32, #tpu.memory_space<vmem>>, vector<8x1xf32>
    %320 = vector.broadcast %319 : vector<8x1xf32> to vector<8x1024xf32>
    %321 = arith.addf %318, %320 : vector<8x1024xf32>
    %322 = arith.addf %321, %162 : vector<8x1024xf32>
    %cst_260 = arith.constant 0.000000e+00 : f32
    %323 = vector.broadcast %cst_260 : f32 to vector<8x1024xf32>
    %324 = arith.maximumf %322, %323 : vector<8x1024xf32>
    %c0_261 = arith.constant 0 : index
    %c0_262 = arith.constant 0 : index
    %c0_263 = arith.constant 0 : index
    %325 = vector.load %arg9[%c0_261, %c0_262, %c0_263] : memref<1x8x1024xf32, #tpu.memory_space<vmem>>, vector<1x8x1024xf32>
    %326 = vector.shape_cast %325 : vector<1x8x1024xf32> to vector<8x1024xf32>
    %327 = vector.shape_cast %324 : vector<8x1024xf32> to vector<1x8x1024xf32>
    tpu.vector_store %arg9[%c0_261, %c0_262, %c0_263], %327 {strides = array<i32>} : memref<1x8x1024xf32, #tpu.memory_space<vmem>>, vector<1x8x1024xf32>,
    return
  }
  func.func @transform_0(%arg0: i32) -> (i32, i32, i32) {
    %c0_i32 = arith.constant 0 : i32
    %c0_i32_0 = arith.constant 0 : i32
    %c0_i32_1 = arith.constant 0 : i32
    return %arg0, %c0_i32, %c0_i32_0 : i32, i32, i32
  }
  func.func @transform_1(%arg0: i32) -> (i32, i32) {
    %c0_i32 = arith.constant 0 : i32
    %c0_i32_0 = arith.constant 0 : i32
    %c0_i32_1 = arith.constant 0 : i32
    return %c0_i32, %c0_i32_0 : i32, i32
  }
  func.func @transform_2(%arg0: i32) -> (i32, i32) {
    %c0_i32 = arith.constant 0 : i32
    %c0_i32_0 = arith.constant 0 : i32
    %c0_i32_1 = arith.constant 0 : i32
    return %c0_i32, %c0_i32_0 : i32, i32
  }
  func.func @transform_3(%arg0: i32) -> (i32, i32) {
    %c0_i32 = arith.constant 0 : i32
    %c0_i32_0 = arith.constant 0 : i32
    %c0_i32_1 = arith.constant 0 : i32
    return %c0_i32, %c0_i32_0 : i32, i32
  }
  func.func @transform_4(%arg0: i32) -> (i32, i32) {
    %c0_i32 = arith.constant 0 : i32
    %c0_i32_0 = arith.constant 0 : i32
    %c0_i32_1 = arith.constant 0 : i32
    return %c0_i32, %c0_i32_0 : i32, i32
  }
  func.func @transform_5(%arg0: i32) -> (i32, i32) {
    %c0_i32 = arith.constant 0 : i32
    %c0_i32_0 = arith.constant 0 : i32
    %c0_i32_1 = arith.constant 0 : i32
    return %c0_i32, %c0_i32_0 : i32, i32
  }
  func.func @transform_6(%arg0: i32) -> (i32, i32) {
    %c0_i32 = arith.constant 0 : i32
    %c0_i32_0 = arith.constant 0 : i32
    %c0_i32_1 = arith.constant 0 : i32
    return %c0_i32, %c0_i32_0 : i32, i32
  }
  func.func @transform_7(%arg0: i32) -> (i32, i32) {
    %c0_i32 = arith.constant 0 : i32
    %c0_i32_0 = arith.constant 0 : i32
    %c0_i32_1 = arith.constant 0 : i32
    return %c0_i32, %c0_i32_0 : i32, i32
  }
  func.func @transform_8(%arg0: i32) -> (i32, i32, i32) {
    %c0_i32 = arith.constant 0 : i32
    %c0_i32_0 = arith.constant 0 : i32
    %c0_i32_1 = arith.constant 0 : i32
    return %arg0, %c0_i32, %c0_i32_0 : i32, i32, i32
  }
}

</mosaic_0001>

<llo_original>
// kernel: double_conv_pallas.1
$region0: #{double_conv_pallas.1}
  #allocation0 [shape = 'u32[]', space=smem, size = 0x4, offset = 0x4, fixed_abs, tag = 'smem constant byte address 0x4 - core index']
  #allocation1 [shape = 'u32[144,128]{1,0:T(1,128)}', space=vmem, size = 0x12000, scoped, tag = 'internal scratch']
  #allocation2 [shape = 'f32[216,1024]{1,0:T(8,128)}', space=vmem, size = 0xd8000, scoped, tag = 'scratch operand']
  %s0 = inlined_call_operand.vmem [shape: f32[1,8,1024], index: 0, kind: input, shape index: {}]
  %s1 = inlined_call_operand.vmem [shape: f32[216,1024], index: 1, kind: input, shape index: {}]
  %s2 = inlined_call_operand.vmem [shape: f32[8,216], index: 2, kind: input, shape index: {}]
  %s3 = inlined_call_operand.vmem [shape: f32[8,1], index: 3, kind: input, shape index: {}]
  %s4 = inlined_call_operand.vmem [shape: f32[8,1], index: 4, kind: input, shape index: {}]
  %s5 = inlined_call_operand.vmem [shape: f32[8,216], index: 5, kind: input, shape index: {}]
  %s6 = inlined_call_operand.vmem [shape: f32[8,1], index: 6, kind: input, shape index: {}]
  %s7 = inlined_call_operand.vmem [shape: f32[8,1], index: 7, kind: input, shape index: {}]
  %s8 = inlined_call_operand.vmem [shape: f32[1,8,1024], index: 8, kind: output, shape index: {}]
  %s9 = sld [smem:[#allocation0]]
  $region42: #{double_conv_pallas.1} parent=0
    _
  %s11 = ssub.s32 1, %s9
  %s12 = scalar_select 0, %s11, %s9
  // Predicated region
  $region2: #{double_conv_pallas.1} parent=0 // pred_check
    _
  $region3: #{double_conv_pallas.1} parent=0 // pred_check_branch
    %14 = sbr.rel (0) target = $region5
  $region4: #{double_conv_pallas.1} parent=0 // pred_region
    _
  $region5: #{double_conv_pallas.1} parent=0 // pred_fallthru
    _
  // Predicated region
  $region6: #{double_conv_pallas.1} parent=0 // pred_check
    _
  $region7: #{double_conv_pallas.1} parent=0 // pred_check_branch
    %16 = sbr.rel (0) target = $region9
  $region8: #{double_conv_pallas.1} parent=0 // pred_region
    _
  $region9: #{double_conv_pallas.1} parent=0 // pred_fallthru
    _
  // Predicated region
  $region10: #{double_conv_pallas.1} parent=0 // pred_check
    _
  $region11: #{double_conv_pallas.1} parent=0 // pred_check_branch
    %18 = sbr.rel (0) target = $region13
  $region12: #{double_conv_pallas.1} parent=0 // pred_region
    _
  $region13: #{double_conv_pallas.1} parent=0 // pred_fallthru
    _
  // Predicated region
  $region14: #{double_conv_pallas.1} parent=0 // pred_check
    _
  $region15: #{double_conv_pallas.1} parent=0 // pred_check_branch
    %20 = sbr.rel (0) target = $region17
  $region16: #{double_conv_pallas.1} parent=0 // pred_region
    _
  $region17: #{double_conv_pallas.1} parent=0 // pred_fallthru
    _
  // Predicated region
  $region18: #{double_conv_pallas.1} parent=0 // pred_check
    _
  $region19: #{double_conv_pallas.1} parent=0 // pred_check_branch
    %22 = sbr.rel (0) target = $region21
  $region20: #{double_conv_pallas.1} parent=0 // pred_region
    _
  $region21: #{double_conv_pallas.1} parent=0 // pred_fallthru
    _
  // Predicated region
  $region22: #{double_conv_pallas.1} parent=0 // pred_check
    _
  $region23: #{double_conv_pallas.1} parent=0 // pred_check_branch
    %24 = sbr.rel (0) target = $region25
  $region24: #{double_conv_pallas.1} parent=0 // pred_region
    _
  $region25: #{double_conv_pallas.1} parent=0 // pred_fallthru
    _
  // Predicated region
  $region26: #{double_conv_pallas.1} parent=0 // pred_check
    _
  $region27: #{double_conv_pallas.1} parent=0 // pred_check_branch
    %26 = sbr.rel (0) target = $region29
  $region28: #{double_conv_pallas.1} parent=0 // pred_region
    _
  $region29: #{double_conv_pallas.1} parent=0 // pred_fallthru
    _
  // Predicated region
  $region30: #{double_conv_pallas.1} parent=0 // pred_check
    _
  $region31: #{double_conv_pallas.1} parent=0 // pred_check_branch
    %28 = sbr.rel (0) target = $region33
  $region32: #{double_conv_pallas.1} parent=0 // pred_region
    _
  $region33: #{double_conv_pallas.1} parent=0 // pred_fallthru
    _
  %v29 = vld [vmem:[%s0] sm:$0xff]
  %v30 = vld [vmem:[%s0 + $0x8] sm:$0xff]
  %v31 = vld [vmem:[%s0 + $0x10] sm:$0xff]
  %v32 = vld [vmem:[%s0 + $0x18] sm:$0xff]
  %v33 = vld [vmem:[%s0 + $0x20] sm:$0xff]
  %v34 = vld [vmem:[%s0 + $0x28] sm:$0xff]
  %v35 = vld [vmem:[%s0 + $0x30] sm:$0xff]
  %v36 = vld [vmem:[%s0 + $0x38] sm:$0xff]
  %37 = vrot.lane.b32.xlu0 %v29, 73
  %v38 = vpop.permute.xlu0 %37
  %39 = vrot.lane.b32.xlu0 %v30, 73
  %v40 = vpop.permute.xlu0 %39
  %41 = vrot.lane.b32.xlu0 %v31, 73
  %v42 = vpop.permute.xlu0 %41
  %43 = vrot.lane.b32.xlu0 %v32, 73
  %v44 = vpop.permute.xlu0 %43
  %45 = vrot.lane.b32.xlu0 %v33, 73
  %v46 = vpop.permute.xlu0 %45
  %47 = vrot.lane.b32.xlu0 %v34, 73
  %v48 = vpop.permute.xlu0 %47
  %49 = vrot.lane.b32.xlu0 %v35, 73
  %v50 = vpop.permute.xlu0 %49
  %51 = vrot.lane.b32.xlu0 %v36, 73
  %v52 = vpop.permute.xlu0 %51
  %v53 = vlaneseq
  %v54 = vand.u32 %v53, 127
  %vm55 = vcmp.lt.s32.totalorder %v54, 73
  %v56 = vsel %vm55, %v50, %v52
  %v57 = vsel %vm55, %v48, %v50
  %v58 = vsel %vm55, %v46, %v48
  %v59 = vsel %vm55, %v44, %v46
  %v60 = vsel %vm55, %v42, %v44
  %v61 = vsel %vm55, %v40, %v42
  %v62 = vsel %vm55, %v38, %v40
  %v63 = vsel %vm55, %v52, %v38
  %v64 = vld [vmem:[%s1] sm:$0xff]
  %v65 = vld [vmem:[%s1 + $0x8] sm:$0xff]
  %v66 = vld [vmem:[%s1 + $0x10] sm:$0xff]
  %v67 = vld [vmem:[%s1 + $0x18] sm:$0xff]
  %v68 = vld [vmem:[%s1 + $0x20] sm:$0xff]
  %v69 = vld [vmem:[%s1 + $0x28] sm:$0xff]
  %v70 = vld [vmem:[%s1 + $0x30] sm:$0xff]
  %v71 = vld [vmem:[%s1 + $0x38] sm:$0xff]
  %v72 = vmul.f32 %v63, %v64
  %v73 = vmul.f32 %v62, %v65
  %v74 = vmul.f32 %v61, %v66
  %v75 = vmul.f32 %v60, %v67
  %v76 = vmul.f32 %v59, %v68
  %v77 = vmul.f32 %v58, %v69
  %v78 = vmul.f32 %v57, %v70
  %v79 = vmul.f32 %v56, %v71
  %80 = vst [vmem:[#allocation2] sm:$0xff] %v72
  %81 = vst [vmem:[#allocation2 + $0x8] sm:$0xff] %v73
  %82 = vst [vmem:[#allocation2 + $0x10] sm:$0xff] %v74
  %83 = vst [vmem:[#allocation2 + $0x18] sm:$0xff] %v75
  %84 = vst [vmem:[#allocation2 + $0x20] sm:$0xff] %v76
  %85 = vst [vmem:[#allocation2 + $0x28] sm:$0xff] %v77
  %86 = vst [vmem:[#allocation2 + $0x30] sm:$0xff] %v78
  %87 = vst [vmem:[#allocation2 + $0x38] sm:$0xff] %v79
  %88 = vrot.lane.b32.xlu0 %v29, 72
  %v89 = vpop.permute.xlu0 %88
  %90 = vrot.lane.b32.xlu0 %v30, 72
  %v91 = vpop.permute.xlu0 %90
  %92 = vrot.lane.b32.xlu0 %v31, 72
  %v93 = vpop.permute.xlu0 %92
  %94 = vrot.lane.b32.xlu0 %v32, 72
  %v95 = vpop.permute.xlu0 %94
  %96 = vrot.lane.b32.xlu0 %v33, 72
  %v97 = vpop.permute.xlu0 %96
  %98 = vrot.lane.b32.xlu0 %v34, 72
  %v99 = vpop.permute.xlu0 %98
  %100 = vrot.lane.b32.xlu0 %v35, 72
  %v101 = vpop.permute.xlu0 %100
  %102 = vrot.lane.b32.xlu0 %v36, 72
  %v103 = vpop.permute.xlu0 %102
  %vm104 = vcmp.lt.s32.totalorder %v54, 72
  %v105 = vsel %vm104, %v101, %v103
  %v106 = vsel %vm104, %v99, %v101
  %v107 = vsel %vm104, %v97, %v99
  %v108 = vsel %vm104, %v95, %v97
  %v109 = vsel %vm104, %v93, %v95
  %v110 = vsel %vm104, %v91, %v93
  %v111 = vsel %vm104, %v89, %v91
  %v112 = vsel %vm104, %v103, %v89
  %v113 = vld [vmem:[%s1 + $0x40] sm:$0xff]
  %v114 = vld [vmem:[%s1 + $0x48] sm:$0xff]
  %v115 = vld [vmem:[%s1 + $0x50] sm:$0xff]
  %v116 = vld [vmem:[%s1 + $0x58] sm:$0xff]
  %v117 = vld [vmem:[%s1 + $0x60] sm:$0xff]
  %v118 = vld [vmem:[%s1 + $0x68] sm:$0xff]
  %v119 = vld [vmem:[%s1 + $0x70] sm:$0xff]
  %v120 = vld [vmem:[%s1 + $0x78] sm:$0xff]
  %v121 = vmul.f32 %v112, %v113
  %v122 = vmul.f32 %v111, %v114
  %v123 = vmul.f32 %v110, %v115
  %v124 = vmul.f32 %v109, %v116
  %v125 = vmul.f32 %v108, %v117
  %v126 = vmul.f32 %v107, %v118
  %v127 = vmul.f32 %v106, %v119
  %v128 = vmul.f32 %v105, %v120
  %129 = vst [vmem:[#allocation2 + $0x40] sm:$0xff] %v121
  %130 = vst [vmem:[#allocation2 + $0x48] sm:$0xff] %v122
  %131 = vst [vmem:[#allocation2 + $0x50] sm:$0xff] %v123
  %132 = vst [vmem:[#allocation2 + $0x58] sm:$0xff] %v124
  %133 = vst [vmem:[#allocation2 + $0x60] sm:$0xff] %v125
  %134 = vst [vmem:[#allocation2 + $0x68] sm:$0xff] %v126
  %135 = vst [vmem:[#allocation2 + $0x70] sm:$0xff] %v127
  %136 = vst [vmem:[#allocation2 + $0x78] sm:$0xff] %v128
  %137 = vrot.lane.b32.xlu0 %v29, 71
  %v138 = vpop.permute.xlu0 %137
  %139 = vrot.lane.b32.xlu0 %v30, 71
  %v140 = vpop.permute.xlu0 %139
  %141 = vrot.lane.b32.xlu0 %v31, 71
  %v142 = vpop.permute.xlu0 %141
  %143 = vrot.lane.b32.xlu0 %v32, 71
  %v144 = vpop.permute.xlu0 %143
  %145 = vrot.lane.b32.xlu0 %v33, 71
  %v146 = vpop.permute.xlu0 %145
  %147 = vrot.lane.b32.xlu0 %v34, 71
  %v148 = vpop.permute.xlu0 %147
  %149 = vrot.lane.b32.xlu0 %v35, 71
  %v150 = vpop.permute.xlu0 %149
  %151 = vrot.lane.b32.xlu0 %v36, 71
  %v152 = vpop.permute.xlu0 %151
  %vm153 = vcmp.lt.s32.totalorder %v54, 71
  %v154 = vsel %vm153, %v150, %v152
  %v155 = vsel %vm153, %v148, %v150
  %v156 = vsel %vm153, %v146, %v148
  %v157 = vsel %vm153, %v144, %v146
  %v158 = vsel %vm153, %v142, %v144
  %v159 = vsel %vm153, %v140, %v142
  %v160 = vsel %vm153, %v138, %v140
  %v161 = vsel %vm153, %v152, %v138
  %v162 = vld [vmem:[%s1 + $0x80] sm:$0xff]
  %v163 = vld [vmem:[%s1 + $0x88] sm:$0xff]
  %v164 = vld [vmem:[%s1 + $0x90] sm:$0xff]
  %v165 = vld [vmem:[%s1 + $0x98] sm:$0xff]
  %v166 = vld [vmem:[%s1 + $0xa0] sm:$0xff]
  %v167 = vld [vmem:[%s1 + $0xa8] sm:$0xff]
  %v168 = vld [vmem:[%s1 + $0xb0] sm:$0xff]
  %v169 = vld [vmem:[%s1 + $0xb8] sm:$0xff]
  %v170 = vmul.f32 %v161, %v162
  %v171 = vmul.f32 %v160, %v163
  %v172 = vmul.f32 %v159, %v164
  %v173 = vmul.f32 %v158, %v165
  %v174 = vmul.f32 %v157, %v166
  %v175 = vmul.f32 %v156, %v167
  %v176 = vmul.f32 %v155, %v168
  %v177 = vmul.f32 %v154, %v169
  %178 = vst [vmem:[#allocation2 + $0x80] sm:$0xff] %v170
  %179 = vst [vmem:[#allocation2 + $0x88] sm:$0xff] %v171
  %180 = vst [vmem:[#allocation2 + $0x90] sm:$0xff] %v172
  %181 = vst [vmem:[#allocation2 + $0x98] sm:$0xff] %v173
  %182 = vst [vmem:[#allocation2 + $0xa0] sm:$0xff] %v174
  %183 = vst [vmem:[#allocation2 + $0xa8] sm:$0xff] %v175
  %184 = vst [vmem:[#allocation2 + $0xb0] sm:$0xff] %v176
  %185 = vst [vmem:[#allocation2 + $0xb8] sm:$0xff] %v177
  %186 = vrot.lane.b32.xlu0 %v29, 65
  %v187 = vpop.permute.xlu0 %186
  %188 = vrot.lane.b32.xlu0 %v30, 65
  %v189 = vpop.permute.xlu0 %188
  %190 = vrot.lane.b32.xlu0 %v31, 65
  %v191 = vpop.permute.xlu0 %190
  %192 = vrot.lane.b32.xlu0 %v32, 65
  %v193 = vpop.permute.xlu0 %192
  %194 = vrot.lane.b32.xlu0 %v33, 65
  %v195 = vpop.permute.xlu0 %194
  %196 = vrot.lane.b32.xlu0 %v34, 65
  %v197 = vpop.permute.xlu0 %196
  %198 = vrot.lane.b32.xlu0 %v35, 65
  %v199 = vpop.permute.xlu0 %198
  %200 = vrot.lane.b32.xlu0 %v36, 65
  %v201 = vpop.permute.xlu0 %200
  %vm202 = vcmp.lt.s32.totalorder %v54, 65
  %v203 = vsel %vm202, %v199, %v201
  %v204 = vsel %vm202, %v197, %v199
  %v205 = vsel %vm202, %v195, %v197
  %v206 = vsel %vm202, %v193, %v195
  %v207 = vsel %vm202, %v191, %v193
  %v208 = vsel %vm202, %v189, %v191
  %v209 = vsel %vm202, %v187, %v189
  %v210 = vsel %vm202, %v201, %v187
  %v211 = vld [vmem:[%s1 + $0xc0] sm:$0xff]
  %v212 = vld [vmem:[%s1 + $0xc8] sm:$0xff]
  %v213 = vld [vmem:[%s1 + $0xd0] sm:$0xff]
  %v214 = vld [vmem:[%s1 + $0xd8] sm:$0xff]
  %v215 = vld [vmem:[%s1 + $0xe0] sm:$0xff]
  %v216 = vld [vmem:[%s1 + $0xe8] sm:$0xff]
  %v217 = vld [vmem:[%s1 + $0xf0] sm:$0xff]
  %v218 = vld [vmem:[%s1 + $0xf8] sm:$0xff]
  %v219 = vmul.f32 %v210, %v211
  %v220 = vmul.f32 %v209, %v212
  %v221 = vmul.f32 %v208, %v213
  %v222 = vmul.f32 %v207, %v214
  %v223 = vmul.f32 %v206, %v215
  %v224 = vmul.f32 %v205, %v216
  %v225 = vmul.f32 %v204, %v217
  %v226 = vmul.f32 %v203, %v218
  %227 = vst [vmem:[#allocation2 + $0xc0] sm:$0xff] %v219
  %228 = vst [vmem:[#allocation2 + $0xc8] sm:$0xff] %v220
  %229 = vst [vmem:[#allocation2 + $0xd0] sm:$0xff] %v221
  %230 = vst [vmem:[#allocation2 + $0xd8] sm:$0xff] %v222
  %231 = vst [vmem:[#allocation2 + $0xe0] sm:$0xff] %v223
  %232 = vst [vmem:[#allocation2 + $0xe8] sm:$0xff] %v224
  %233 = vst [vmem:[#allocation2 + $0xf0] sm:$0xff] %v225
  %234 = vst [vmem:[#allocation2 + $0xf8] sm:$0xff] %v226
  %235 = vrot.lane.b32.xlu0 %v29, 64
  %v236 = vpop.permute.xlu0 %235
  %237 = vrot.lane.b32.xlu0 %v30, 64
  %v238 = vpop.permute.xlu0 %237
  %239 = vrot.lane.b32.xlu0 %v31, 64
  %v240 = vpop.permute.xlu0 %239
  %241 = vrot.lane.b32.xlu0 %v32, 64
  %v242 = vpop.permute.xlu0 %241
  %243 = vrot.lane.b32.xlu0 %v33, 64
  %v244 = vpop.permute.xlu0 %243
  %245 = vrot.lane.b32.xlu0 %v34, 64
  %v246 = vpop.permute.xlu0 %245
  %247 = vrot.lane.b32.xlu0 %v35, 64
  %v248 = vpop.permute.xlu0 %247
  %249 = vrot.lane.b32.xlu0 %v36, 64
  %v250 = vpop.permute.xlu0 %249
  %vm251 = vcmp.lt.s32.totalorder %v54, 64
  %v252 = vsel %vm251, %v248, %v250
  %v253 = vsel %vm251, %v246, %v248
  %v254 = vsel %vm251, %v244, %v246
  %v255 = vsel %vm251, %v242, %v244
  %v256 = vsel %vm251, %v240, %v242
  %v257 = vsel %vm251, %v238, %v240
  %v258 = vsel %vm251, %v236, %v238
  %v259 = vsel %vm251, %v250, %v236
  %v260 = vld [vmem:[%s1 + $0x100] sm:$0xff]
  %v261 = vld [vmem:[%s1 + $0x108] sm:$0xff]
  %v262 = vld [vmem:[%s1 + $0x110] sm:$0xff]
  %v263 = vld [vmem:[%s1 + $0x118] sm:$0xff]
  %v264 = vld [vmem:[%s1 + $0x120] sm:$0xff]
  %v265 = vld [vmem:[%s1 + $0x128] sm:$0xff]
  %v266 = vld [vmem:[%s1 + $0x130] sm:$0xff]
  %v267 = vld [vmem:[%s1 + $0x138] sm:$0xff]
  %v268 = vmul.f32 %v259, %v260
  %v269 = vmul.f32 %v258, %v261
  %v270 = vmul.f32 %v257, %v262
  %v271 = vmul.f32 %v256, %v263
  %v272 = vmul.f32 %v255, %v264
  %v273 = vmul.f32 %v254, %v265
  %v274 = vmul.f32 %v253, %v266
  %v275 = vmul.f32 %v252, %v267
  %276 = vst [vmem:[#allocation2 + $0x100] sm:$0xff] %v268
  %277 = vst [vmem:[#allocation2 + $0x108] sm:$0xff] %v269
  %278 = vst [vmem:[#allocation2 + $0x110] sm:$0xff] %v270
  %279 = vst [vmem:[#allocation2 + $0x118] sm:$0xff] %v271
  %280 = vst [vmem:[#allocation2 + $0x120] sm:$0xff] %v272
  %281 = vst [vmem:[#allocation2 + $0x128] sm:$0xff] %v273
  %282 = vst [vmem:[#allocation2 + $0x130] sm:$0xff] %v274
  %283 = vst [vmem:[#allocation2 + $0x138] sm:$0xff] %v275
  %284 = vrot.lane.b32.xlu0 %v29, 63
  %v285 = vpop.permute.xlu0 %284
  %286 = vrot.lane.b32.xlu0 %v30, 63
  %v287 = vpop.permute.xlu0 %286
  %288 = vrot.lane.b32.xlu0 %v31, 63
  %v289 = vpop.permute.xlu0 %288
  %290 = vrot.lane.b32.xlu0 %v32, 63
  %v291 = vpop.permute.xlu0 %290
  %292 = vrot.lane.b32.xlu0 %v33, 63
  %v293 = vpop.permute.xlu0 %292
  %294 = vrot.lane.b32.xlu0 %v34, 63
  %v295 = vpop.permute.xlu0 %294
  %296 = vrot.lane.b32.xlu0 %v35, 63
  %v297 = vpop.permute.xlu0 %296
  %298 = vrot.lane.b32.xlu0 %v36, 63
  %v299 = vpop.permute.xlu0 %298
  %vm300 = vcmp.lt.s32.totalorder %v54, 63
  %v301 = vsel %vm300, %v297, %v299
  %v302 = vsel %vm300, %v295, %v297
  %v303 = vsel %vm300, %v293, %v295
  %v304 = vsel %vm300, %v291, %v293
  %v305 = vsel %vm300, %v289, %v291
  %v306 = vsel %vm300, %v287, %v289
  %v307 = vsel %vm300, %v285, %v287
  %v308 = vsel %vm300, %v299, %v285
  %v309 = vld [vmem:[%s1 + $0x140] sm:$0xff]
  %v310 = vld [vmem:[%s1 + $0x148] sm:$0xff]
  %v311 = vld [vmem:[%s1 + $0x150] sm:$0xff]
  %v312 = vld [vmem:[%s1 + $0x158] sm:$0xff]
  %v313 = vld [vmem:[%s1 + $0x160] sm:$0xff]
  %v314 = vld [vmem:[%s1 + $0x168] sm:$0xff]
  %v315 = vld [vmem:[%s1 + $0x170] sm:$0xff]
  %v316 = vld [vmem:[%s1 + $0x178] sm:$0xff]
  %v317 = vmul.f32 %v308, %v309
  %v318 = vmul.f32 %v307, %v310
  %v319 = vmul.f32 %v306, %v311
  %v320 = vmul.f32 %v305, %v312
  %v321 = vmul.f32 %v304, %v313
  %v322 = vmul.f32 %v303, %v314
  %v323 = vmul.f32 %v302, %v315
  %v324 = vmul.f32 %v301, %v316
  %325 = vst [vmem:[#allocation2 + $0x140] sm:$0xff] %v317
  %326 = vst [vmem:[#allocation2 + $0x148] sm:$0xff] %v318
  %327 = vst [vmem:[#allocation2 + $0x150] sm:$0xff] %v319
  %328 = vst [vmem:[#allocation2 + $0x158] sm:$0xff] %v320
  %329 = vst [vmem:[#allocation2 + $0x160] sm:$0xff] %v321
  %330 = vst [vmem:[#allocation2 + $0x168] sm:$0xff] %v322
  %331 = vst [vmem:[#allocation2 + $0x170] sm:$0xff] %v323
  %332 = vst [vmem:[#allocation2 + $0x178] sm:$0xff] %v324
  %333 = vrot.lane.b32.xlu0 %v29, 57
  %v334 = vpop.permute.xlu0 %333
  %335 = vrot.lane.b32.xlu0 %v30, 57
  %v336 = vpop.permute.xlu0 %335
  %337 = vrot.lane.b32.xlu0 %v31, 57
  %v338 = vpop.permute.xlu0 %337
  %339 = vrot.lane.b32.xlu0 %v32, 57
  %v340 = vpop.permute.xlu0 %339
  %341 = vrot.lane.b32.xlu0 %v33, 57
  %v342 = vpop.permute.xlu0 %341
  %343 = vrot.lane.b32.xlu0 %v34, 57
  %v344 = vpop.permute.xlu0 %343
  %345 = vrot.lane.b32.xlu0 %v35, 57
  %v346 = vpop.permute.xlu0 %345
  %347 = vrot.lane.b32.xlu0 %v36, 57
  %v348 = vpop.permute.xlu0 %347
  %vm349 = vcmp.lt.s32.totalorder %v54, 57
  %v350 = vsel %vm349, %v346, %v348
  %v351 = vsel %vm349, %v344, %v346
  %v352 = vsel %vm349, %v342, %v344
  %v353 = vsel %vm349, %v340, %v342
  %v354 = vsel %vm349, %v338, %v340
  %v355 = vsel %vm349, %v336, %v338
  %v356 = vsel %vm349, %v334, %v336
  %v357 = vsel %vm349, %v348, %v334
  %v358 = vld [vmem:[%s1 + $0x180] sm:$0xff]
  %v359 = vld [vmem:[%s1 + $0x188] sm:$0xff]
  %v360 = vld [vmem:[%s1 + $0x190] sm:$0xff]
  %v361 = vld [vmem:[%s1 + $0x198] sm:$0xff]
  %v362 = vld [vmem:[%s1 + $0x1a0] sm:$0xff]
  %v363 = vld [vmem:[%s1 + $0x1a8] sm:$0xff]
  %v364 = vld [vmem:[%s1 + $0x1b0] sm:$0xff]
  %v365 = vld [vmem:[%s1 + $0x1b8] sm:$0xff]
  %v366 = vmul.f32 %v357, %v358
  %v367 = vmul.f32 %v356, %v359
  %v368 = vmul.f32 %v355, %v360
  %v369 = vmul.f32 %v354, %v361
  %v370 = vmul.f32 %v353, %v362
  %v371 = vmul.f32 %v352, %v363
  %v372 = vmul.f32 %v351, %v364
  %v373 = vmul.f32 %v350, %v365
  %374 = vst [vmem:[#allocation2 + $0x180] sm:$0xff] %v366
  %375 = vst [vmem:[#allocation2 + $0x188] sm:$0xff] %v367
  %376 = vst [vmem:[#allocation2 + $0x190] sm:$0xff] %v368
  %377 = vst [vmem:[#allocation2 + $0x198] sm:$0xff] %v369
  %378 = vst [vmem:[#allocation2 + $0x1a0] sm:$0xff] %v370
  %379 = vst [vmem:[#allocation2 + $0x1a8] sm:$0xff] %v371
  %380 = vst [vmem:[#allocation2 + $0x1b0] sm:$0xff] %v372
  %381 = vst [vmem:[#allocation2 + $0x1b8] sm:$0xff] %v373
  %382 = vrot.lane.b32.xlu0 %v29, 56
  %v383 = vpop.permute.xlu0 %382
  %384 = vrot.lane.b32.xlu0 %v30, 56
  %v385 = vpop.permute.xlu0 %384
  %386 = vrot.lane.b32.xlu0 %v31, 56
  %v387 = vpop.permute.xlu0 %386
  %388 = vrot.lane.b32.xlu0 %v32, 56
  %v389 = vpop.permute.xlu0 %388
  %390 = vrot.lane.b32.xlu0 %v33, 56
  %v391 = vpop.permute.xlu0 %390
  %392 = vrot.lane.b32.xlu0 %v34, 56
  %v393 = vpop.permute.xlu0 %392
  %394 = vrot.lane.b32.xlu0 %v35, 56
  %v395 = vpop.permute.xlu0 %394
  %396 = vrot.lane.b32.xlu0 %v36, 56
  %v397 = vpop.permute.xlu0 %396
  %vm398 = vcmp.lt.s32.totalorder %v54, 56
  %v399 = vsel %vm398, %v395, %v397
  %v400 = vsel %vm398, %v393, %v395
  %v401 = vsel %vm398, %v391, %v393
  %v402 = vsel %vm398, %v389, %v391
  %v403 = vsel %vm398, %v387, %v389
  %v404 = vsel %vm398, %v385, %v387
  %v405 = vsel %vm398, %v383, %v385
  %v406 = vsel %vm398, %v397, %v383
  %v407 = vld [vmem:[%s1 + $0x1c0] sm:$0xff]
  %v408 = vld [vmem:[%s1 + $0x1c8] sm:$0xff]
  %v409 = vld [vmem:[%s1 + $0x1d0] sm:$0xff]
  %v410 = vld [vmem:[%s1 + $0x1d8] sm:$0xff]
  %v411 = vld [vmem:[%s1 + $0x1e0] sm:$0xff]
  %v412 = vld [vmem:[%s1 + $0x1e8] sm:$0xff]
  %v413 = vld [vmem:[%s1 + $0x1f0] sm:$0xff]
  %v414 = vld [vmem:[%s1 + $0x1f8] sm:$0xff]
  %v415 = vmul.f32 %v406, %v407
  %v416 = vmul.f32 %v405, %v408
  %v417 = vmul.f32 %v404, %v409
  %v418 = vmul.f32 %v403, %v410
  %v419 = vmul.f32 %v402, %v411
  %v420 = vmul.f32 %v401, %v412
  %v421 = vmul.f32 %v400, %v413
  %v422 = vmul.f32 %v399, %v414
  %423 = vst [vmem:[#allocation2 + $0x1c0] sm:$0xff] %v415
  %424 = vst [vmem:[#allocation2 + $0x1c8] sm:$0xff] %v416
  %425 = vst [vmem:[#allocation2 + $0x1d0] sm:$0xff] %v417
  %426 = vst [vmem:[#allocation2 + $0x1d8] sm:$0xff] %v418
  %427 = vst [vmem:[#allocation2 + $0x1e0] sm:$0xff] %v419
  %428 = vst [vmem:[#allocation2 + $0x1e8] sm:$0xff] %v420
  %429 = vst [vmem:[#allocation2 + $0x1f0] sm:$0xff] %v421
  %430 = vst [vmem:[#allocation2 + $0x1f8] sm:$0xff] %v422
  %431 = vrot.lane.b32.xlu0 %v29, 55
  %v432 = vpop.permute.xlu0 %431
  %433 = vrot.lane.b32.xlu0 %v30, 55
  %v434 = vpop.permute.xlu0 %433
  %435 = vrot.lane.b32.xlu0 %v31, 55
  %v436 = vpop.permute.xlu0 %435
  %437 = vrot.lane.b32.xlu0 %v32, 55
  %v438 = vpop.permute.xlu0 %437
  %439 = vrot.lane.b32.xlu0 %v33, 55
  %v440 = vpop.permute.xlu0 %439
  %441 = vrot.lane.b32.xlu0 %v34, 55
  %v442 = vpop.permute.xlu0 %441
  %443 = vrot.lane.b32.xlu0 %v35, 55
  %v444 = vpop.permute.xlu0 %443
  %445 = vrot.lane.b32.xlu0 %v36, 55
  %v446 = vpop.permute.xlu0 %445
  %vm447 = vcmp.lt.s32.totalorder %v54, 55
  %v448 = vsel %vm447, %v444, %v446
  %v449 = vsel %vm447, %v442, %v444
  %v450 = vsel %vm447, %v440, %v442
  %v451 = vsel %vm447, %v438, %v440
  %v452 = vsel %vm447, %v436, %v438
  %v453 = vsel %vm447, %v434, %v436
  %v454 = vsel %vm447, %v432, %v434
  %v455 = vsel %vm447, %v446, %v432
  %v456 = vld [vmem:[%s1 + $0x200] sm:$0xff]
  %v457 = vld [vmem:[%s1 + $0x208] sm:$0xff]
  %v458 = vld [vmem:[%s1 + $0x210] sm:$0xff]
  %v459 = vld [vmem:[%s1 + $0x218] sm:$0xff]
  %v460 = vld [vmem:[%s1 + $0x220] sm:$0xff]
  %v461 = vld [vmem:[%s1 + $0x228] sm:$0xff]
  %v462 = vld [vmem:[%s1 + $0x230] sm:$0xff]
  %v463 = vld [vmem:[%s1 + $0x238] sm:$0xff]
  %v464 = vmul.f32 %v455, %v456
  %v465 = vmul.f32 %v454, %v457
  %v466 = vmul.f32 %v453, %v458
  %v467 = vmul.f32 %v452, %v459
  %v468 = vmul.f32 %v451, %v460
  %v469 = vmul.f32 %v450, %v461
  %v470 = vmul.f32 %v449, %v462
  %v471 = vmul.f32 %v448, %v463
  %472 = vst [vmem:[#allocation2 + $0x200] sm:$0xff] %v464
  %473 = vst [vmem:[#allocation2 + $0x208] sm:$0xff] %v465
  %474 = vst [vmem:[#allocation2 + $0x210] sm:$0xff] %v466
  %475 = vst [vmem:[#allocation2 + $0x218] sm:$0xff] %v467
  %476 = vst [vmem:[#allocation2 + $0x220] sm:$0xff] %v468
  %477 = vst [vmem:[#allocation2 + $0x228] sm:$0xff] %v469
  %478 = vst [vmem:[#allocation2 + $0x230] sm:$0xff] %v470
  %479 = vst [vmem:[#allocation2 + $0x238] sm:$0xff] %v471
  %480 = vrot.lane.b32.xlu0 %v29, 9
  %v481 = vpop.permute.xlu0 %480
  %482 = vrot.lane.b32.xlu0 %v30, 9
  %v483 = vpop.permute.xlu0 %482
  %484 = vrot.lane.b32.xlu0 %v31, 9
  %v485 = vpop.permute.xlu0 %484
  %486 = vrot.lane.b32.xlu0 %v32, 9
  %v487 = vpop.permute.xlu0 %486
  %488 = vrot.lane.b32.xlu0 %v33, 9
  %v489 = vpop.permute.xlu0 %488
  %490 = vrot.lane.b32.xlu0 %v34, 9
  %v491 = vpop.permute.xlu0 %490
  %492 = vrot.lane.b32.xlu0 %v35, 9
  %v493 = vpop.permute.xlu0 %492
  %494 = vrot.lane.b32.xlu0 %v36, 9
  %v495 = vpop.permute.xlu0 %494
  %vm496 = vcmp.lt.s32.totalorder %v54, 9
  %v497 = vsel %vm496, %v493, %v495
  %v498 = vsel %vm496, %v491, %v493
  %v499 = vsel %vm496, %v489, %v491
  %v500 = vsel %vm496, %v487, %v489
  %v501 = vsel %vm496, %v485, %v487
  %v502 = vsel %vm496, %v483, %v485
  %v503 = vsel %vm496, %v481, %v483
  %v504 = vsel %vm496, %v495, %v481
  %v505 = vld [vmem:[%s1 + $0x240] sm:$0xff]
  %v506 = vld [vmem:[%s1 + $0x248] sm:$0xff]
  %v507 = vld [vmem:[%s1 + $0x250] sm:$0xff]
  %v508 = vld [vmem:[%s1 + $0x258] sm:$0xff]
  %v509 = vld [vmem:[%s1 + $0x260] sm:$0xff]
  %v510 = vld [vmem:[%s1 + $0x268] sm:$0xff]
  %v511 = vld [vmem:[%s1 + $0x270] sm:$0xff]
  %v512 = vld [vmem:[%s1 + $0x278] sm:$0xff]
  %v513 = vmul.f32 %v504, %v505
  %v514 = vmul.f32 %v503, %v506
  %v515 = vmul.f32 %v502, %v507
  %v516 = vmul.f32 %v501, %v508
  %v517 = vmul.f32 %v500, %v509
  %v518 = vmul.f32 %v499, %v510
  %v519 = vmul.f32 %v498, %v511
  %v520 = vmul.f32 %v497, %v512
  %521 = vst [vmem:[#allocation2 + $0x240] sm:$0xff] %v513
  %522 = vst [vmem:[#allocation2 + $0x248] sm:$0xff] %v514
  %523 = vst [vmem:[#allocation2 + $0x250] sm:$0xff] %v515
  %524 = vst [vmem:[#allocation2 + $0x258] sm:$0xff] %v516
  %525 = vst [vmem:[#allocation2 + $0x260] sm:$0xff] %v517
  %526 = vst [vmem:[#allocation2 + $0x268] sm:$0xff] %v518
  %527 = vst [vmem:[#allocation2 + $0x270] sm:$0xff] %v519
  %528 = vst [vmem:[#allocation2 + $0x278] sm:$0xff] %v520
  %529 = vrot.lane.b32.xlu0 %v29, 8
  %v530 = vpop.permute.xlu0 %529
  %531 = vrot.lane.b32.xlu0 %v30, 8
  %v532 = vpop.permute.xlu0 %531
  %533 = vrot.lane.b32.xlu0 %v31, 8
  %v534 = vpop.permute.xlu0 %533
  %535 = vrot.lane.b32.xlu0 %v32, 8
  %v536 = vpop.permute.xlu0 %535
  %537 = vrot.lane.b32.xlu0 %v33, 8
  %v538 = vpop.permute.xlu0 %537
  %539 = vrot.lane.b32.xlu0 %v34, 8
  %v540 = vpop.permute.xlu0 %539
  %541 = vrot.lane.b32.xlu0 %v35, 8
  %v542 = vpop.permute.xlu0 %541
  %543 = vrot.lane.b32.xlu0 %v36, 8
  %v544 = vpop.permute.xlu0 %543
  %vm545 = vcmp.lt.s32.totalorder %v54, 8
  %v546 = vsel %vm545, %v542, %v544
  %v547 = vsel %vm545, %v540, %v542
  %v548 = vsel %vm545, %v538, %v540
  %v549 = vsel %vm545, %v536, %v538
  %v550 = vsel %vm545, %v534, %v536
  %v551 = vsel %vm545, %v532, %v534
  %v552 = vsel %vm545, %v530, %v532
  %v553 = vsel %vm545, %v544, %v530
  %v554 = vld [vmem:[%s1 + $0x280] sm:$0xff]
  %v555 = vld [vmem:[%s1 + $0x288] sm:$0xff]
  %v556 = vld [vmem:[%s1 + $0x290] sm:$0xff]
  %v557 = vld [vmem:[%s1 + $0x298] sm:$0xff]
  %v558 = vld [vmem:[%s1 + $0x2a0] sm:$0xff]
  %v559 = vld [vmem:[%s1 + $0x2a8] sm:$0xff]
  %v560 = vld [vmem:[%s1 + $0x2b0] sm:$0xff]
  %v561 = vld [vmem:[%s1 + $0x2b8] sm:$0xff]
  %v562 = vmul.f32 %v553, %v554
  %v563 = vmul.f32 %v552, %v555
  %v564 = vmul.f32 %v551, %v556
  %v565 = vmul.f32 %v550, %v557
  %v566 = vmul.f32 %v549, %v558
  %v567 = vmul.f32 %v548, %v559
  %v568 = vmul.f32 %v547, %v560
  %v569 = vmul.f32 %v546, %v561
  %570 = vst [vmem:[#allocation2 + $0x280] sm:$0xff] %v562
  %571 = vst [vmem:[#allocation2 + $0x288] sm:$0xff] %v563
  %572 = vst [vmem:[#allocation2 + $0x290] sm:$0xff] %v564
  %573 = vst [vmem:[#allocation2 + $0x298] sm:$0xff] %v565
  %574 = vst [vmem:[#allocation2 + $0x2a0] sm:$0xff] %v566
  %575 = vst [vmem:[#allocation2 + $0x2a8] sm:$0xff] %v567
  %576 = vst [vmem:[#allocation2 + $0x2b0] sm:$0xff] %v568
  %577 = vst [vmem:[#allocation2 + $0x2b8] sm:$0xff] %v569
  %578 = vrot.lane.b32.xlu0 %v29, 7
  %v579 = vpop.permute.xlu0 %578
  %580 = vrot.lane.b32.xlu0 %v30, 7
  %v581 = vpop.permute.xlu0 %580
  %582 = vrot.lane.b32.xlu0 %v31, 7
  %v583 = vpop.permute.xlu0 %582
  %584 = vrot.lane.b32.xlu0 %v32, 7
  %v585 = vpop.permute.xlu0 %584
  %586 = vrot.lane.b32.xlu0 %v33, 7
  %v587 = vpop.permute.xlu0 %586
  %588 = vrot.lane.b32.xlu0 %v34, 7
  %v589 = vpop.permute.xlu0 %588
  %590 = vrot.lane.b32.xlu0 %v35, 7
  %v591 = vpop.permute.xlu0 %590
  %592 = vrot.lane.b32.xlu0 %v36, 7
  %v593 = vpop.permute.xlu0 %592
  %vm594 = vcmp.lt.s32.totalorder %v54, 7
  %v595 = vsel %vm594, %v591, %v593
  %v596 = vsel %vm594, %v589, %v591
  %v597 = vsel %vm594, %v587, %v589
  %v598 = vsel %vm594, %v585, %v587
  %v599 = vsel %vm594, %v583, %v585
  %v600 = vsel %vm594, %v581, %v583
  %v601 = vsel %vm594, %v579, %v581
  %v602 = vsel %vm594, %v593, %v579
  %v603 = vld [vmem:[%s1 + $0x2c0] sm:$0xff]
  %v604 = vld [vmem:[%s1 + $0x2c8] sm:$0xff]
  %v605 = vld [vmem:[%s1 + $0x2d0] sm:$0xff]
  %v606 = vld [vmem:[%s1 + $0x2d8] sm:$0xff]
  %v607 = vld [vmem:[%s1 + $0x2e0] sm:$0xff]
  %v608 = vld [vmem:[%s1 + $0x2e8] sm:$0xff]
  %v609 = vld [vmem:[%s1 + $0x2f0] sm:$0xff]
  %v610 = vld [vmem:[%s1 + $0x2f8] sm:$0xff]
  %v611 = vmul.f32 %v602, %v603
  %v612 = vmul.f32 %v601, %v604
  %v613 = vmul.f32 %v600, %v605
  %v614 = vmul.f32 %v599, %v606
  %v615 = vmul.f32 %v598, %v607
  %v616 = vmul.f32 %v597, %v608
  %v617 = vmul.f32 %v596, %v609
  %v618 = vmul.f32 %v595, %v610
  %619 = vst [vmem:[#allocation2 + $0x2c0] sm:$0xff] %v611
  %620 = vst [vmem:[#allocation2 + $0x2c8] sm:$0xff] %v612
  %621 = vst [vmem:[#allocation2 + $0x2d0] sm:$0xff] %v613
  %622 = vst [vmem:[#allocation2 + $0x2d8] sm:$0xff] %v614
  %623 = vst [vmem:[#allocation2 + $0x2e0] sm:$0xff] %v615
  %624 = vst [vmem:[#allocation2 + $0x2e8] sm:$0xff] %v616
  %625 = vst [vmem:[#allocation2 + $0x2f0] sm:$0xff] %v617
  %626 = vst [vmem:[#allocation2 + $0x2f8] sm:$0xff] %v618
  %627 = vrot.lane.b32.xlu0 %v29, 1
  %v628 = vpop.permute.xlu0 %627
  %629 = vrot.lane.b32.xlu0 %v30, 1
  %v630 = vpop.permute.xlu0 %629
  %631 = vrot.lane.b32.xlu0 %v31, 1
  %v632 = vpop.permute.xlu0 %631
  %633 = vrot.lane.b32.xlu0 %v32, 1
  %v634 = vpop.permute.xlu0 %633
  %635 = vrot.lane.b32.xlu0 %v33, 1
  %v636 = vpop.permute.xlu0 %635
  %637 = vrot.lane.b32.xlu0 %v34, 1
  %v638 = vpop.permute.xlu0 %637
  %639 = vrot.lane.b32.xlu0 %v35, 1
  %v640 = vpop.permute.xlu0 %639
  %641 = vrot.lane.b32.xlu0 %v36, 1
  %v642 = vpop.permute.xlu0 %641
  %vm643 = vcmp.lt.s32.totalorder %v54, 1
  %v644 = vsel %vm643, %v640, %v642
  %v645 = vsel %vm643, %v638, %v640
  %v646 = vsel %vm643, %v636, %v638
  %v647 = vsel %vm643, %v634, %v636
  %v648 = vsel %vm643, %v632, %v634
  %v649 = vsel %vm643, %v630, %v632
  %v650 = vsel %vm643, %v628, %v630
  %v651 = vsel %vm643, %v642, %v628
  %v652 = vld [vmem:[%s1 + $0x300] sm:$0xff]
  %v653 = vld [vmem:[%s1 + $0x308] sm:$0xff]
  %v654 = vld [vmem:[%s1 + $0x310] sm:$0xff]
  %v655 = vld [vmem:[%s1 + $0x318] sm:$0xff]
  %v656 = vld [vmem:[%s1 + $0x320] sm:$0xff]
  %v657 = vld [vmem:[%s1 + $0x328] sm:$0xff]
  %v658 = vld [vmem:[%s1 + $0x330] sm:$0xff]
  %v659 = vld [vmem:[%s1 + $0x338] sm:$0xff]
  %v660 = vmul.f32 %v651, %v652
  %v661 = vmul.f32 %v650, %v653
  %v662 = vmul.f32 %v649, %v654
  %v663 = vmul.f32 %v648, %v655
  %v664 = vmul.f32 %v647, %v656
  %v665 = vmul.f32 %v646, %v657
  %v666 = vmul.f32 %v645, %v658
  %v667 = vmul.f32 %v644, %v659
  %668 = vst [vmem:[#allocation2 + $0x300] sm:$0xff] %v660
  %669 = vst [vmem:[#allocation2 + $0x308] sm:$0xff] %v661
  %670 = vst [vmem:[#allocation2 + $0x310] sm:$0xff] %v662
  %671 = vst [vmem:[#allocation2 + $0x318] sm:$0xff] %v663
  %672 = vst [vmem:[#allocation2 + $0x320] sm:$0xff] %v664
  %673 = vst [vmem:[#allocation2 + $0x328] sm:$0xff] %v665
  %674 = vst [vmem:[#allocation2 + $0x330] sm:$0xff] %v666
  %675 = vst [vmem:[#allocation2 + $0x338] sm:$0xff] %v667
  %v676 = vld [vmem:[%s1 + $0x340] sm:$0xff]
  %v677 = vld [vmem:[%s1 + $0x348] sm:$0xff]
  %v678 = vld [vmem:[%s1 + $0x350] sm:$0xff]
  %v679 = vld [vmem:[%s1 + $0x358] sm:$0xff]
  %v680 = vld [vmem:[%s1 + $0x360] sm:$0xff]
  %v681 = vld [vmem:[%s1 + $0x368] sm:$0xff]
  %v682 = vld [vmem:[%s1 + $0x370] sm:$0xff]
  %v683 = vld [vmem:[%s1 + $0x378] sm:$0xff]
  %v684 = vmul.f32 %v29, %v676
  %v685 = vmul.f32 %v30, %v677
  %v686 = vmul.f32 %v31, %v678
  %v687 = vmul.f32 %v32, %v679
  %v688 = vmul.f32 %v33, %v680
  %v689 = vmul.f32 %v34, %v681
  %v690 = vmul.f32 %v35, %v682
  %v691 = vmul.f32 %v36, %v683
  %692 = vst [vmem:[#allocation2 + $0x340] sm:$0xff] %v684
  %693 = vst [vmem:[#allocation2 + $0x348] sm:$0xff] %v685
  %694 = vst [vmem:[#allocation2 + $0x350] sm:$0xff] %v686
  %695 = vst [vmem:[#allocation2 + $0x358] sm:$0xff] %v687
  %696 = vst [vmem:[#allocation2 + $0x360] sm:$0xff] %v688
  %697 = vst [vmem:[#allocation2 + $0x368] sm:$0xff] %v689
  %698 = vst [vmem:[#allocation2 + $0x370] sm:$0xff] %v690
  %699 = vst [vmem:[#allocation2 + $0x378] sm:$0xff] %v691
  %700 = vrot.lane.b32.xlu0 %v29, 127
  %v701 = vpop.permute.xlu0 %700
  %702 = vrot.lane.b32.xlu0 %v30, 127
  %v703 = vpop.permute.xlu0 %702
  %704 = vrot.lane.b32.xlu0 %v31, 127
  %v705 = vpop.permute.xlu0 %704
  %706 = vrot.lane.b32.xlu0 %v32, 127
  %v707 = vpop.permute.xlu0 %706
  %708 = vrot.lane.b32.xlu0 %v33, 127
  %v709 = vpop.permute.xlu0 %708
  %710 = vrot.lane.b32.xlu0 %v34, 127
  %v711 = vpop.permute.xlu0 %710
  %712 = vrot.lane.b32.xlu0 %v35, 127
  %v713 = vpop.permute.xlu0 %712
  %714 = vrot.lane.b32.xlu0 %v36, 127
  %v715 = vpop.permute.xlu0 %714
  %vm716 = vcmp.lt.s32.totalorder %v54, 127
  %v717 = vsel %vm716, %v713, %v715
  %v718 = vsel %vm716, %v711, %v713
  %v719 = vsel %vm716, %v709, %v711
  %v720 = vsel %vm716, %v707, %v709
  %v721 = vsel %vm716, %v705, %v707
  %v722 = vsel %vm716, %v703, %v705
  %v723 = vsel %vm716, %v701, %v703
  %v724 = vsel %vm716, %v715, %v701
  %v725 = vld [vmem:[%s1 + $0x380] sm:$0xff]
  %v726 = vld [vmem:[%s1 + $0x388] sm:$0xff]
  %v727 = vld [vmem:[%s1 + $0x390] sm:$0xff]
  %v728 = vld [vmem:[%s1 + $0x398] sm:$0xff]
  %v729 = vld [vmem:[%s1 + $0x3a0] sm:$0xff]
  %v730 = vld [vmem:[%s1 + $0x3a8] sm:$0xff]
  %v731 = vld [vmem:[%s1 + $0x3b0] sm:$0xff]
  %v732 = vld [vmem:[%s1 + $0x3b8] sm:$0xff]
  %v733 = vmul.f32 %v723, %v725
  %v734 = vmul.f32 %v722, %v726
  %v735 = vmul.f32 %v721, %v727
  %v736 = vmul.f32 %v720, %v728
  %v737 = vmul.f32 %v719, %v729
  %v738 = vmul.f32 %v718, %v730
  %v739 = vmul.f32 %v717, %v731
  %v740 = vmul.f32 %v724, %v732
  %741 = vst [vmem:[#allocation2 + $0x380] sm:$0xff] %v733
  %742 = vst [vmem:[#allocation2 + $0x388] sm:$0xff] %v734
  %743 = vst [vmem:[#allocation2 + $0x390] sm:$0xff] %v735
  %744 = vst [vmem:[#allocation2 + $0x398] sm:$0xff] %v736
  %745 = vst [vmem:[#allocation2 + $0x3a0] sm:$0xff] %v737
  %746 = vst [vmem:[#allocation2 + $0x3a8] sm:$0xff] %v738
  %747 = vst [vmem:[#allocation2 + $0x3b0] sm:$0xff] %v739
  %748 = vst [vmem:[#allocation2 + $0x3b8] sm:$0xff] %v740
  %749 = vrot.lane.b32.xlu0 %v29, 121
  %v750 = vpop.permute.xlu0 %749
  %751 = vrot.lane.b32.xlu0 %v30, 121
  %v752 = vpop.permute.xlu0 %751
  %753 = vrot.lane.b32.xlu0 %v31, 121
  %v754 = vpop.permute.xlu0 %753
  %755 = vrot.lane.b32.xlu0 %v32, 121
  %v756 = vpop.permute.xlu0 %755
  %757 = vrot.lane.b32.xlu0 %v33, 121
  %v758 = vpop.permute.xlu0 %757
  %759 = vrot.lane.b32.xlu0 %v34, 121
  %v760 = vpop.permute.xlu0 %759
  %761 = vrot.lane.b32.xlu0 %v35, 121
  %v762 = vpop.permute.xlu0 %761
  %763 = vrot.lane.b32.xlu0 %v36, 121
  %v764 = vpop.permute.xlu0 %763
  %vm765 = vcmp.lt.s32.totalorder %v54, 121
  %v766 = vsel %vm765, %v762, %v764
  %v767 = vsel %vm765, %v760, %v762
  %v768 = vsel %vm765, %v758, %v760
  %v769 = vsel %vm765, %v756, %v758
  %v770 = vsel %vm765, %v754, %v756
  %v771 = vsel %vm765, %v752, %v754
  %v772 = vsel %vm765, %v750, %v752
  %v773 = vsel %vm765, %v764, %v750
  %v774 = vld [vmem:[%s1 + $0x3c0] sm:$0xff]
  %v775 = vld [vmem:[%s1 + $0x3c8] sm:$0xff]
  %v776 = vld [vmem:[%s1 + $0x3d0] sm:$0xff]
  %v777 = vld [vmem:[%s1 + $0x3d8] sm:$0xff]
  %v778 = vld [vmem:[%s1 + $0x3e0] sm:$0xff]
  %v779 = vld [vmem:[%s1 + $0x3e8] sm:$0xff]
  %v780 = vld [vmem:[%s1 + $0x3f0] sm:$0xff]
  %v781 = vld [vmem:[%s1 + $0x3f8] sm:$0xff]
  %v782 = vmul.f32 %v772, %v774
  %v783 = vmul.f32 %v771, %v775
  %v784 = vmul.f32 %v770, %v776
  %v785 = vmul.f32 %v769, %v777
  %v786 = vmul.f32 %v768, %v778
  %v787 = vmul.f32 %v767, %v779
  %v788 = vmul.f32 %v766, %v780
  %v789 = vmul.f32 %v773, %v781
  %790 = vst [vmem:[#allocation2 + $0x3c0] sm:$0xff] %v782
  %791 = vst [vmem:[#allocation2 + $0x3c8] sm:$0xff] %v783
  %792 = vst [vmem:[#allocation2 + $0x3d0] sm:$0xff] %v784
  %793 = vst [vmem:[#allocation2 + $0x3d8] sm:$0xff] %v785
  %794 = vst [vmem:[#allocation2 + $0x3e0] sm:$0xff] %v786
  %795 = vst [vmem:[#allocation2 + $0x3e8] sm:$0xff] %v787
  %796 = vst [vmem:[#allocation2 + $0x3f0] sm:$0xff] %v788
  %797 = vst [vmem:[#allocation2 + $0x3f8] sm:$0xff] %v789
  %798 = vrot.lane.b32.xlu0 %v29, 120
  %v799 = vpop.permute.xlu0 %798
  %800 = vrot.lane.b32.xlu0 %v30, 120
  %v801 = vpop.permute.xlu0 %800
  %802 = vrot.lane.b32.xlu0 %v31, 120
  %v803 = vpop.permute.xlu0 %802
  %804 = vrot.lane.b32.xlu0 %v32, 120
  %v805 = vpop.permute.xlu0 %804
  %806 = vrot.lane.b32.xlu0 %v33, 120
  %v807 = vpop.permute.xlu0 %806
  %808 = vrot.lane.b32.xlu0 %v34, 120
  %v809 = vpop.permute.xlu0 %808
  %810 = vrot.lane.b32.xlu0 %v35, 120
  %v811 = vpop.permute.xlu0 %810
  %812 = vrot.lane.b32.xlu0 %v36, 120
  %v813 = vpop.permute.xlu0 %812
  %vm814 = vcmp.lt.s32.totalorder %v54, 120
  %v815 = vsel %vm814, %v811, %v813
  %v816 = vsel %vm814, %v809, %v811
  %v817 = vsel %vm814, %v807, %v809
  %v818 = vsel %vm814, %v805, %v807
  %v819 = vsel %vm814, %v803, %v805
  %v820 = vsel %vm814, %v801, %v803
  %v821 = vsel %vm814, %v799, %v801
  %v822 = vsel %vm814, %v813, %v799
  %v823 = vld [vmem:[%s1 + $0x400] sm:$0xff]
  %v824 = vld [vmem:[%s1 + $0x408] sm:$0xff]
  %v825 = vld [vmem:[%s1 + $0x410] sm:$0xff]
  %v826 = vld [vmem:[%s1 + $0x418] sm:$0xff]
  %v827 = vld [vmem:[%s1 + $0x420] sm:$0xff]
  %v828 = vld [vmem:[%s1 + $0x428] sm:$0xff]
  %v829 = vld [vmem:[%s1 + $0x430] sm:$0xff]
  %v830 = vld [vmem:[%s1 + $0x438] sm:$0xff]
  %v831 = vmul.f32 %v821, %v823
  %v832 = vmul.f32 %v820, %v824
  %v833 = vmul.f32 %v819, %v825
  %v834 = vmul.f32 %v818, %v826
  %v835 = vmul.f32 %v817, %v827
  %v836 = vmul.f32 %v816, %v828
  %v837 = vmul.f32 %v815, %v829
  %v838 = vmul.f32 %v822, %v830
  %839 = vst [vmem:[#allocation2 + $0x400] sm:$0xff] %v831
  %840 = vst [vmem:[#allocation2 + $0x408] sm:$0xff] %v832
  %841 = vst [vmem:[#allocation2 + $0x410] sm:$0xff] %v833
  %842 = vst [vmem:[#allocation2 + $0x418] sm:$0xff] %v834
  %843 = vst [vmem:[#allocation2 + $0x420] sm:$0xff] %v835
  %844 = vst [vmem:[#allocation2 + $0x428] sm:$0xff] %v836
  %845 = vst [vmem:[#allocation2 + $0x430] sm:$0xff] %v837
  %846 = vst [vmem:[#allocation2 + $0x438] sm:$0xff] %v838
  %847 = vrot.lane.b32.xlu0 %v29, 119
  %v848 = vpop.permute.xlu0 %847
  %849 = vrot.lane.b32.xlu0 %v30, 119
  %v850 = vpop.permute.xlu0 %849
  %851 = vrot.lane.b32.xlu0 %v31, 119
  %v852 = vpop.permute.xlu0 %851
  %853 = vrot.lane.b32.xlu0 %v32, 119
  %v854 = vpop.permute.xlu0 %853
  %855 = vrot.lane.b32.xlu0 %v33, 119
  %v856 = vpop.permute.xlu0 %855
  %857 = vrot.lane.b32.xlu0 %v34, 119
  %v858 = vpop.permute.xlu0 %857
  %859 = vrot.lane.b32.xlu0 %v35, 119
  %v860 = vpop.permute.xlu0 %859
  %861 = vrot.lane.b32.xlu0 %v36, 119
  %v862 = vpop.permute.xlu0 %861
  %vm863 = vcmp.lt.s32.totalorder %v54, 119
  %v864 = vsel %vm863, %v860, %v862
  %v865 = vsel %vm863, %v858, %v860
  %v866 = vsel %vm863, %v856, %v858
  %v867 = vsel %vm863, %v854, %v856
  %v868 = vsel %vm863, %v852, %v854
  %v869 = vsel %vm863, %v850, %v852
  %v870 = vsel %vm863, %v848, %v850
  %v871 = vsel %vm863, %v862, %v848
  %v872 = vld [vmem:[%s1 + $0x440] sm:$0xff]
  %v873 = vld [vmem:[%s1 + $0x448] sm:$0xff]
  %v874 = vld [vmem:[%s1 + $0x450] sm:$0xff]
  %v875 = vld [vmem:[%s1 + $0x458] sm:$0xff]
  %v876 = vld [vmem:[%s1 + $0x460] sm:$0xff]
  %v877 = vld [vmem:[%s1 + $0x468] sm:$0xff]
  %v878 = vld [vmem:[%s1 + $0x470] sm:$0xff]
  %v879 = vld [vmem:[%s1 + $0x478] sm:$0xff]
  %v880 = vmul.f32 %v870, %v872
  %v881 = vmul.f32 %v869, %v873
  %v882 = vmul.f32 %v868, %v874
  %v883 = vmul.f32 %v867, %v875
  %v884 = vmul.f32 %v866, %v876
  %v885 = vmul.f32 %v865, %v877
  %v886 = vmul.f32 %v864, %v878
  %v887 = vmul.f32 %v871, %v879
  %888 = vst [vmem:[#allocation2 + $0x440] sm:$0xff] %v880
  %889 = vst [vmem:[#allocation2 + $0x448] sm:$0xff] %v881
  %890 = vst [vmem:[#allocation2 + $0x450] sm:$0xff] %v882
  %891 = vst [vmem:[#allocation2 + $0x458] sm:$0xff] %v883
  %892 = vst [vmem:[#allocation2 + $0x460] sm:$0xff] %v884
  %893 = vst [vmem:[#allocation2 + $0x468] sm:$0xff] %v885
  %894 = vst [vmem:[#allocation2 + $0x470] sm:$0xff] %v886
  %895 = vst [vmem:[#allocation2 + $0x478] sm:$0xff] %v887
  %v896 = vld [vmem:[%s1 + $0x480] sm:$0xff]
  %v897 = vld [vmem:[%s1 + $0x488] sm:$0xff]
  %v898 = vld [vmem:[%s1 + $0x490] sm:$0xff]
  %v899 = vld [vmem:[%s1 + $0x498] sm:$0xff]
  %v900 = vld [vmem:[%s1 + $0x4a0] sm:$0xff]
  %v901 = vld [vmem:[%s1 + $0x4a8] sm:$0xff]
  %v902 = vld [vmem:[%s1 + $0x4b0] sm:$0xff]
  %v903 = vld [vmem:[%s1 + $0x4b8] sm:$0xff]
  %v904 = vmul.f32 %v62, %v896
  %v905 = vmul.f32 %v61, %v897
  %v906 = vmul.f32 %v60, %v898
  %v907 = vmul.f32 %v59, %v899
  %v908 = vmul.f32 %v58, %v900
  %v909 = vmul.f32 %v57, %v901
  %v910 = vmul.f32 %v56, %v902
  %v911 = vmul.f32 %v63, %v903
  %912 = vst [vmem:[#allocation2 + $0x480] sm:$0xff] %v904
  %913 = vst [vmem:[#allocation2 + $0x488] sm:$0xff] %v905
  %914 = vst [vmem:[#allocation2 + $0x490] sm:$0xff] %v906
  %915 = vst [vmem:[#allocation2 + $0x498] sm:$0xff] %v907
  %916 = vst [vmem:[#allocation2 + $0x4a0] sm:$0xff] %v908
  %917 = vst [vmem:[#allocation2 + $0x4a8] sm:$0xff] %v909
  %918 = vst [vmem:[#allocation2 + $0x4b0] sm:$0xff] %v910
  %919 = vst [vmem:[#allocation2 + $0x4b8] sm:$0xff] %v911
  %v920 = vld [vmem:[%s1 + $0x4c0] sm:$0xff]
  %v921 = vld [vmem:[%s1 + $0x4c8] sm:$0xff]
  %v922 = vld [vmem:[%s1 + $0x4d0] sm:$0xff]
  %v923 = vld [vmem:[%s1 + $0x4d8] sm:$0xff]
  %v924 = vld [vmem:[%s1 + $0x4e0] sm:$0xff]
  %v925 = vld [vmem:[%s1 + $0x4e8] sm:$0xff]
  %v926 = vld [vmem:[%s1 + $0x4f0] sm:$0xff]
  %v927 = vld [vmem:[%s1 + $0x4f8] sm:$0xff]
  %v928 = vmul.f32 %v111, %v920
  %v929 = vmul.f32 %v110, %v921
  %v930 = vmul.f32 %v109, %v922
  %v931 = vmul.f32 %v108, %v923
  %v932 = vmul.f32 %v107, %v924
  %v933 = vmul.f32 %v106, %v925
  %v934 = vmul.f32 %v105, %v926
  %v935 = vmul.f32 %v112, %v927
  %936 = vst [vmem:[#allocation2 + $0x4c0] sm:$0xff] %v928
  %937 = vst [vmem:[#allocation2 + $0x4c8] sm:$0xff] %v929
  %938 = vst [vmem:[#allocation2 + $0x4d0] sm:$0xff] %v930
  %939 = vst [vmem:[#allocation2 + $0x4d8] sm:$0xff] %v931
  %940 = vst [vmem:[#allocation2 + $0x4e0] sm:$0xff] %v932
  %941 = vst [vmem:[#allocation2 + $0x4e8] sm:$0xff] %v933
  %942 = vst [vmem:[#allocation2 + $0x4f0] sm:$0xff] %v934
  %943 = vst [vmem:[#allocation2 + $0x4f8] sm:$0xff] %v935
  %v944 = vld [vmem:[%s1 + $0x500] sm:$0xff]
  %v945 = vld [vmem:[%s1 + $0x508] sm:$0xff]
  %v946 = vld [vmem:[%s1 + $0x510] sm:$0xff]
  %v947 = vld [vmem:[%s1 + $0x518] sm:$0xff]
  %v948 = vld [vmem:[%s1 + $0x520] sm:$0xff]
  %v949 = vld [vmem:[%s1 + $0x528] sm:$0xff]
  %v950 = vld [vmem:[%s1 + $0x530] sm:$0xff]
  %v951 = vld [vmem:[%s1 + $0x538] sm:$0xff]
  %v952 = vmul.f32 %v160, %v944
  %v953 = vmul.f32 %v159, %v945
  %v954 = vmul.f32 %v158, %v946
  %v955 = vmul.f32 %v157, %v947
  %v956 = vmul.f32 %v156, %v948
  %v957 = vmul.f32 %v155, %v949
  %v958 = vmul.f32 %v154, %v950
  %v959 = vmul.f32 %v161, %v951
  %960 = vst [vmem:[#allocation2 + $0x500] sm:$0xff] %v952
  %961 = vst [vmem:[#allocation2 + $0x508] sm:$0xff] %v953
  %962 = vst [vmem:[#allocation2 + $0x510] sm:$0xff] %v954
  %963 = vst [vmem:[#allocation2 + $0x518] sm:$0xff] %v955
  %964 = vst [vmem:[#allocation2 + $0x520] sm:$0xff] %v956
  %965 = vst [vmem:[#allocation2 + $0x528] sm:$0xff] %v957
  %966 = vst [vmem:[#allocation2 + $0x530] sm:$0xff] %v958
  %967 = vst [vmem:[#allocation2 + $0x538] sm:$0xff] %v959
  %v968 = vld [vmem:[%s1 + $0x540] sm:$0xff]
  %v969 = vld [vmem:[%s1 + $0x548] sm:$0xff]
  %v970 = vld [vmem:[%s1 + $0x550] sm:$0xff]
  %v971 = vld [vmem:[%s1 + $0x558] sm:$0xff]
  %v972 = vld [vmem:[%s1 + $0x560] sm:$0xff]
  %v973 = vld [vmem:[%s1 + $0x568] sm:$0xff]
  %v974 = vld [vmem:[%s1 + $0x570] sm:$0xff]
  %v975 = vld [vmem:[%s1 + $0x578] sm:$0xff]
  %v976 = vmul.f32 %v209, %v968
  %v977 = vmul.f32 %v208, %v969
  %v978 = vmul.f32 %v207, %v970
  %v979 = vmul.f32 %v206, %v971
  %v980 = vmul.f32 %v205, %v972
  %v981 = vmul.f32 %v204, %v973
  %v982 = vmul.f32 %v203, %v974
  %v983 = vmul.f32 %v210, %v975
  %984 = vst [vmem:[#allocation2 + $0x540] sm:$0xff] %v976
  %985 = vst [vmem:[#allocation2 + $0x548] sm:$0xff] %v977
  %986 = vst [vmem:[#allocation2 + $0x550] sm:$0xff] %v978
  %987 = vst [vmem:[#allocation2 + $0x558] sm:$0xff] %v979
  %988 = vst [vmem:[#allocation2 + $0x560] sm:$0xff] %v980
  %989 = vst [vmem:[#allocation2 + $0x568] sm:$0xff] %v981
  %990 = vst [vmem:[#allocation2 + $0x570] sm:$0xff] %v982
  %991 = vst [vmem:[#allocation2 + $0x578] sm:$0xff] %v983
  %v992 = vld [vmem:[%s1 + $0x580] sm:$0xff]
  %v993 = vld [vmem:[%s1 + $0x588] sm:$0xff]
  %v994 = vld [vmem:[%s1 + $0x590] sm:$0xff]
  %v995 = vld [vmem:[%s1 + $0x598] sm:$0xff]
  %v996 = vld [vmem:[%s1 + $0x5a0] sm:$0xff]
  %v997 = vld [vmem:[%s1 + $0x5a8] sm:$0xff]
  %v998 = vld [vmem:[%s1 + $0x5b0] sm:$0xff]
  %v999 = vld [vmem:[%s1 + $0x5b8] sm:$0xff]
  %v1000 = vmul.f32 %v258, %v992
  %v1001 = vmul.f32 %v257, %v993
  %v1002 = vmul.f32 %v256, %v994
  %v1003 = vmul.f32 %v255, %v995
  %v1004 = vmul.f32 %v254, %v996
  %v1005 = vmul.f32 %v253, %v997
  %v1006 = vmul.f32 %v252, %v998
  %v1007 = vmul.f32 %v259, %v999
  %1008 = vst [vmem:[#allocation2 + $0x580] sm:$0xff] %v1000
  %1009 = vst [vmem:[#allocation2 + $0x588] sm:$0xff] %v1001
  %1010 = vst [vmem:[#allocation2 + $0x590] sm:$0xff] %v1002
  %1011 = vst [vmem:[#allocation2 + $0x598] sm:$0xff] %v1003
  %1012 = vst [vmem:[#allocation2 + $0x5a0] sm:$0xff] %v1004
  %1013 = vst [vmem:[#allocation2 + $0x5a8] sm:$0xff] %v1005
  %1014 = vst [vmem:[#allocation2 + $0x5b0] sm:$0xff] %v1006
  %1015 = vst [vmem:[#allocation2 + $0x5b8] sm:$0xff] %v1007
  %v1016 = vld [vmem:[%s1 + $0x5c0] sm:$0xff]
  %v1017 = vld [vmem:[%s1 + $0x5c8] sm:$0xff]
  %v1018 = vld [vmem:[%s1 + $0x5d0] sm:$0xff]
  %v1019 = vld [vmem:[%s1 + $0x5d8] sm:$0xff]
  %v1020 = vld [vmem:[%s1 + $0x5e0] sm:$0xff]
  %v1021 = vld [vmem:[%s1 + $0x5e8] sm:$0xff]
  %v1022 = vld [vmem:[%s1 + $0x5f0] sm:$0xff]
  %v1023 = vld [vmem:[%s1 + $0x5f8] sm:$0xff]
  %v1024 = vmul.f32 %v307, %v1016
  %v1025 = vmul.f32 %v306, %v1017
  %v1026 = vmul.f32 %v305, %v1018
  %v1027 = vmul.f32 %v304, %v1019
  %v1028 = vmul.f32 %v303, %v1020
  %v1029 = vmul.f32 %v302, %v1021
  %v1030 = vmul.f32 %v301, %v1022
  %v1031 = vmul.f32 %v308, %v1023
  %1032 = vst [vmem:[#allocation2 + $0x5c0] sm:$0xff] %v1024
  %1033 = vst [vmem:[#allocation2 + $0x5c8] sm:$0xff] %v1025
  %1034 = vst [vmem:[#allocation2 + $0x5d0] sm:$0xff] %v1026
  %1035 = vst [vmem:[#allocation2 + $0x5d8] sm:$0xff] %v1027
  %1036 = vst [vmem:[#allocation2 + $0x5e0] sm:$0xff] %v1028
  %1037 = vst [vmem:[#allocation2 + $0x5e8] sm:$0xff] %v1029
  %1038 = vst [vmem:[#allocation2 + $0x5f0] sm:$0xff] %v1030
  %1039 = vst [vmem:[#allocation2 + $0x5f8] sm:$0xff] %v1031
  %v1040 = vld [vmem:[%s1 + $0x600] sm:$0xff]
  %v1041 = vld [vmem:[%s1 + $0x608] sm:$0xff]
  %v1042 = vld [vmem:[%s1 + $0x610] sm:$0xff]
  %v1043 = vld [vmem:[%s1 + $0x618] sm:$0xff]
  %v1044 = vld [vmem:[%s1 + $0x620] sm:$0xff]
  %v1045 = vld [vmem:[%s1 + $0x628] sm:$0xff]
  %v1046 = vld [vmem:[%s1 + $0x630] sm:$0xff]
  %v1047 = vld [vmem:[%s1 + $0x638] sm:$0xff]
  %v1048 = vmul.f32 %v356, %v1040
  %v1049 = vmul.f32 %v355, %v1041
  %v1050 = vmul.f32 %v354, %v1042
  %v1051 = vmul.f32 %v353, %v1043
  %v1052 = vmul.f32 %v352, %v1044
  %v1053 = vmul.f32 %v351, %v1045
  %v1054 = vmul.f32 %v350, %v1046
  %v1055 = vmul.f32 %v357, %v1047
  %1056 = vst [vmem:[#allocation2 + $0x600] sm:$0xff] %v1048
  %1057 = vst [vmem:[#allocation2 + $0x608] sm:$0xff] %v1049
  %1058 = vst [vmem:[#allocation2 + $0x610] sm:$0xff] %v1050
  %1059 = vst [vmem:[#allocation2 + $0x618] sm:$0xff] %v1051
  %1060 = vst [vmem:[#allocation2 + $0x620] sm:$0xff] %v1052
  %1061 = vst [vmem:[#allocation2 + $0x628] sm:$0xff] %v1053
  %1062 = vst [vmem:[#allocation2 + $0x630] sm:$0xff] %v1054
  %1063 = vst [vmem:[#allocation2 + $0x638] sm:$0xff] %v1055
  %v1064 = vld [vmem:[%s1 + $0x640] sm:$0xff]
  %v1065 = vld [vmem:[%s1 + $0x648] sm:$0xff]
  %v1066 = vld [vmem:[%s1 + $0x650] sm:$0xff]
  %v1067 = vld [vmem:[%s1 + $0x658] sm:$0xff]
  %v1068 = vld [vmem:[%s1 + $0x660] sm:$0xff]
  %v1069 = vld [vmem:[%s1 + $0x668] sm:$0xff]
  %v1070 = vld [vmem:[%s1 + $0x670] sm:$0xff]
  %v1071 = vld [vmem:[%s1 + $0x678] sm:$0xff]
  %v1072 = vmul.f32 %v405, %v1064
  %v1073 = vmul.f32 %v404, %v1065
  %v1074 = vmul.f32 %v403, %v1066
  %v1075 = vmul.f32 %v402, %v1067
  %v1076 = vmul.f32 %v401, %v1068
  %v1077 = vmul.f32 %v400, %v1069
  %v1078 = vmul.f32 %v399, %v1070
  %v1079 = vmul.f32 %v406, %v1071
  %1080 = vst [vmem:[#allocation2 + $0x640] sm:$0xff] %v1072
  %1081 = vst [vmem:[#allocation2 + $0x648] sm:$0xff] %v1073
  %1082 = vst [vmem:[#allocation2 + $0x650] sm:$0xff] %v1074
  %1083 = vst [vmem:[#allocation2 + $0x658] sm:$0xff] %v1075
  %1084 = vst [vmem:[#allocation2 + $0x660] sm:$0xff] %v1076
  %1085 = vst [vmem:[#allocation2 + $0x668] sm:$0xff] %v1077
  %1086 = vst [vmem:[#allocation2 + $0x670] sm:$0xff] %v1078
  %1087 = vst [vmem:[#allocation2 + $0x678] sm:$0xff] %v1079
  %v1088 = vld [vmem:[%s1 + $0x680] sm:$0xff]
  %v1089 = vld [vmem:[%s1 + $0x688] sm:$0xff]
  %v1090 = vld [vmem:[%s1 + $0x690] sm:$0xff]
  %v1091 = vld [vmem:[%s1 + $0x698] sm:$0xff]
  %v1092 = vld [vmem:[%s1 + $0x6a0] sm:$0xff]
  %v1093 = vld [vmem:[%s1 + $0x6a8] sm:$0xff]
  %v1094 = vld [vmem:[%s1 + $0x6b0] sm:$0xff]
  %v1095 = vld [vmem:[%s1 + $0x6b8] sm:$0xff]
  %v1096 = vmul.f32 %v454, %v1088
  %v1097 = vmul.f32 %v453, %v1089
  %v1098 = vmul.f32 %v452, %v1090
  %v1099 = vmul.f32 %v451, %v1091
  %v1100 = vmul.f32 %v450, %v1092
  %v1101 = vmul.f32 %v449, %v1093
  %v1102 = vmul.f32 %v448, %v1094
  %v1103 = vmul.f32 %v455, %v1095
  %1104 = vst [vmem:[#allocation2 + $0x680] sm:$0xff] %v1096
  %1105 = vst [vmem:[#allocation2 + $0x688] sm:$0xff] %v1097
  %1106 = vst [vmem:[#allocation2 + $0x690] sm:$0xff] %v1098
  %1107 = vst [vmem:[#allocation2 + $0x698] sm:$0xff] %v1099
  %1108 = vst [vmem:[#allocation2 + $0x6a0] sm:$0xff] %v1100
  %1109 = vst [vmem:[#allocation2 + $0x6a8] sm:$0xff] %v1101
  %1110 = vst [vmem:[#allocation2 + $0x6b0] sm:$0xff] %v1102
  %1111 = vst [vmem:[#allocation2 + $0x6b8] sm:$0xff] %v1103
  %v1112 = vld [vmem:[%s2] sm:$0xff]
  %v1113 = vld [vmem:[%s2 + $0x8] sm:$0xff]
  %v1114 = vld [vmem:[#allocation2] sm:$0xff]
  %v1115 = vld [vmem:[#allocation2 + $0x8] sm:$0xff]
  %v1116 = vld [vmem:[#allocation2 + $0x10] sm:$0xff]
  %v1117 = vld [vmem:[#allocation2 + $0x18] sm:$0xff]
  %v1118 = vld [vmem:[#allocation2 + $0x20] sm:$0xff]
  %v1119 = vld [vmem:[#allocation2 + $0x28] sm:$0xff]
  %v1120 = vld [vmem:[#allocation2 + $0x30] sm:$0xff]
  %v1121 = vld [vmem:[#allocation2 + $0x38] sm:$0xff]
  %v1122 = vld [vmem:[#allocation2 + $0x40] sm:$0xff]
  %v1123 = vld [vmem:[#allocation2 + $0x48] sm:$0xff]
  %v1124 = vld [vmem:[#allocation2 + $0x50] sm:$0xff]
  %v1125 = vld [vmem:[#allocation2 + $0x58] sm:$0xff]
  %v1126 = vld [vmem:[#allocation2 + $0x60] sm:$0xff]
  %v1127 = vld [vmem:[#allocation2 + $0x68] sm:$0xff]
  %v1128 = vld [vmem:[#allocation2 + $0x70] sm:$0xff]
  %v1129 = vld [vmem:[#allocation2 + $0x78] sm:$0xff]
  %v1130 = vld [vmem:[#allocation2 + $0x80] sm:$0xff]
  %v1131 = vld [vmem:[#allocation2 + $0x88] sm:$0xff]
  %v1132 = vld [vmem:[#allocation2 + $0x90] sm:$0xff]
  %v1133 = vld [vmem:[#allocation2 + $0x98] sm:$0xff]
  %v1134 = vld [vmem:[#allocation2 + $0xa0] sm:$0xff]
  %v1135 = vld [vmem:[#allocation2 + $0xa8] sm:$0xff]
  %v1136 = vld [vmem:[#allocation2 + $0xb0] sm:$0xff]
  %v1137 = vld [vmem:[#allocation2 + $0xb8] sm:$0xff]
  %v1138 = vld [vmem:[#allocation2 + $0xc0] sm:$0xff]
  %v1139 = vld [vmem:[#allocation2 + $0xc8] sm:$0xff]
  %v1140 = vld [vmem:[#allocation2 + $0xd0] sm:$0xff]
  %v1141 = vld [vmem:[#allocation2 + $0xd8] sm:$0xff]
  %v1142 = vld [vmem:[#allocation2 + $0xe0] sm:$0xff]
  %v1143 = vld [vmem:[#allocation2 + $0xe8] sm:$0xff]
  %v1144 = vld [vmem:[#allocation2 + $0xf0] sm:$0xff]
  %v1145 = vld [vmem:[#allocation2 + $0xf8] sm:$0xff]
  %v1146 = vld [vmem:[#allocation2 + $0x100] sm:$0xff]
  %v1147 = vld [vmem:[#allocation2 + $0x108] sm:$0xff]
  %v1148 = vld [vmem:[#allocation2 + $0x110] sm:$0xff]
  %v1149 = vld [vmem:[#allocation2 + $0x118] sm:$0xff]
  %v1150 = vld [vmem:[#allocation2 + $0x120] sm:$0xff]
  %v1151 = vld [vmem:[#allocation2 + $0x128] sm:$0xff]
  %v1152 = vld [vmem:[#allocation2 + $0x130] sm:$0xff]
  %v1153 = vld [vmem:[#allocation2 + $0x138] sm:$0xff]
  %v1154 = vld [vmem:[#allocation2 + $0x140] sm:$0xff]
  %v1155 = vld [vmem:[#allocation2 + $0x148] sm:$0xff]
  %v1156 = vld [vmem:[#allocation2 + $0x150] sm:$0xff]
  %v1157 = vld [vmem:[#allocation2 + $0x158] sm:$0xff]
  %v1158 = vld [vmem:[#allocation2 + $0x160] sm:$0xff]
  %v1159 = vld [vmem:[#allocation2 + $0x168] sm:$0xff]
  %v1160 = vld [vmem:[#allocation2 + $0x170] sm:$0xff]
  %v1161 = vld [vmem:[#allocation2 + $0x178] sm:$0xff]
  %v1162 = vld [vmem:[#allocation2 + $0x180] sm:$0xff]
  %v1163 = vld [vmem:[#allocation2 + $0x188] sm:$0xff]
  %v1164 = vld [vmem:[#allocation2 + $0x190] sm:$0xff]
  %v1165 = vld [vmem:[#allocation2 + $0x198] sm:$0xff]
  %v1166 = vld [vmem:[#allocation2 + $0x1a0] sm:$0xff]
  %v1167 = vld [vmem:[#allocation2 + $0x1a8] sm:$0xff]
  %v1168 = vld [vmem:[#allocation2 + $0x1b0] sm:$0xff]
  %v1169 = vld [vmem:[#allocation2 + $0x1b8] sm:$0xff]
  %v1170 = vld [vmem:[#allocation2 + $0x1c0] sm:$0xff]
  %v1171 = vld [vmem:[#allocation2 + $0x1c8] sm:$0xff]
  %v1172 = vld [vmem:[#allocation2 + $0x1d0] sm:$0xff]
  %v1173 = vld [vmem:[#allocation2 + $0x1d8] sm:$0xff]
  %v1174 = vld [vmem:[#allocation2 + $0x1e0] sm:$0xff]
  %v1175 = vld [vmem:[#allocation2 + $0x1e8] sm:$0xff]
  %v1176 = vld [vmem:[#allocation2 + $0x1f0] sm:$0xff]
  %v1177 = vld [vmem:[#allocation2 + $0x1f8] sm:$0xff]
  %v1178 = vld [vmem:[#allocation2 + $0x200] sm:$0xff]
  %v1179 = vld [vmem:[#allocation2 + $0x208] sm:$0xff]
  %v1180 = vld [vmem:[#allocation2 + $0x210] sm:$0xff]
  %v1181 = vld [vmem:[#allocation2 + $0x218] sm:$0xff]
  %v1182 = vld [vmem:[#allocation2 + $0x220] sm:$0xff]
  %v1183 = vld [vmem:[#allocation2 + $0x228] sm:$0xff]
  %v1184 = vld [vmem:[#allocation2 + $0x230] sm:$0xff]
  %v1185 = vld [vmem:[#allocation2 + $0x238] sm:$0xff]
  %v1186 = vld [vmem:[#allocation2 + $0x240] sm:$0xff]
  %v1187 = vld [vmem:[#allocation2 + $0x248] sm:$0xff]
  %v1188 = vld [vmem:[#allocation2 + $0x250] sm:$0xff]
  %v1189 = vld [vmem:[#allocation2 + $0x258] sm:$0xff]
  %v1190 = vld [vmem:[#allocation2 + $0x260] sm:$0xff]
  %v1191 = vld [vmem:[#allocation2 + $0x268] sm:$0xff]
  %v1192 = vld [vmem:[#allocation2 + $0x270] sm:$0xff]
  %v1193 = vld [vmem:[#allocation2 + $0x278] sm:$0xff]
  %v1194 = vld [vmem:[#allocation2 + $0x280] sm:$0xff]
  %v1195 = vld [vmem:[#allocation2 + $0x288] sm:$0xff]
  %v1196 = vld [vmem:[#allocation2 + $0x290] sm:$0xff]
  %v1197 = vld [vmem:[#allocation2 + $0x298] sm:$0xff]
  %v1198 = vld [vmem:[#allocation2 + $0x2a0] sm:$0xff]
  %v1199 = vld [vmem:[#allocation2 + $0x2a8] sm:$0xff]
  %v1200 = vld [vmem:[#allocation2 + $0x2b0] sm:$0xff]
  %v1201 = vld [vmem:[#allocation2 + $0x2b8] sm:$0xff]
  %v1202 = vld [vmem:[#allocation2 + $0x2c0] sm:$0xff]
  %v1203 = vld [vmem:[#allocation2 + $0x2c8] sm:$0xff]
  %v1204 = vld [vmem:[#allocation2 + $0x2d0] sm:$0xff]
  %v1205 = vld [vmem:[#allocation2 + $0x2d8] sm:$0xff]
  %v1206 = vld [vmem:[#allocation2 + $0x2e0] sm:$0xff]
  %v1207 = vld [vmem:[#allocation2 + $0x2e8] sm:$0xff]
  %v1208 = vld [vmem:[#allocation2 + $0x2f0] sm:$0xff]
  %v1209 = vld [vmem:[#allocation2 + $0x2f8] sm:$0xff]
  %v1210 = vld [vmem:[#allocation2 + $0x300] sm:$0xff]
  %v1211 = vld [vmem:[#allocation2 + $0x308] sm:$0xff]
  %v1212 = vld [vmem:[#allocation2 + $0x310] sm:$0xff]
  %v1213 = vld [vmem:[#allocation2 + $0x318] sm:$0xff]
  %v1214 = vld [vmem:[#allocation2 + $0x320] sm:$0xff]
  %v1215 = vld [vmem:[#allocation2 + $0x328] sm:$0xff]
  %v1216 = vld [vmem:[#allocation2 + $0x330] sm:$0xff]
  %v1217 = vld [vmem:[#allocation2 + $0x338] sm:$0xff]
  %v1218 = vld [vmem:[#allocation2 + $0x340] sm:$0xff]
  %v1219 = vld [vmem:[#allocation2 + $0x348] sm:$0xff]
  %v1220 = vld [vmem:[#allocation2 + $0x350] sm:$0xff]
  %v1221 = vld [vmem:[#allocation2 + $0x358] sm:$0xff]
  %v1222 = vld [vmem:[#allocation2 + $0x360] sm:$0xff]
  %v1223 = vld [vmem:[#allocation2 + $0x368] sm:$0xff]
  %v1224 = vld [vmem:[#allocation2 + $0x370] sm:$0xff]
  %v1225 = vld [vmem:[#allocation2 + $0x378] sm:$0xff]
  %v1226 = vld [vmem:[#allocation2 + $0x380] sm:$0xff]
  %v1227 = vld [vmem:[#allocation2 + $0x388] sm:$0xff]
  %v1228 = vld [vmem:[#allocation2 + $0x390] sm:$0xff]
  %v1229 = vld [vmem:[#allocation2 + $0x398] sm:$0xff]
  %v1230 = vld [vmem:[#allocation2 + $0x3a0] sm:$0xff]
  %v1231 = vld [vmem:[#allocation2 + $0x3a8] sm:$0xff]
  %v1232 = vld [vmem:[#allocation2 + $0x3b0] sm:$0xff]
  %v1233 = vld [vmem:[#allocation2 + $0x3b8] sm:$0xff]
  %v1234 = vld [vmem:[#allocation2 + $0x3c0] sm:$0xff]
  %v1235 = vld [vmem:[#allocation2 + $0x3c8] sm:$0xff]
  %v1236 = vld [vmem:[#allocation2 + $0x3d0] sm:$0xff]
  %v1237 = vld [vmem:[#allocation2 + $0x3d8] sm:$0xff]
  %v1238 = vld [vmem:[#allocation2 + $0x3e0] sm:$0xff]
  %v1239 = vld [vmem:[#allocation2 + $0x3e8] sm:$0xff]
  %v1240 = vld [vmem:[#allocation2 + $0x3f0] sm:$0xff]
  %v1241 = vld [vmem:[#allocation2 + $0x3f8] sm:$0xff]
  %v1242 = vld [vmem:[#allocation2 + $0x400] sm:$0xff]
  %v1243 = vld [vmem:[#allocation2 + $0x408] sm:$0xff]
  %v1244 = vld [vmem:[#allocation2 + $0x410] sm:$0xff]
  %v1245 = vld [vmem:[#allocation2 + $0x418] sm:$0xff]
  %v1246 = vld [vmem:[#allocation2 + $0x420] sm:$0xff]
  %v1247 = vld [vmem:[#allocation2 + $0x428] sm:$0xff]
  %v1248 = vld [vmem:[#allocation2 + $0x430] sm:$0xff]
  %v1249 = vld [vmem:[#allocation2 + $0x438] sm:$0xff]
  %v1250 = vld [vmem:[#allocation2 + $0x440] sm:$0xff]
  %v1251 = vld [vmem:[#allocation2 + $0x448] sm:$0xff]
  %v1252 = vld [vmem:[#allocation2 + $0x450] sm:$0xff]
  %v1253 = vld [vmem:[#allocation2 + $0x458] sm:$0xff]
  %v1254 = vld [vmem:[#allocation2 + $0x460] sm:$0xff]
  %v1255 = vld [vmem:[#allocation2 + $0x468] sm:$0xff]
  %v1256 = vld [vmem:[#allocation2 + $0x470] sm:$0xff]
  %v1257 = vld [vmem:[#allocation2 + $0x478] sm:$0xff]
  %v1258 = vld [vmem:[#allocation2 + $0x480] sm:$0xff]
  %v1259 = vld [vmem:[#allocation2 + $0x488] sm:$0xff]
  %v1260 = vld [vmem:[#allocation2 + $0x490] sm:$0xff]
  %v1261 = vld [vmem:[#allocation2 + $0x498] sm:$0xff]
  %v1262 = vld [vmem:[#allocation2 + $0x4a0] sm:$0xff]
  %v1263 = vld [vmem:[#allocation2 + $0x4a8] sm:$0xff]
  %v1264 = vld [vmem:[#allocation2 + $0x4b0] sm:$0xff]
  %v1265 = vld [vmem:[#allocation2 + $0x4b8] sm:$0xff]
  %v1266 = vld [vmem:[#allocation2 + $0x4c0] sm:$0xff]
  %v1267 = vld [vmem:[#allocation2 + $0x4c8] sm:$0xff]
  %v1268 = vld [vmem:[#allocation2 + $0x4d0] sm:$0xff]
  %v1269 = vld [vmem:[#allocation2 + $0x4d8] sm:$0xff]
  %v1270 = vld [vmem:[#allocation2 + $0x4e0] sm:$0xff]
  %v1271 = vld [vmem:[#allocation2 + $0x4e8] sm:$0xff]
  %v1272 = vld [vmem:[#allocation2 + $0x4f0] sm:$0xff]
  %v1273 = vld [vmem:[#allocation2 + $0x4f8] sm:$0xff]
  %v1274 = vld [vmem:[#allocation2 + $0x500] sm:$0xff]
  %v1275 = vld [vmem:[#allocation2 + $0x508] sm:$0xff]
  %v1276 = vld [vmem:[#allocation2 + $0x510] sm:$0xff]
  %v1277 = vld [vmem:[#allocation2 + $0x518] sm:$0xff]
  %v1278 = vld [vmem:[#allocation2 + $0x520] sm:$0xff]
  %v1279 = vld [vmem:[#allocation2 + $0x528] sm:$0xff]
  %v1280 = vld [vmem:[#allocation2 + $0x530] sm:$0xff]
  %v1281 = vld [vmem:[#allocation2 + $0x538] sm:$0xff]
  %v1282 = vld [vmem:[#allocation2 + $0x540] sm:$0xff]
  %v1283 = vld [vmem:[#allocation2 + $0x548] sm:$0xff]
  %v1284 = vld [vmem:[#allocation2 + $0x550] sm:$0xff]
  %v1285 = vld [vmem:[#allocation2 + $0x558] sm:$0xff]
  %v1286 = vld [vmem:[#allocation2 + $0x560] sm:$0xff]
  %v1287 = vld [vmem:[#allocation2 + $0x568] sm:$0xff]
  %v1288 = vld [vmem:[#allocation2 + $0x570] sm:$0xff]
  %v1289 = vld [vmem:[#allocation2 + $0x578] sm:$0xff]
  %v1290 = vld [vmem:[#allocation2 + $0x580] sm:$0xff]
  %v1291 = vld [vmem:[#allocation2 + $0x588] sm:$0xff]
  %v1292 = vld [vmem:[#allocation2 + $0x590] sm:$0xff]
  %v1293 = vld [vmem:[#allocation2 + $0x598] sm:$0xff]
  %v1294 = vld [vmem:[#allocation2 + $0x5a0] sm:$0xff]
  %v1295 = vld [vmem:[#allocation2 + $0x5a8] sm:$0xff]
  %v1296 = vld [vmem:[#allocation2 + $0x5b0] sm:$0xff]
  %v1297 = vld [vmem:[#allocation2 + $0x5b8] sm:$0xff]
  %v1298 = vld [vmem:[#allocation2 + $0x5c0] sm:$0xff]
  %v1299 = vld [vmem:[#allocation2 + $0x5c8] sm:$0xff]
  %v1300 = vld [vmem:[#allocation2 + $0x5d0] sm:$0xff]
  %v1301 = vld [vmem:[#allocation2 + $0x5d8] sm:$0xff]
  %v1302 = vld [vmem:[#allocation2 + $0x5e0] sm:$0xff]
  %v1303 = vld [vmem:[#allocation2 + $0x5e8] sm:$0xff]
  %v1304 = vld [vmem:[#allocation2 + $0x5f0] sm:$0xff]
  %v1305 = vld [vmem:[#allocation2 + $0x5f8] sm:$0xff]
  %v1306 = vld [vmem:[#allocation2 + $0x600] sm:$0xff]
  %v1307 = vld [vmem:[#allocation2 + $0x608] sm:$0xff]
  %v1308 = vld [vmem:[#allocation2 + $0x610] sm:$0xff]
  %v1309 = vld [vmem:[#allocation2 + $0x618] sm:$0xff]
  %v1310 = vld [vmem:[#allocation2 + $0x620] sm:$0xff]
  %v1311 = vld [vmem:[#allocation2 + $0x628] sm:$0xff]
  %v1312 = vld [vmem:[#allocation2 + $0x630] sm:$0xff]
  %v1313 = vld [vmem:[#allocation2 + $0x638] sm:$0xff]
  %v1314 = vld [vmem:[#allocation2 + $0x640] sm:$0xff]
  %v1315 = vld [vmem:[#allocation2 + $0x648] sm:$0xff]
  %v1316 = vld [vmem:[#allocation2 + $0x650] sm:$0xff]
  %v1317 = vld [vmem:[#allocation2 + $0x658] sm:$0xff]
  %v1318 = vld [vmem:[#allocation2 + $0x660] sm:$0xff]
  %v1319 = vld [vmem:[#allocation2 + $0x668] sm:$0xff]
  %v1320 = vld [vmem:[#allocation2 + $0x670] sm:$0xff]
  %v1321 = vld [vmem:[#allocation2 + $0x678] sm:$0xff]
  %v1322 = vld [vmem:[#allocation2 + $0x680] sm:$0xff]
  %v1323 = vld [vmem:[#allocation2 + $0x688] sm:$0xff]
  %v1324 = vld [vmem:[#allocation2 + $0x690] sm:$0xff]
  %v1325 = vld [vmem:[#allocation2 + $0x698] sm:$0xff]
  %v1326 = vld [vmem:[#allocation2 + $0x6a0] sm:$0xff]
  %v1327 = vld [vmem:[#allocation2 + $0x6a8] sm:$0xff]
  %v1328 = vld [vmem:[#allocation2 + $0x6b0] sm:$0xff]
  %v1329 = vld [vmem:[#allocation2 + $0x6b8] sm:$0xff]
  %vm1330 = vcmask 719872
  %v1332 = vsel %vm1330, %v1113, 0
  %1334 = vmatprep.subr.mxu0 %v1115
  %1335 = vmatpush1.msra.mxu0 %v1114
  %1336 = vmatprep.subr.mxu0 %v1123
  %1337 = vmatpush1.msra.mxu0 %v1122
  %1338 = vmatprep.subr.mxu0 %v1131
  %1339 = vmatpush1.msra.mxu0 %v1130
  %1340 = vmatprep.subr.mxu0 %v1139
  %1341 = vmatpush1.msra.mxu0 %v1138
  %1342 = vmatprep.subr.mxu0 %v1147
  %1343 = vmatpush1.msra.mxu0 %v1146
  %1344 = vmatprep.subr.mxu0 %v1155
  %1345 = vmatpush1.msra.mxu0 %v1154
  %1346 = vmatprep.subr.mxu0 %v1163
  %1347 = vmatpush1.msra.mxu0 %v1162
  %1348 = vmatprep.subr.mxu0 %v1171
  %1349 = vmatpush1.msra.mxu0 %v1170
  %1350 = vmatprep.subr.mxu0 %v1179
  %1351 = vmatpush1.msra.mxu0 %v1178
  %1352 = vmatprep.subr.mxu0 %v1187
  %1353 = vmatpush1.msra.mxu0 %v1186
  %1354 = vmatprep.subr.mxu0 %v1195
  %1355 = vmatpush1.msra.mxu0 %v1194
  %1356 = vmatprep.subr.mxu0 %v1203
  %1357 = vmatpush1.msra.mxu0 %v1202
  %1358 = vmatprep.subr.mxu0 %v1211
  %1359 = vmatpush1.msra.mxu0 %v1210
  %1360 = vmatprep.subr.mxu0 %v1219
  %1361 = vmatpush1.msra.mxu0 %v1218
  %1362 = vmatprep.subr.mxu0 %v1227
  %1363 = vmatpush1.msra.mxu0 %v1226
  %1364 = vmatprep.subr.mxu0 %v1235
  %1365 = vmatpush1.msra.mxu0 %v1234
  %1366 = vmatprep.subr.mxu0 %v1243
  %1367 = vmatpush1.msra.mxu0 %v1242
  %1368 = vmatprep.subr.mxu0 %v1251
  %1369 = vmatpush1.msra.mxu0 %v1250
  %1370 = vmatprep.subr.mxu0 %v1259
  %1371 = vmatpush1.msra.mxu0 %v1258
  %1372 = vmatprep.subr.mxu0 %v1267
  %1373 = vmatpush1.msra.mxu0 %v1266
  %1374 = vmatprep.subr.mxu0 %v1275
  %1375 = vmatpush1.msra.mxu0 %v1274
  %1376 = vmatprep.subr.mxu0 %v1283
  %1377 = vmatpush1.msra.mxu0 %v1282
  %1378 = vmatprep.subr.mxu0 %v1291
  %1379 = vmatpush1.msra.mxu0 %v1290
  %1380 = vmatprep.subr.mxu0 %v1299
  %1381 = vmatpush1.msra.mxu0 %v1298
  %1382 = vmatprep.subr.mxu0 %v1307
  %1383 = vmatpush1.msra.mxu0 %v1306
  %1384 = vmatprep.subr.mxu0 %v1315
  %1385 = vmatpush1.msra.mxu0 %v1314
  %1386 = vmatprep.subr.mxu0 %v1323
  %1387 = vmatpush1.msra.mxu0 %v1322
  %1388 = vmatprep.subr.mxu0 0.0
  %1389 = vmatpush1.msra.mxu0 0.0
  %1390 = vmatprep.subr.mxu0 0.0
  %1391 = vmatpush1.msra.mxu0 0.0
  %1392 = vmatprep.subr.mxu0 0.0
  %1393 = vmatpush1.msra.mxu0 0.0
  %1394 = vmatprep.subr.mxu0 0.0
  %1395 = vmatpush1.msra.mxu0 0.0
  %1396 = vmatprep.subr.mxu0 0.0
  %1397 = vmatpush1.msra.mxu0 0.0
  %1398 = vmatprep.mubr.f32.mxu0 %v1332
  %1399 = vmatmul.mubr.f32.gmra.mrb[0].mxu0 %v1112
  %v1400 = vpop.f32.mrb[0].mxu0
  %v1401 = vadd.f32 0.0, %v1400
  %v1402 = vpop.f32.mrb[0].mxu0
  %v1403 = vadd.f32 0.0, %v1402
  %1404 = vdwg.mxu0
  %1405 = vmatprep.subr.mxu0 %v1117
  %1406 = vmatpush1.msra.mxu0 %v1116
  %1407 = vmatprep.subr.mxu0 %v1125
  %1408 = vmatpush1.msra.mxu0 %v1124
  %1409 = vmatprep.subr.mxu0 %v1133
  %1410 = vmatpush1.msra.mxu0 %v1132
  %1411 = vmatprep.subr.mxu0 %v1141
  %1412 = vmatpush1.msra.mxu0 %v1140
  %1413 = vmatprep.subr.mxu0 %v1149
  %1414 = vmatpush1.msra.mxu0 %v1148
  %1415 = vmatprep.subr.mxu0 %v1157
  %1416 = vmatpush1.msra.mxu0 %v1156
  %1417 = vmatprep.subr.mxu0 %v1165
  %1418 = vmatpush1.msra.mxu0 %v1164
  %1419 = vmatprep.subr.mxu0 %v1173
  %1420 = vmatpush1.msra.mxu0 %v1172
  %1421 = vmatprep.subr.mxu0 %v1181
  %1422 = vmatpush1.msra.mxu0 %v1180
  %1423 = vmatprep.subr.mxu0 %v1189
  %1424 = vmatpush1.msra.mxu0 %v1188
  %1425 = vmatprep.subr.mxu0 %v1197
  %1426 = vmatpush1.msra.mxu0 %v1196
  %1427 = vmatprep.subr.mxu0 %v1205
  %1428 = vmatpush1.msra.mxu0 %v1204
  %1429 = vmatprep.subr.mxu0 %v1213
  %1430 = vmatpush1.msra.mxu0 %v1212
  %1431 = vmatprep.subr.mxu0 %v1221
  %1432 = vmatpush1.msra.mxu0 %v1220
  %1433 = vmatprep.subr.mxu0 %v1229
  %1434 = vmatpush1.msra.mxu0 %v1228
  %1435 = vmatprep.subr.mxu0 %v1237
  %1436 = vmatpush1.msra.mxu0 %v1236
  %1437 = vmatprep.subr.mxu0 %v1245
  %1438 = vmatpush1.msra.mxu0 %v1244
  %1439 = vmatprep.subr.mxu0 %v1253
  %1440 = vmatpush1.msra.mxu0 %v1252
  %1441 = vmatprep.subr.mxu0 %v1261
  %1442 = vmatpush1.msra.mxu0 %v1260
  %1443 = vmatprep.subr.mxu0 %v1269
  %1444 = vmatpush1.msra.mxu0 %v1268
  %1445 = vmatprep.subr.mxu0 %v1277
  %1446 = vmatpush1.msra.mxu0 %v1276
  %1447 = vmatprep.subr.mxu0 %v1285
  %1448 = vmatpush1.msra.mxu0 %v1284
  %1449 = vmatprep.subr.mxu0 %v1293
  %1450 = vmatpush1.msra.mxu0 %v1292
  %1451 = vmatprep.subr.mxu0 %v1301
  %1452 = vmatpush1.msra.mxu0 %v1300
  %1453 = vmatprep.subr.mxu0 %v1309
  %1454 = vmatpush1.msra.mxu0 %v1308
  %1455 = vmatprep.subr.mxu0 %v1317
  %1456 = vmatpush1.msra.mxu0 %v1316
  %1457 = vmatprep.subr.mxu0 %v1325
  %1458 = vmatpush1.msra.mxu0 %v1324
  %1459 = vmatprep.subr.mxu0 0.0
  %1460 = vmatpush1.msra.mxu0 0.0
  %1461 = vmatprep.subr.mxu0 0.0
  %1462 = vmatpush1.msra.mxu0 0.0
  %1463 = vmatprep.subr.mxu0 0.0
  %1464 = vmatpush1.msra.mxu0 0.0
  %1465 = vmatprep.subr.mxu0 0.0
  %1466 = vmatpush1.msra.mxu0 0.0
  %1467 = vmatprep.subr.mxu0 0.0
  %1468 = vmatpush1.msra.mxu0 0.0
  %1469 = vmatprep.mubr.f32.mxu0 %v1332
  %1470 = vmatmul.mubr.f32.gmra.mrb[0].mxu0 %v1112
  %v1471 = vpop.f32.mrb[0].mxu0
  %v1472 = vadd.f32 0.0, %v1471
  %v1473 = vpop.f32.mrb[0].mxu0
  %v1474 = vadd.f32 0.0, %v1473
  %1475 = vdwg.mxu0
  %1476 = vmatprep.subr.mxu0 %v1119
  %1477 = vmatpush1.msra.mxu0 %v1118
  %1478 = vmatprep.subr.mxu0 %v1127
  %1479 = vmatpush1.msra.mxu0 %v1126
  %1480 = vmatprep.subr.mxu0 %v1135
  %1481 = vmatpush1.msra.mxu0 %v1134
  %1482 = vmatprep.subr.mxu0 %v1143
  %1483 = vmatpush1.msra.mxu0 %v1142
  %1484 = vmatprep.subr.mxu0 %v1151
  %1485 = vmatpush1.msra.mxu0 %v1150
  %1486 = vmatprep.subr.mxu0 %v1159
  %1487 = vmatpush1.msra.mxu0 %v1158
  %1488 = vmatprep.subr.mxu0 %v1167
  %1489 = vmatpush1.msra.mxu0 %v1166
  %1490 = vmatprep.subr.mxu0 %v1175
  %1491 = vmatpush1.msra.mxu0 %v1174
  %1492 = vmatprep.subr.mxu0 %v1183
  %1493 = vmatpush1.msra.mxu0 %v1182
  %1494 = vmatprep.subr.mxu0 %v1191
  %1495 = vmatpush1.msra.mxu0 %v1190
  %1496 = vmatprep.subr.mxu0 %v1199
  %1497 = vmatpush1.msra.mxu0 %v1198
  %1498 = vmatprep.subr.mxu0 %v1207
  %1499 = vmatpush1.msra.mxu0 %v1206
  %1500 = vmatprep.subr.mxu0 %v1215
  %1501 = vmatpush1.msra.mxu0 %v1214
  %1502 = vmatprep.subr.mxu0 %v1223
  %1503 = vmatpush1.msra.mxu0 %v1222
  %1504 = vmatprep.subr.mxu0 %v1231
  %1505 = vmatpush1.msra.mxu0 %v1230
  %1506 = vmatprep.subr.mxu0 %v1239
  %1507 = vmatpush1.msra.mxu0 %v1238
  %1508 = vmatprep.subr.mxu0 %v1247
  %1509 = vmatpush1.msra.mxu0 %v1246
  %1510 = vmatprep.subr.mxu0 %v1255
  %1511 = vmatpush1.msra.mxu0 %v1254
  %1512 = vmatprep.subr.mxu0 %v1263
  %1513 = vmatpush1.msra.mxu0 %v1262
  %1514 = vmatprep.subr.mxu0 %v1271
  %1515 = vmatpush1.msra.mxu0 %v1270
  %1516 = vmatprep.subr.mxu0 %v1279
  %1517 = vmatpush1.msra.mxu0 %v1278
  %1518 = vmatprep.subr.mxu0 %v1287
  %1519 = vmatpush1.msra.mxu0 %v1286
  %1520 = vmatprep.subr.mxu0 %v1295
  %1521 = vmatpush1.msra.mxu0 %v1294
  %1522 = vmatprep.subr.mxu0 %v1303
  %1523 = vmatpush1.msra.mxu0 %v1302
  %1524 = vmatprep.subr.mxu0 %v1311
  %1525 = vmatpush1.msra.mxu0 %v1310
  %1526 = vmatprep.subr.mxu0 %v1319
  %1527 = vmatpush1.msra.mxu0 %v1318
  %1528 = vmatprep.subr.mxu0 %v1327
  %1529 = vmatpush1.msra.mxu0 %v1326
  %1530 = vmatprep.subr.mxu0 0.0
  %1531 = vmatpush1.msra.mxu0 0.0
  %1532 = vmatprep.subr.mxu0 0.0
  %1533 = vmatpush1.msra.mxu0 0.0
  %1534 = vmatprep.subr.mxu0 0.0
  %1535 = vmatpush1.msra.mxu0 0.0
  %1536 = vmatprep.subr.mxu0 0.0
  %1537 = vmatpush1.msra.mxu0 0.0
  %1538 = vmatprep.subr.mxu0 0.0
  %1539 = vmatpush1.msra.mxu0 0.0
  %1540 = vmatprep.mubr.f32.mxu0 %v1332
  %1541 = vmatmul.mubr.f32.gmra.mrb[0].mxu0 %v1112
  %v1542 = vpop.f32.mrb[0].mxu0
  %v1543 = vadd.f32 0.0, %v1542
  %v1544 = vpop.f32.mrb[0].mxu0
  %v1545 = vadd.f32 0.0, %v1544
  %1546 = vdwg.mxu0
  %1547 = vmatprep.subr.mxu0 %v1121
  %1548 = vmatpush1.msra.mxu0 %v1120
  %1549 = vmatprep.subr.mxu0 %v1129
  %1550 = vmatpush1.msra.mxu0 %v1128
  %1551 = vmatprep.subr.mxu0 %v1137
  %1552 = vmatpush1.msra.mxu0 %v1136
  %1553 = vmatprep.subr.mxu0 %v1145
  %1554 = vmatpush1.msra.mxu0 %v1144
  %1555 = vmatprep.subr.mxu0 %v1153
  %1556 = vmatpush1.msra.mxu0 %v1152
  %1557 = vmatprep.subr.mxu0 %v1161
  %1558 = vmatpush1.msra.mxu0 %v1160
  %1559 = vmatprep.subr.mxu0 %v1169
  %1560 = vmatpush1.msra.mxu0 %v1168
  %1561 = vmatprep.subr.mxu0 %v1177
  %1562 = vmatpush1.msra.mxu0 %v1176
  %1563 = vmatprep.subr.mxu0 %v1185
  %1564 = vmatpush1.msra.mxu0 %v1184
  %1565 = vmatprep.subr.mxu0 %v1193
  %1566 = vmatpush1.msra.mxu0 %v1192
  %1567 = vmatprep.subr.mxu0 %v1201
  %1568 = vmatpush1.msra.mxu0 %v1200
  %1569 = vmatprep.subr.mxu0 %v1209
  %1570 = vmatpush1.msra.mxu0 %v1208
  %1571 = vmatprep.subr.mxu0 %v1217
  %1572 = vmatpush1.msra.mxu0 %v1216
  %1573 = vmatprep.subr.mxu0 %v1225
  %1574 = vmatpush1.msra.mxu0 %v1224
  %1575 = vmatprep.subr.mxu0 %v1233
  %1576 = vmatpush1.msra.mxu0 %v1232
  %1577 = vmatprep.subr.mxu0 %v1241
  %1578 = vmatpush1.msra.mxu0 %v1240
  %1579 = vmatprep.subr.mxu0 %v1249
  %1580 = vmatpush1.msra.mxu0 %v1248
  %1581 = vmatprep.subr.mxu0 %v1257
  %1582 = vmatpush1.msra.mxu0 %v1256
  %1583 = vmatprep.subr.mxu0 %v1265
  %1584 = vmatpush1.msra.mxu0 %v1264
  %1585 = vmatprep.subr.mxu0 %v1273
  %1586 = vmatpush1.msra.mxu0 %v1272
  %1587 = vmatprep.subr.mxu0 %v1281
  %1588 = vmatpush1.msra.mxu0 %v1280
  %1589 = vmatprep.subr.mxu0 %v1289
  %1590 = vmatpush1.msra.mxu0 %v1288
  %1591 = vmatprep.subr.mxu0 %v1297
  %1592 = vmatpush1.msra.mxu0 %v1296
  %1593 = vmatprep.subr.mxu0 %v1305
  %1594 = vmatpush1.msra.mxu0 %v1304
  %1595 = vmatprep.subr.mxu0 %v1313
  %1596 = vmatpush1.msra.mxu0 %v1312
  %1597 = vmatprep.subr.mxu0 %v1321
  %1598 = vmatpush1.msra.mxu0 %v1320
  %1599 = vmatprep.subr.mxu0 %v1329
  %1600 = vmatpush1.msra.mxu0 %v1328
  %1601 = vmatprep.subr.mxu0 0.0
  %1602 = vmatpush1.msra.mxu0 0.0
  %1603 = vmatprep.subr.mxu0 0.0
  %1604 = vmatpush1.msra.mxu0 0.0
  %1605 = vmatprep.subr.mxu0 0.0
  %1606 = vmatpush1.msra.mxu0 0.0
  %1607 = vmatprep.subr.mxu0 0.0
  %1608 = vmatpush1.msra.mxu0 0.0
  %1609 = vmatprep.subr.mxu0 0.0
  %1610 = vmatpush1.msra.mxu0 0.0
  %1611 = vmatprep.mubr.f32.mxu0 %v1332
  %1612 = vmatmul.mubr.f32.gmra.mrb[0].mxu0 %v1112
  %v1613 = vpop.f32.mrb[0].mxu0
  %v1614 = vadd.f32 0.0, %v1613
  %v1615 = vpop.f32.mrb[0].mxu0
  %v1616 = vadd.f32 0.0, %v1615
  %1617 = vdwg.mxu0
  %v1618 = vadd.f32 %v1401, %v1403
  %v1619 = vadd.f32 %v1618, %v1472
  %v1620 = vadd.f32 %v1619, %v1474
  %1621 = vadd.xlane.f32.xlu0 %v1620
  %v1622 = vpop.xlane.xlu0 %1621
  %v1623 = vmul.f32 %v1622, 0.001953125
  %v1624 = vmul.f32 %v1401, %v1401
  %v1625 = vmul.f32 %v1403, %v1403
  %v1626 = vmul.f32 %v1472, %v1472
  %v1627 = vmul.f32 %v1474, %v1474
  %v1628 = vadd.f32 %v1624, %v1625
  %v1629 = vadd.f32 %v1628, %v1626
  %v1630 = vadd.f32 %v1629, %v1627
  %1631 = vadd.xlane.f32.xlu0 %v1630
  %v1632 = vpop.xlane.xlu0 %1631
  %v1633 = vmul.f32 %v1632, 0.001953125
  %v1634 = vmul.f32 %v1623, %v1623
  %v1635 = vsub.f32 %v1633, %v1634
  %v1636 = vmax.f32 %v1635, 0.0
  %v1637 = vsub.f32 %v1401, %v1623
  %v1638 = vsub.f32 %v1403, %v1623
  %v1639 = vsub.f32 %v1472, %v1623
  %v1640 = vsub.f32 %v1474, %v1623
  %v1641 = vadd.f32 %v1636, 1e-05
  %v1642 = vrsqrt.pop %v1641
  %v1643 = vmul.f32 %v1637, %v1642
  %v1644 = vmul.f32 %v1638, %v1642
  %v1645 = vmul.f32 %v1639, %v1642
  %v1646 = vmul.f32 %v1640, %v1642
  %v1647 = vadd.f32 %v1543, %v1545
  %v1648 = vadd.f32 %v1647, %v1614
  %v1649 = vadd.f32 %v1648, %v1616
  %1650 = vadd.xlane.f32.xlu0 %v1649
  %v1651 = vpop.xlane.xlu0 %1650
  %v1652 = vmul.f32 %v1651, 0.001953125
  %v1653 = vmul.f32 %v1543, %v1543
  %v1654 = vmul.f32 %v1545, %v1545
  %v1655 = vmul.f32 %v1614, %v1614
  %v1656 = vmul.f32 %v1616, %v1616
  %v1657 = vadd.f32 %v1653, %v1654
  %v1658 = vadd.f32 %v1657, %v1655
  %v1659 = vadd.f32 %v1658, %v1656
  %1660 = vadd.xlane.f32.xlu0 %v1659
  %v1661 = vpop.xlane.xlu0 %1660
  %v1662 = vmul.f32 %v1661, 0.001953125
  %v1663 = vmul.f32 %v1652, %v1652
  %v1664 = vsub.f32 %v1662, %v1663
  %v1665 = vmax.f32 %v1664, 0.0
  %v1666 = vsub.f32 %v1543, %v1652
  %v1667 = vsub.f32 %v1545, %v1652
  %v1668 = vsub.f32 %v1614, %v1652
  %v1669 = vsub.f32 %v1616, %v1652
  %v1670 = vadd.f32 %v1665, 1e-05
  %v1671 = vrsqrt.pop %v1670
  %v1672 = vmul.f32 %v1666, %v1671
  %v1673 = vmul.f32 %v1667, %v1671
  %v1674 = vmul.f32 %v1668, %v1671
  %v1675 = vmul.f32 %v1669, %v1671
  %v1676 = vld [vmem:[%s3] sm:$0xff]
  %1678 = vset.pattern.permute.xlu0 0
  %1679 = vperm.xlu0 %1678, %v1676
  %v1680 = vpop.permute.xlu0 %1679
  %v1682 = vmul.f32 %v1643, %v1680
  %v1683 = vmul.f32 %v1644, %v1680
  %v1684 = vmul.f32 %v1645, %v1680
  %v1685 = vmul.f32 %v1646, %v1680
  %v1686 = vmul.f32 %v1672, %v1680
  %v1687 = vmul.f32 %v1673, %v1680
  %v1688 = vmul.f32 %v1674, %v1680
  %v1689 = vmul.f32 %v1675, %v1680
  %v1690 = vld [vmem:[%s4] sm:$0xff]
  %1692 = vset.pattern.permute.xlu0 0
  %1693 = vperm.xlu0 %1692, %v1690
  %v1694 = vpop.permute.xlu0 %1693
  %v1696 = vadd.f32 %v1682, %v1694
  %v1697 = vadd.f32 %v1683, %v1694
  %v1698 = vadd.f32 %v1684, %v1694
  %v1699 = vadd.f32 %v1685, %v1694
  %v1700 = vadd.f32 %v1686, %v1694
  %v1701 = vadd.f32 %v1687, %v1694
  %v1702 = vadd.f32 %v1688, %v1694
  %v1703 = vadd.f32 %v1689, %v1694
  %v1704 = vmax.f32 %v1696, 0.0
  %v1705 = vmax.f32 %v1697, 0.0
  %v1706 = vmax.f32 %v1698, 0.0
  %v1707 = vmax.f32 %v1699, 0.0
  %v1708 = vmax.f32 %v1700, 0.0
  %v1709 = vmax.f32 %v1701, 0.0
  %v1710 = vmax.f32 %v1702, 0.0
  %v1711 = vmax.f32 %v1703, 0.0
  %1712 = vrot.lane.b32.xlu0 %v1704, 73
  %v1713 = vpop.permute.xlu0 %1712
  %1714 = vrot.lane.b32.xlu0 %v1705, 73
  %v1715 = vpop.permute.xlu0 %1714
  %1716 = vrot.lane.b32.xlu0 %v1706, 73
  %v1717 = vpop.permute.xlu0 %1716
  %1718 = vrot.lane.b32.xlu0 %v1707, 73
  %v1719 = vpop.permute.xlu0 %1718
  %1720 = vrot.lane.b32.xlu0 %v1708, 73
  %v1721 = vpop.permute.xlu0 %1720
  %1722 = vrot.lane.b32.xlu0 %v1709, 73
  %v1723 = vpop.permute.xlu0 %1722
  %1724 = vrot.lane.b32.xlu0 %v1710, 73
  %v1725 = vpop.permute.xlu0 %1724
  %1726 = vrot.lane.b32.xlu0 %v1711, 73
  %v1727 = vpop.permute.xlu0 %1726
  %v1728 = vsel %vm55, %v1725, %v1727
  %v1729 = vsel %vm55, %v1723, %v1725
  %v1730 = vsel %vm55, %v1721, %v1723
  %v1731 = vsel %vm55, %v1719, %v1721
  %v1732 = vsel %vm55, %v1717, %v1719
  %v1733 = vsel %vm55, %v1715, %v1717
  %v1734 = vsel %vm55, %v1713, %v1715
  %v1735 = vsel %vm55, %v1727, %v1713
  %v1736 = vld [vmem:[%s1] sm:$0xff]
  %v1737 = vld [vmem:[%s1 + $0x8] sm:$0xff]
  %v1738 = vld [vmem:[%s1 + $0x10] sm:$0xff]
  %v1739 = vld [vmem:[%s1 + $0x18] sm:$0xff]
  %v1740 = vld [vmem:[%s1 + $0x20] sm:$0xff]
  %v1741 = vld [vmem:[%s1 + $0x28] sm:$0xff]
  %v1742 = vld [vmem:[%s1 + $0x30] sm:$0xff]
  %v1743 = vld [vmem:[%s1 + $0x38] sm:$0xff]
  %v1744 = vmul.f32 %v1735, %v1736
  %v1745 = vmul.f32 %v1734, %v1737
  %v1746 = vmul.f32 %v1733, %v1738
  %v1747 = vmul.f32 %v1732, %v1739
  %v1748 = vmul.f32 %v1731, %v1740
  %v1749 = vmul.f32 %v1730, %v1741
  %v1750 = vmul.f32 %v1729, %v1742
  %v1751 = vmul.f32 %v1728, %v1743
  %1752 = vst [vmem:[#allocation2] sm:$0xff] %v1744
  %1753 = vst [vmem:[#allocation2 + $0x8] sm:$0xff] %v1745
  %1754 = vst [vmem:[#allocation2 + $0x10] sm:$0xff] %v1746
  %1755 = vst [vmem:[#allocation2 + $0x18] sm:$0xff] %v1747
  %1756 = vst [vmem:[#allocation2 + $0x20] sm:$0xff] %v1748
  %1757 = vst [vmem:[#allocation2 + $0x28] sm:$0xff] %v1749
  %1758 = vst [vmem:[#allocation2 + $0x30] sm:$0xff] %v1750
  %1759 = vst [vmem:[#allocation2 + $0x38] sm:$0xff] %v1751
  %1760 = vrot.lane.b32.xlu0 %v1704, 72
  %v1761 = vpop.permute.xlu0 %1760
  %1762 = vrot.lane.b32.xlu0 %v1705, 72
  %v1763 = vpop.permute.xlu0 %1762
  %1764 = vrot.lane.b32.xlu0 %v1706, 72
  %v1765 = vpop.permute.xlu0 %1764
  %1766 = vrot.lane.b32.xlu0 %v1707, 72
  %v1767 = vpop.permute.xlu0 %1766
  %1768 = vrot.lane.b32.xlu0 %v1708, 72
  %v1769 = vpop.permute.xlu0 %1768
  %1770 = vrot.lane.b32.xlu0 %v1709, 72
  %v1771 = vpop.permute.xlu0 %1770
  %1772 = vrot.lane.b32.xlu0 %v1710, 72
  %v1773 = vpop.permute.xlu0 %1772
  %1774 = vrot.lane.b32.xlu0 %v1711, 72
  %v1775 = vpop.permute.xlu0 %1774
  %v1776 = vsel %vm104, %v1773, %v1775
  %v1777 = vsel %vm104, %v1771, %v1773
  %v1778 = vsel %vm104, %v1769, %v1771
  %v1779 = vsel %vm104, %v1767, %v1769
  %v1780 = vsel %vm104, %v1765, %v1767
  %v1781 = vsel %vm104, %v1763, %v1765
  %v1782 = vsel %vm104, %v1761, %v1763
  %v1783 = vsel %vm104, %v1775, %v1761
  %v1784 = vld [vmem:[%s1 + $0x40] sm:$0xff]
  %v1785 = vld [vmem:[%s1 + $0x48] sm:$0xff]
  %v1786 = vld [vmem:[%s1 + $0x50] sm:$0xff]
  %v1787 = vld [vmem:[%s1 + $0x58] sm:$0xff]
  %v1788 = vld [vmem:[%s1 + $0x60] sm:$0xff]
  %v1789 = vld [vmem:[%s1 + $0x68] sm:$0xff]
  %v1790 = vld [vmem:[%s1 + $0x70] sm:$0xff]
  %v1791 = vld [vmem:[%s1 + $0x78] sm:$0xff]
  %v1792 = vmul.f32 %v1783, %v1784
  %v1793 = vmul.f32 %v1782, %v1785
  %v1794 = vmul.f32 %v1781, %v1786
  %v1795 = vmul.f32 %v1780, %v1787
  %v1796 = vmul.f32 %v1779, %v1788
  %v1797 = vmul.f32 %v1778, %v1789
  %v1798 = vmul.f32 %v1777, %v1790
  %v1799 = vmul.f32 %v1776, %v1791
  %1800 = vst [vmem:[#allocation2 + $0x40] sm:$0xff] %v1792
  %1801 = vst [vmem:[#allocation2 + $0x48] sm:$0xff] %v1793
  %1802 = vst [vmem:[#allocation2 + $0x50] sm:$0xff] %v1794
  %1803 = vst [vmem:[#allocation2 + $0x58] sm:$0xff] %v1795
  %1804 = vst [vmem:[#allocation2 + $0x60] sm:$0xff] %v1796
  %1805 = vst [vmem:[#allocation2 + $0x68] sm:$0xff] %v1797
  %1806 = vst [vmem:[#allocation2 + $0x70] sm:$0xff] %v1798
  %1807 = vst [vmem:[#allocation2 + $0x78] sm:$0xff] %v1799
  %1808 = vrot.lane.b32.xlu0 %v1704, 71
  %v1809 = vpop.permute.xlu0 %1808
  %1810 = vrot.lane.b32.xlu0 %v1705, 71
  %v1811 = vpop.permute.xlu0 %1810
  %1812 = vrot.lane.b32.xlu0 %v1706, 71
  %v1813 = vpop.permute.xlu0 %1812
  %1814 = vrot.lane.b32.xlu0 %v1707, 71
  %v1815 = vpop.permute.xlu0 %1814
  %1816 = vrot.lane.b32.xlu0 %v1708, 71
  %v1817 = vpop.permute.xlu0 %1816
  %1818 = vrot.lane.b32.xlu0 %v1709, 71
  %v1819 = vpop.permute.xlu0 %1818
  %1820 = vrot.lane.b32.xlu0 %v1710, 71
  %v1821 = vpop.permute.xlu0 %1820
  %1822 = vrot.lane.b32.xlu0 %v1711, 71
  %v1823 = vpop.permute.xlu0 %1822
  %v1824 = vsel %vm153, %v1821, %v1823
  %v1825 = vsel %vm153, %v1819, %v1821
  %v1826 = vsel %vm153, %v1817, %v1819
  %v1827 = vsel %vm153, %v1815, %v1817
  %v1828 = vsel %vm153, %v1813, %v1815
  %v1829 = vsel %vm153, %v1811, %v1813
  %v1830 = vsel %vm153, %v1809, %v1811
  %v1831 = vsel %vm153, %v1823, %v1809
  %v1832 = vld [vmem:[%s1 + $0x80] sm:$0xff]
  %v1833 = vld [vmem:[%s1 + $0x88] sm:$0xff]
  %v1834 = vld [vmem:[%s1 + $0x90] sm:$0xff]
  %v1835 = vld [vmem:[%s1 + $0x98] sm:$0xff]
  %v1836 = vld [vmem:[%s1 + $0xa0] sm:$0xff]
  %v1837 = vld [vmem:[%s1 + $0xa8] sm:$0xff]
  %v1838 = vld [vmem:[%s1 + $0xb0] sm:$0xff]
  %v1839 = vld [vmem:[%s1 + $0xb8] sm:$0xff]
  %v1840 = vmul.f32 %v1831, %v1832
  %v1841 = vmul.f32 %v1830, %v1833
  %v1842 = vmul.f32 %v1829, %v1834
  %v1843 = vmul.f32 %v1828, %v1835
  %v1844 = vmul.f32 %v1827, %v1836
  %v1845 = vmul.f32 %v1826, %v1837
  %v1846 = vmul.f32 %v1825, %v1838
  %v1847 = vmul.f32 %v1824, %v1839
  %1848 = vst [vmem:[#allocation2 + $0x80] sm:$0xff] %v1840
  %1849 = vst [vmem:[#allocation2 + $0x88] sm:$0xff] %v1841
  %1850 = vst [vmem:[#allocation2 + $0x90] sm:$0xff] %v1842
  %1851 = vst [vmem:[#allocation2 + $0x98] sm:$0xff] %v1843
  %1852 = vst [vmem:[#allocation2 + $0xa0] sm:$0xff] %v1844
  %1853 = vst [vmem:[#allocation2 + $0xa8] sm:$0xff] %v1845
  %1854 = vst [vmem:[#allocation2 + $0xb0] sm:$0xff] %v1846
  %1855 = vst [vmem:[#allocation2 + $0xb8] sm:$0xff] %v1847
  %1856 = vrot.lane.b32.xlu0 %v1704, 65
  %v1857 = vpop.permute.xlu0 %1856
  %1858 = vrot.lane.b32.xlu0 %v1705, 65
  %v1859 = vpop.permute.xlu0 %1858
  %1860 = vrot.lane.b32.xlu0 %v1706, 65
  %v1861 = vpop.permute.xlu0 %1860
  %1862 = vrot.lane.b32.xlu0 %v1707, 65
  %v1863 = vpop.permute.xlu0 %1862
  %1864 = vrot.lane.b32.xlu0 %v1708, 65
  %v1865 = vpop.permute.xlu0 %1864
  %1866 = vrot.lane.b32.xlu0 %v1709, 65
  %v1867 = vpop.permute.xlu0 %1866
  %1868 = vrot.lane.b32.xlu0 %v1710, 65
  %v1869 = vpop.permute.xlu0 %1868
  %1870 = vrot.lane.b32.xlu0 %v1711, 65
  %v1871 = vpop.permute.xlu0 %1870
  %v1872 = vsel %vm202, %v1869, %v1871
  %v1873 = vsel %vm202, %v1867, %v1869
  %v1874 = vsel %vm202, %v1865, %v1867
  %v1875 = vsel %vm202, %v1863, %v1865
  %v1876 = vsel %vm202, %v1861, %v1863
  %v1877 = vsel %vm202, %v1859, %v1861
  %v1878 = vsel %vm202, %v1857, %v1859
  %v1879 = vsel %vm202, %v1871, %v1857
  %v1880 = vld [vmem:[%s1 + $0xc0] sm:$0xff]
  %v1881 = vld [vmem:[%s1 + $0xc8] sm:$0xff]
  %v1882 = vld [vmem:[%s1 + $0xd0] sm:$0xff]
  %v1883 = vld [vmem:[%s1 + $0xd8] sm:$0xff]
  %v1884 = vld [vmem:[%s1 + $0xe0] sm:$0xff]
  %v1885 = vld [vmem:[%s1 + $0xe8] sm:$0xff]
  %v1886 = vld [vmem:[%s1 + $0xf0] sm:$0xff]
  %v1887 = vld [vmem:[%s1 + $0xf8] sm:$0xff]
  %v1888 = vmul.f32 %v1879, %v1880
  %v1889 = vmul.f32 %v1878, %v1881
  %v1890 = vmul.f32 %v1877, %v1882
  %v1891 = vmul.f32 %v1876, %v1883
  %v1892 = vmul.f32 %v1875, %v1884
  %v1893 = vmul.f32 %v1874, %v1885
  %v1894 = vmul.f32 %v1873, %v1886
  %v1895 = vmul.f32 %v1872, %v1887
  %1896 = vst [vmem:[#allocation2 + $0xc0] sm:$0xff] %v1888
  %1897 = vst [vmem:[#allocation2 + $0xc8] sm:$0xff] %v1889
  %1898 = vst [vmem:[#allocation2 + $0xd0] sm:$0xff] %v1890
  %1899 = vst [vmem:[#allocation2 + $0xd8] sm:$0xff] %v1891
  %1900 = vst [vmem:[#allocation2 + $0xe0] sm:$0xff] %v1892
  %1901 = vst [vmem:[#allocation2 + $0xe8] sm:$0xff] %v1893
  %1902 = vst [vmem:[#allocation2 + $0xf0] sm:$0xff] %v1894
  %1903 = vst [vmem:[#allocation2 + $0xf8] sm:$0xff] %v1895
  %1904 = vrot.lane.b32.xlu0 %v1704, 64
  %v1905 = vpop.permute.xlu0 %1904
  %1906 = vrot.lane.b32.xlu0 %v1705, 64
  %v1907 = vpop.permute.xlu0 %1906
  %1908 = vrot.lane.b32.xlu0 %v1706, 64
  %v1909 = vpop.permute.xlu0 %1908
  %1910 = vrot.lane.b32.xlu0 %v1707, 64
  %v1911 = vpop.permute.xlu0 %1910
  %1912 = vrot.lane.b32.xlu0 %v1708, 64
  %v1913 = vpop.permute.xlu0 %1912
  %1914 = vrot.lane.b32.xlu0 %v1709, 64
  %v1915 = vpop.permute.xlu0 %1914
  %1916 = vrot.lane.b32.xlu0 %v1710, 64
  %v1917 = vpop.permute.xlu0 %1916
  %1918 = vrot.lane.b32.xlu0 %v1711, 64
  %v1919 = vpop.permute.xlu0 %1918
  %v1920 = vsel %vm251, %v1917, %v1919
  %v1921 = vsel %vm251, %v1915, %v1917
  %v1922 = vsel %vm251, %v1913, %v1915
  %v1923 = vsel %vm251, %v1911, %v1913
  %v1924 = vsel %vm251, %v1909, %v1911
  %v1925 = vsel %vm251, %v1907, %v1909
  %v1926 = vsel %vm251, %v1905, %v1907
  %v1927 = vsel %vm251, %v1919, %v1905
  %v1928 = vld [vmem:[%s1 + $0x100] sm:$0xff]
  %v1929 = vld [vmem:[%s1 + $0x108] sm:$0xff]
  %v1930 = vld [vmem:[%s1 + $0x110] sm:$0xff]
  %v1931 = vld [vmem:[%s1 + $0x118] sm:$0xff]
  %v1932 = vld [vmem:[%s1 + $0x120] sm:$0xff]
  %v1933 = vld [vmem:[%s1 + $0x128] sm:$0xff]
  %v1934 = vld [vmem:[%s1 + $0x130] sm:$0xff]
  %v1935 = vld [vmem:[%s1 + $0x138] sm:$0xff]
  %v1936 = vmul.f32 %v1927, %v1928
  %v1937 = vmul.f32 %v1926, %v1929
  %v1938 = vmul.f32 %v1925, %v1930
  %v1939 = vmul.f32 %v1924, %v1931
  %v1940 = vmul.f32 %v1923, %v1932
  %v1941 = vmul.f32 %v1922, %v1933
  %v1942 = vmul.f32 %v1921, %v1934
  %v1943 = vmul.f32 %v1920, %v1935
  %1944 = vst [vmem:[#allocation2 + $0x100] sm:$0xff] %v1936
  %1945 = vst [vmem:[#allocation2 + $0x108] sm:$0xff] %v1937
  %1946 = vst [vmem:[#allocation2 + $0x110] sm:$0xff] %v1938
  %1947 = vst [vmem:[#allocation2 + $0x118] sm:$0xff] %v1939
  %1948 = vst [vmem:[#allocation2 + $0x120] sm:$0xff] %v1940
  %1949 = vst [vmem:[#allocation2 + $0x128] sm:$0xff] %v1941
  %1950 = vst [vmem:[#allocation2 + $0x130] sm:$0xff] %v1942
  %1951 = vst [vmem:[#allocation2 + $0x138] sm:$0xff] %v1943
  %1952 = vrot.lane.b32.xlu0 %v1704, 63
  %v1953 = vpop.permute.xlu0 %1952
  %1954 = vrot.lane.b32.xlu0 %v1705, 63
  %v1955 = vpop.permute.xlu0 %1954
  %1956 = vrot.lane.b32.xlu0 %v1706, 63
  %v1957 = vpop.permute.xlu0 %1956
  %1958 = vrot.lane.b32.xlu0 %v1707, 63
  %v1959 = vpop.permute.xlu0 %1958
  %1960 = vrot.lane.b32.xlu0 %v1708, 63
  %v1961 = vpop.permute.xlu0 %1960
  %1962 = vrot.lane.b32.xlu0 %v1709, 63
  %v1963 = vpop.permute.xlu0 %1962
  %1964 = vrot.lane.b32.xlu0 %v1710, 63
  %v1965 = vpop.permute.xlu0 %1964
  %1966 = vrot.lane.b32.xlu0 %v1711, 63
  %v1967 = vpop.permute.xlu0 %1966
  %v1968 = vsel %vm300, %v1965, %v1967
  %v1969 = vsel %vm300, %v1963, %v1965
  %v1970 = vsel %vm300, %v1961, %v1963
  %v1971 = vsel %vm300, %v1959, %v1961
  %v1972 = vsel %vm300, %v1957, %v1959
  %v1973 = vsel %vm300, %v1955, %v1957
  %v1974 = vsel %vm300, %v1953, %v1955
  %v1975 = vsel %vm300, %v1967, %v1953
  %v1976 = vld [vmem:[%s1 + $0x140] sm:$0xff]
  %v1977 = vld [vmem:[%s1 + $0x148] sm:$0xff]
  %v1978 = vld [vmem:[%s1 + $0x150] sm:$0xff]
  %v1979 = vld [vmem:[%s1 + $0x158] sm:$0xff]
  %v1980 = vld [vmem:[%s1 + $0x160] sm:$0xff]
  %v1981 = vld [vmem:[%s1 + $0x168] sm:$0xff]
  %v1982 = vld [vmem:[%s1 + $0x170] sm:$0xff]
  %v1983 = vld [vmem:[%s1 + $0x178] sm:$0xff]
  %v1984 = vmul.f32 %v1975, %v1976
  %v1985 = vmul.f32 %v1974, %v1977
  %v1986 = vmul.f32 %v1973, %v1978
  %v1987 = vmul.f32 %v1972, %v1979
  %v1988 = vmul.f32 %v1971, %v1980
  %v1989 = vmul.f32 %v1970, %v1981
  %v1990 = vmul.f32 %v1969, %v1982
  %v1991 = vmul.f32 %v1968, %v1983
  %1992 = vst [vmem:[#allocation2 + $0x140] sm:$0xff] %v1984
  %1993 = vst [vmem:[#allocation2 + $0x148] sm:$0xff] %v1985
  %1994 = vst [vmem:[#allocation2 + $0x150] sm:$0xff] %v1986
  %1995 = vst [vmem:[#allocation2 + $0x158] sm:$0xff] %v1987
  %1996 = vst [vmem:[#allocation2 + $0x160] sm:$0xff] %v1988
  %1997 = vst [vmem:[#allocation2 + $0x168] sm:$0xff] %v1989
  %1998 = vst [vmem:[#allocation2 + $0x170] sm:$0xff] %v1990
  %1999 = vst [vmem:[#allocation2 + $0x178] sm:$0xff] %v1991
  %2000 = vrot.lane.b32.xlu0 %v1704, 57
  %v2001 = vpop.permute.xlu0 %2000
  %2002 = vrot.lane.b32.xlu0 %v1705, 57
  %v2003 = vpop.permute.xlu0 %2002
  %2004 = vrot.lane.b32.xlu0 %v1706, 57
  %v2005 = vpop.permute.xlu0 %2004
  %2006 = vrot.lane.b32.xlu0 %v1707, 57
  %v2007 = vpop.permute.xlu0 %2006
  %2008 = vrot.lane.b32.xlu0 %v1708, 57
  %v2009 = vpop.permute.xlu0 %2008
  %2010 = vrot.lane.b32.xlu0 %v1709, 57
  %v2011 = vpop.permute.xlu0 %2010
  %2012 = vrot.lane.b32.xlu0 %v1710, 57
  %v2013 = vpop.permute.xlu0 %2012
  %2014 = vrot.lane.b32.xlu0 %v1711, 57
  %v2015 = vpop.permute.xlu0 %2014
  %v2016 = vsel %vm349, %v2013, %v2015
  %v2017 = vsel %vm349, %v2011, %v2013
  %v2018 = vsel %vm349, %v2009, %v2011
  %v2019 = vsel %vm349, %v2007, %v2009
  %v2020 = vsel %vm349, %v2005, %v2007
  %v2021 = vsel %vm349, %v2003, %v2005
  %v2022 = vsel %vm349, %v2001, %v2003
  %v2023 = vsel %vm349, %v2015, %v2001
  %v2024 = vld [vmem:[%s1 + $0x180] sm:$0xff]
  %v2025 = vld [vmem:[%s1 + $0x188] sm:$0xff]
  %v2026 = vld [vmem:[%s1 + $0x190] sm:$0xff]
  %v2027 = vld [vmem:[%s1 + $0x198] sm:$0xff]
  %v2028 = vld [vmem:[%s1 + $0x1a0] sm:$0xff]
  %v2029 = vld [vmem:[%s1 + $0x1a8] sm:$0xff]
  %v2030 = vld [vmem:[%s1 + $0x1b0] sm:$0xff]
  %v2031 = vld [vmem:[%s1 + $0x1b8] sm:$0xff]
  %v2032 = vmul.f32 %v2023, %v2024
  %v2033 = vmul.f32 %v2022, %v2025
  %v2034 = vmul.f32 %v2021, %v2026
  %v2035 = vmul.f32 %v2020, %v2027
  %v2036 = vmul.f32 %v2019, %v2028
  %v2037 = vmul.f32 %v2018, %v2029
  %v2038 = vmul.f32 %v2017, %v2030
  %v2039 = vmul.f32 %v2016, %v2031
  %2040 = vst [vmem:[#allocation2 + $0x180] sm:$0xff] %v2032
  %2041 = vst [vmem:[#allocation2 + $0x188] sm:$0xff] %v2033
  %2042 = vst [vmem:[#allocation2 + $0x190] sm:$0xff] %v2034
  %2043 = vst [vmem:[#allocation2 + $0x198] sm:$0xff] %v2035
  %2044 = vst [vmem:[#allocation2 + $0x1a0] sm:$0xff] %v2036
  %2045 = vst [vmem:[#allocation2 + $0x1a8] sm:$0xff] %v2037
  %2046 = vst [vmem:[#allocation2 + $0x1b0] sm:$0xff] %v2038
  %2047 = vst [vmem:[#allocation2 + $0x1b8] sm:$0xff] %v2039
  %2048 = vrot.lane.b32.xlu0 %v1704, 56
  %v2049 = vpop.permute.xlu0 %2048
  %2050 = vrot.lane.b32.xlu0 %v1705, 56
  %v2051 = vpop.permute.xlu0 %2050
  %2052 = vrot.lane.b32.xlu0 %v1706, 56
  %v2053 = vpop.permute.xlu0 %2052
  %2054 = vrot.lane.b32.xlu0 %v1707, 56
  %v2055 = vpop.permute.xlu0 %2054
  %2056 = vrot.lane.b32.xlu0 %v1708, 56
  %v2057 = vpop.permute.xlu0 %2056
  %2058 = vrot.lane.b32.xlu0 %v1709, 56
  %v2059 = vpop.permute.xlu0 %2058
  %2060 = vrot.lane.b32.xlu0 %v1710, 56
  %v2061 = vpop.permute.xlu0 %2060
  %2062 = vrot.lane.b32.xlu0 %v1711, 56
  %v2063 = vpop.permute.xlu0 %2062
  %v2064 = vsel %vm398, %v2061, %v2063
  %v2065 = vsel %vm398, %v2059, %v2061
  %v2066 = vsel %vm398, %v2057, %v2059
  %v2067 = vsel %vm398, %v2055, %v2057
  %v2068 = vsel %vm398, %v2053, %v2055
  %v2069 = vsel %vm398, %v2051, %v2053
  %v2070 = vsel %vm398, %v2049, %v2051
  %v2071 = vsel %vm398, %v2063, %v2049
  %v2072 = vld [vmem:[%s1 + $0x1c0] sm:$0xff]
  %v2073 = vld [vmem:[%s1 + $0x1c8] sm:$0xff]
  %v2074 = vld [vmem:[%s1 + $0x1d0] sm:$0xff]
  %v2075 = vld [vmem:[%s1 + $0x1d8] sm:$0xff]
  %v2076 = vld [vmem:[%s1 + $0x1e0] sm:$0xff]
  %v2077 = vld [vmem:[%s1 + $0x1e8] sm:$0xff]
  %v2078 = vld [vmem:[%s1 + $0x1f0] sm:$0xff]
  %v2079 = vld [vmem:[%s1 + $0x1f8] sm:$0xff]
  %v2080 = vmul.f32 %v2071, %v2072
  %v2081 = vmul.f32 %v2070, %v2073
  %v2082 = vmul.f32 %v2069, %v2074
  %v2083 = vmul.f32 %v2068, %v2075
  %v2084 = vmul.f32 %v2067, %v2076
  %v2085 = vmul.f32 %v2066, %v2077
  %v2086 = vmul.f32 %v2065, %v2078
  %v2087 = vmul.f32 %v2064, %v2079
  %2088 = vst [vmem:[#allocation2 + $0x1c0] sm:$0xff] %v2080
  %2089 = vst [vmem:[#allocation2 + $0x1c8] sm:$0xff] %v2081
  %2090 = vst [vmem:[#allocation2 + $0x1d0] sm:$0xff] %v2082
  %2091 = vst [vmem:[#allocation2 + $0x1d8] sm:$0xff] %v2083
  %2092 = vst [vmem:[#allocation2 + $0x1e0] sm:$0xff] %v2084
  %2093 = vst [vmem:[#allocation2 + $0x1e8] sm:$0xff] %v2085
  %2094 = vst [vmem:[#allocation2 + $0x1f0] sm:$0xff] %v2086
  %2095 = vst [vmem:[#allocation2 + $0x1f8] sm:$0xff] %v2087
  %2096 = vrot.lane.b32.xlu0 %v1704, 55
  %v2097 = vpop.permute.xlu0 %2096
  %2098 = vrot.lane.b32.xlu0 %v1705, 55
  %v2099 = vpop.permute.xlu0 %2098
  %2100 = vrot.lane.b32.xlu0 %v1706, 55
  %v2101 = vpop.permute.xlu0 %2100
  %2102 = vrot.lane.b32.xlu0 %v1707, 55
  %v2103 = vpop.permute.xlu0 %2102
  %2104 = vrot.lane.b32.xlu0 %v1708, 55
  %v2105 = vpop.permute.xlu0 %2104
  %2106 = vrot.lane.b32.xlu0 %v1709, 55
  %v2107 = vpop.permute.xlu0 %2106
  %2108 = vrot.lane.b32.xlu0 %v1710, 55
  %v2109 = vpop.permute.xlu0 %2108
  %2110 = vrot.lane.b32.xlu0 %v1711, 55
  %v2111 = vpop.permute.xlu0 %2110
  %v2112 = vsel %vm447, %v2109, %v2111
  %v2113 = vsel %vm447, %v2107, %v2109
  %v2114 = vsel %vm447, %v2105, %v2107
  %v2115 = vsel %vm447, %v2103, %v2105
  %v2116 = vsel %vm447, %v2101, %v2103
  %v2117 = vsel %vm447, %v2099, %v2101
  %v2118 = vsel %vm447, %v2097, %v2099
  %v2119 = vsel %vm447, %v2111, %v2097
  %v2120 = vld [vmem:[%s1 + $0x200] sm:$0xff]
  %v2121 = vld [vmem:[%s1 + $0x208] sm:$0xff]
  %v2122 = vld [vmem:[%s1 + $0x210] sm:$0xff]
  %v2123 = vld [vmem:[%s1 + $0x218] sm:$0xff]
  %v2124 = vld [vmem:[%s1 + $0x220] sm:$0xff]
  %v2125 = vld [vmem:[%s1 + $0x228] sm:$0xff]
  %v2126 = vld [vmem:[%s1 + $0x230] sm:$0xff]
  %v2127 = vld [vmem:[%s1 + $0x238] sm:$0xff]
  %v2128 = vmul.f32 %v2119, %v2120
  %v2129 = vmul.f32 %v2118, %v2121
  %v2130 = vmul.f32 %v2117, %v2122
  %v2131 = vmul.f32 %v2116, %v2123
  %v2132 = vmul.f32 %v2115, %v2124
  %v2133 = vmul.f32 %v2114, %v2125
  %v2134 = vmul.f32 %v2113, %v2126
  %v2135 = vmul.f32 %v2112, %v2127
  %2136 = vst [vmem:[#allocation2 + $0x200] sm:$0xff] %v2128
  %2137 = vst [vmem:[#allocation2 + $0x208] sm:$0xff] %v2129
  %2138 = vst [vmem:[#allocation2 + $0x210] sm:$0xff] %v2130
  %2139 = vst [vmem:[#allocation2 + $0x218] sm:$0xff] %v2131
  %2140 = vst [vmem:[#allocation2 + $0x220] sm:$0xff] %v2132
  %2141 = vst [vmem:[#allocation2 + $0x228] sm:$0xff] %v2133
  %2142 = vst [vmem:[#allocation2 + $0x230] sm:$0xff] %v2134
  %2143 = vst [vmem:[#allocation2 + $0x238] sm:$0xff] %v2135
  %2144 = vrot.lane.b32.xlu0 %v1704, 9
  %v2145 = vpop.permute.xlu0 %2144
  %2146 = vrot.lane.b32.xlu0 %v1705, 9
  %v2147 = vpop.permute.xlu0 %2146
  %2148 = vrot.lane.b32.xlu0 %v1706, 9
  %v2149 = vpop.permute.xlu0 %2148
  %2150 = vrot.lane.b32.xlu0 %v1707, 9
  %v2151 = vpop.permute.xlu0 %2150
  %2152 = vrot.lane.b32.xlu0 %v1708, 9
  %v2153 = vpop.permute.xlu0 %2152
  %2154 = vrot.lane.b32.xlu0 %v1709, 9
  %v2155 = vpop.permute.xlu0 %2154
  %2156 = vrot.lane.b32.xlu0 %v1710, 9
  %v2157 = vpop.permute.xlu0 %2156
  %2158 = vrot.lane.b32.xlu0 %v1711, 9
  %v2159 = vpop.permute.xlu0 %2158
  %v2160 = vsel %vm496, %v2157, %v2159
  %v2161 = vsel %vm496, %v2155, %v2157
  %v2162 = vsel %vm496, %v2153, %v2155
  %v2163 = vsel %vm496, %v2151, %v2153
  %v2164 = vsel %vm496, %v2149, %v2151
  %v2165 = vsel %vm496, %v2147, %v2149
  %v2166 = vsel %vm496, %v2145, %v2147
  %v2167 = vsel %vm496, %v2159, %v2145
  %v2168 = vld [vmem:[%s1 + $0x240] sm:$0xff]
  %v2169 = vld [vmem:[%s1 + $0x248] sm:$0xff]
  %v2170 = vld [vmem:[%s1 + $0x250] sm:$0xff]
  %v2171 = vld [vmem:[%s1 + $0x258] sm:$0xff]
  %v2172 = vld [vmem:[%s1 + $0x260] sm:$0xff]
  %v2173 = vld [vmem:[%s1 + $0x268] sm:$0xff]
  %v2174 = vld [vmem:[%s1 + $0x270] sm:$0xff]
  %v2175 = vld [vmem:[%s1 + $0x278] sm:$0xff]
  %v2176 = vmul.f32 %v2167, %v2168
  %v2177 = vmul.f32 %v2166, %v2169
  %v2178 = vmul.f32 %v2165, %v2170
  %v2179 = vmul.f32 %v2164, %v2171
  %v2180 = vmul.f32 %v2163, %v2172
  %v2181 = vmul.f32 %v2162, %v2173
  %v2182 = vmul.f32 %v2161, %v2174
  %v2183 = vmul.f32 %v2160, %v2175
  %2184 = vst [vmem:[#allocation2 + $0x240] sm:$0xff] %v2176
  %2185 = vst [vmem:[#allocation2 + $0x248] sm:$0xff] %v2177
  %2186 = vst [vmem:[#allocation2 + $0x250] sm:$0xff] %v2178
  %2187 = vst [vmem:[#allocation2 + $0x258] sm:$0xff] %v2179
  %2188 = vst [vmem:[#allocation2 + $0x260] sm:$0xff] %v2180
  %2189 = vst [vmem:[#allocation2 + $0x268] sm:$0xff] %v2181
  %2190 = vst [vmem:[#allocation2 + $0x270] sm:$0xff] %v2182
  %2191 = vst [vmem:[#allocation2 + $0x278] sm:$0xff] %v2183
  %2192 = vrot.lane.b32.xlu0 %v1704, 8
  %v2193 = vpop.permute.xlu0 %2192
  %2194 = vrot.lane.b32.xlu0 %v1705, 8
  %v2195 = vpop.permute.xlu0 %2194
  %2196 = vrot.lane.b32.xlu0 %v1706, 8
  %v2197 = vpop.permute.xlu0 %2196
  %2198 = vrot.lane.b32.xlu0 %v1707, 8
  %v2199 = vpop.permute.xlu0 %2198
  %2200 = vrot.lane.b32.xlu0 %v1708, 8
  %v2201 = vpop.permute.xlu0 %2200
  %2202 = vrot.lane.b32.xlu0 %v1709, 8
  %v2203 = vpop.permute.xlu0 %2202
  %2204 = vrot.lane.b32.xlu0 %v1710, 8
  %v2205 = vpop.permute.xlu0 %2204
  %2206 = vrot.lane.b32.xlu0 %v1711, 8
  %v2207 = vpop.permute.xlu0 %2206
  %v2208 = vsel %vm545, %v2205, %v2207
  %v2209 = vsel %vm545, %v2203, %v2205
  %v2210 = vsel %vm545, %v2201, %v2203
  %v2211 = vsel %vm545, %v2199, %v2201
  %v2212 = vsel %vm545, %v2197, %v2199
  %v2213 = vsel %vm545, %v2195, %v2197
  %v2214 = vsel %vm545, %v2193, %v2195
  %v2215 = vsel %vm545, %v2207, %v2193
  %v2216 = vld [vmem:[%s1 + $0x280] sm:$0xff]
  %v2217 = vld [vmem:[%s1 + $0x288] sm:$0xff]
  %v2218 = vld [vmem:[%s1 + $0x290] sm:$0xff]
  %v2219 = vld [vmem:[%s1 + $0x298] sm:$0xff]
  %v2220 = vld [vmem:[%s1 + $0x2a0] sm:$0xff]
  %v2221 = vld [vmem:[%s1 + $0x2a8] sm:$0xff]
  %v2222 = vld [vmem:[%s1 + $0x2b0] sm:$0xff]
  %v2223 = vld [vmem:[%s1 + $0x2b8] sm:$0xff]
  %v2224 = vmul.f32 %v2215, %v2216
  %v2225 = vmul.f32 %v2214, %v2217
  %v2226 = vmul.f32 %v2213, %v2218
  %v2227 = vmul.f32 %v2212, %v2219
  %v2228 = vmul.f32 %v2211, %v2220
  %v2229 = vmul.f32 %v2210, %v2221
  %v2230 = vmul.f32 %v2209, %v2222
  %v2231 = vmul.f32 %v2208, %v2223
  %2232 = vst [vmem:[#allocation2 + $0x280] sm:$0xff] %v2224
  %2233 = vst [vmem:[#allocation2 + $0x288] sm:$0xff] %v2225
  %2234 = vst [vmem:[#allocation2 + $0x290] sm:$0xff] %v2226
  %2235 = vst [vmem:[#allocation2 + $0x298] sm:$0xff] %v2227
  %2236 = vst [vmem:[#allocation2 + $0x2a0] sm:$0xff] %v2228
  %2237 = vst [vmem:[#allocation2 + $0x2a8] sm:$0xff] %v2229
  %2238 = vst [vmem:[#allocation2 + $0x2b0] sm:$0xff] %v2230
  %2239 = vst [vmem:[#allocation2 + $0x2b8] sm:$0xff] %v2231
  %2240 = vrot.lane.b32.xlu0 %v1704, 7
  %v2241 = vpop.permute.xlu0 %2240
  %2242 = vrot.lane.b32.xlu0 %v1705, 7
  %v2243 = vpop.permute.xlu0 %2242
  %2244 = vrot.lane.b32.xlu0 %v1706, 7
  %v2245 = vpop.permute.xlu0 %2244
  %2246 = vrot.lane.b32.xlu0 %v1707, 7
  %v2247 = vpop.permute.xlu0 %2246
  %2248 = vrot.lane.b32.xlu0 %v1708, 7
  %v2249 = vpop.permute.xlu0 %2248
  %2250 = vrot.lane.b32.xlu0 %v1709, 7
  %v2251 = vpop.permute.xlu0 %2250
  %2252 = vrot.lane.b32.xlu0 %v1710, 7
  %v2253 = vpop.permute.xlu0 %2252
  %2254 = vrot.lane.b32.xlu0 %v1711, 7
  %v2255 = vpop.permute.xlu0 %2254
  %v2256 = vsel %vm594, %v2253, %v2255
  %v2257 = vsel %vm594, %v2251, %v2253
  %v2258 = vsel %vm594, %v2249, %v2251
  %v2259 = vsel %vm594, %v2247, %v2249
  %v2260 = vsel %vm594, %v2245, %v2247
  %v2261 = vsel %vm594, %v2243, %v2245
  %v2262 = vsel %vm594, %v2241, %v2243
  %v2263 = vsel %vm594, %v2255, %v2241
  %v2264 = vld [vmem:[%s1 + $0x2c0] sm:$0xff]
  %v2265 = vld [vmem:[%s1 + $0x2c8] sm:$0xff]
  %v2266 = vld [vmem:[%s1 + $0x2d0] sm:$0xff]
  %v2267 = vld [vmem:[%s1 + $0x2d8] sm:$0xff]
  %v2268 = vld [vmem:[%s1 + $0x2e0] sm:$0xff]
  %v2269 = vld [vmem:[%s1 + $0x2e8] sm:$0xff]
  %v2270 = vld [vmem:[%s1 + $0x2f0] sm:$0xff]
  %v2271 = vld [vmem:[%s1 + $0x2f8] sm:$0xff]
  %v2272 = vmul.f32 %v2263, %v2264
  %v2273 = vmul.f32 %v2262, %v2265
  %v2274 = vmul.f32 %v2261, %v2266
  %v2275 = vmul.f32 %v2260, %v2267
  %v2276 = vmul.f32 %v2259, %v2268
  %v2277 = vmul.f32 %v2258, %v2269
  %v2278 = vmul.f32 %v2257, %v2270
  %v2279 = vmul.f32 %v2256, %v2271
  %2280 = vst [vmem:[#allocation2 + $0x2c0] sm:$0xff] %v2272
  %2281 = vst [vmem:[#allocation2 + $0x2c8] sm:$0xff] %v2273
  %2282 = vst [vmem:[#allocation2 + $0x2d0] sm:$0xff] %v2274
  %2283 = vst [vmem:[#allocation2 + $0x2d8] sm:$0xff] %v2275
  %2284 = vst [vmem:[#allocation2 + $0x2e0] sm:$0xff] %v2276
  %2285 = vst [vmem:[#allocation2 + $0x2e8] sm:$0xff] %v2277
  %2286 = vst [vmem:[#allocation2 + $0x2f0] sm:$0xff] %v2278
  %2287 = vst [vmem:[#allocation2 + $0x2f8] sm:$0xff] %v2279
  %2288 = vrot.lane.b32.xlu0 %v1704, 1
  %v2289 = vpop.permute.xlu0 %2288
  %2290 = vrot.lane.b32.xlu0 %v1705, 1
  %v2291 = vpop.permute.xlu0 %2290
  %2292 = vrot.lane.b32.xlu0 %v1706, 1
  %v2293 = vpop.permute.xlu0 %2292
  %2294 = vrot.lane.b32.xlu0 %v1707, 1
  %v2295 = vpop.permute.xlu0 %2294
  %2296 = vrot.lane.b32.xlu0 %v1708, 1
  %v2297 = vpop.permute.xlu0 %2296
  %2298 = vrot.lane.b32.xlu0 %v1709, 1
  %v2299 = vpop.permute.xlu0 %2298
  %2300 = vrot.lane.b32.xlu0 %v1710, 1
  %v2301 = vpop.permute.xlu0 %2300
  %2302 = vrot.lane.b32.xlu0 %v1711, 1
  %v2303 = vpop.permute.xlu0 %2302
  %v2304 = vsel %vm643, %v2301, %v2303
  %v2305 = vsel %vm643, %v2299, %v2301
  %v2306 = vsel %vm643, %v2297, %v2299
  %v2307 = vsel %vm643, %v2295, %v2297
  %v2308 = vsel %vm643, %v2293, %v2295
  %v2309 = vsel %vm643, %v2291, %v2293
  %v2310 = vsel %vm643, %v2289, %v2291
  %v2311 = vsel %vm643, %v2303, %v2289
  %v2312 = vld [vmem:[%s1 + $0x300] sm:$0xff]
  %v2313 = vld [vmem:[%s1 + $0x308] sm:$0xff]
  %v2314 = vld [vmem:[%s1 + $0x310] sm:$0xff]
  %v2315 = vld [vmem:[%s1 + $0x318] sm:$0xff]
  %v2316 = vld [vmem:[%s1 + $0x320] sm:$0xff]
  %v2317 = vld [vmem:[%s1 + $0x328] sm:$0xff]
  %v2318 = vld [vmem:[%s1 + $0x330] sm:$0xff]
  %v2319 = vld [vmem:[%s1 + $0x338] sm:$0xff]
  %v2320 = vmul.f32 %v2311, %v2312
  %v2321 = vmul.f32 %v2310, %v2313
  %v2322 = vmul.f32 %v2309, %v2314
  %v2323 = vmul.f32 %v2308, %v2315
  %v2324 = vmul.f32 %v2307, %v2316
  %v2325 = vmul.f32 %v2306, %v2317
  %v2326 = vmul.f32 %v2305, %v2318
  %v2327 = vmul.f32 %v2304, %v2319
  %2328 = vst [vmem:[#allocation2 + $0x300] sm:$0xff] %v2320
  %2329 = vst [vmem:[#allocation2 + $0x308] sm:$0xff] %v2321
  %2330 = vst [vmem:[#allocation2 + $0x310] sm:$0xff] %v2322
  %2331 = vst [vmem:[#allocation2 + $0x318] sm:$0xff] %v2323
  %2332 = vst [vmem:[#allocation2 + $0x320] sm:$0xff] %v2324
  %2333 = vst [vmem:[#allocation2 + $0x328] sm:$0xff] %v2325
  %2334 = vst [vmem:[#allocation2 + $0x330] sm:$0xff] %v2326
  %2335 = vst [vmem:[#allocation2 + $0x338] sm:$0xff] %v2327
  %v2336 = vld [vmem:[%s1 + $0x340] sm:$0xff]
  %v2337 = vld [vmem:[%s1 + $0x348] sm:$0xff]
  %v2338 = vld [vmem:[%s1 + $0x350] sm:$0xff]
  %v2339 = vld [vmem:[%s1 + $0x358] sm:$0xff]
  %v2340 = vld [vmem:[%s1 + $0x360] sm:$0xff]
  %v2341 = vld [vmem:[%s1 + $0x368] sm:$0xff]
  %v2342 = vld [vmem:[%s1 + $0x370] sm:$0xff]
  %v2343 = vld [vmem:[%s1 + $0x378] sm:$0xff]
  %v2344 = vmul.f32 %v1704, %v2336
  %v2345 = vmul.f32 %v1705, %v2337
  %v2346 = vmul.f32 %v1706, %v2338
  %v2347 = vmul.f32 %v1707, %v2339
  %v2348 = vmul.f32 %v1708, %v2340
  %v2349 = vmul.f32 %v1709, %v2341
  %v2350 = vmul.f32 %v1710, %v2342
  %v2351 = vmul.f32 %v1711, %v2343
  %2352 = vst [vmem:[#allocation2 + $0x340] sm:$0xff] %v2344
  %2353 = vst [vmem:[#allocation2 + $0x348] sm:$0xff] %v2345
  %2354 = vst [vmem:[#allocation2 + $0x350] sm:$0xff] %v2346
  %2355 = vst [vmem:[#allocation2 + $0x358] sm:$0xff] %v2347
  %2356 = vst [vmem:[#allocation2 + $0x360] sm:$0xff] %v2348
  %2357 = vst [vmem:[#allocation2 + $0x368] sm:$0xff] %v2349
  %2358 = vst [vmem:[#allocation2 + $0x370] sm:$0xff] %v2350
  %2359 = vst [vmem:[#allocation2 + $0x378] sm:$0xff] %v2351
  %2360 = vrot.lane.b32.xlu0 %v1704, 127
  %v2361 = vpop.permute.xlu0 %2360
  %2362 = vrot.lane.b32.xlu0 %v1705, 127
  %v2363 = vpop.permute.xlu0 %2362
  %2364 = vrot.lane.b32.xlu0 %v1706, 127
  %v2365 = vpop.permute.xlu0 %2364
  %2366 = vrot.lane.b32.xlu0 %v1707, 127
  %v2367 = vpop.permute.xlu0 %2366
  %2368 = vrot.lane.b32.xlu0 %v1708, 127
  %v2369 = vpop.permute.xlu0 %2368
  %2370 = vrot.lane.b32.xlu0 %v1709, 127
  %v2371 = vpop.permute.xlu0 %2370
  %2372 = vrot.lane.b32.xlu0 %v1710, 127
  %v2373 = vpop.permute.xlu0 %2372
  %2374 = vrot.lane.b32.xlu0 %v1711, 127
  %v2375 = vpop.permute.xlu0 %2374
  %v2376 = vsel %vm716, %v2373, %v2375
  %v2377 = vsel %vm716, %v2371, %v2373
  %v2378 = vsel %vm716, %v2369, %v2371
  %v2379 = vsel %vm716, %v2367, %v2369
  %v2380 = vsel %vm716, %v2365, %v2367
  %v2381 = vsel %vm716, %v2363, %v2365
  %v2382 = vsel %vm716, %v2361, %v2363
  %v2383 = vsel %vm716, %v2375, %v2361
  %v2384 = vld [vmem:[%s1 + $0x380] sm:$0xff]
  %v2385 = vld [vmem:[%s1 + $0x388] sm:$0xff]
  %v2386 = vld [vmem:[%s1 + $0x390] sm:$0xff]
  %v2387 = vld [vmem:[%s1 + $0x398] sm:$0xff]
  %v2388 = vld [vmem:[%s1 + $0x3a0] sm:$0xff]
  %v2389 = vld [vmem:[%s1 + $0x3a8] sm:$0xff]
  %v2390 = vld [vmem:[%s1 + $0x3b0] sm:$0xff]
  %v2391 = vld [vmem:[%s1 + $0x3b8] sm:$0xff]
  %v2392 = vmul.f32 %v2382, %v2384
  %v2393 = vmul.f32 %v2381, %v2385
  %v2394 = vmul.f32 %v2380, %v2386
  %v2395 = vmul.f32 %v2379, %v2387
  %v2396 = vmul.f32 %v2378, %v2388
  %v2397 = vmul.f32 %v2377, %v2389
  %v2398 = vmul.f32 %v2376, %v2390
  %v2399 = vmul.f32 %v2383, %v2391
  %2400 = vst [vmem:[#allocation2 + $0x380] sm:$0xff] %v2392
  %2401 = vst [vmem:[#allocation2 + $0x388] sm:$0xff] %v2393
  %2402 = vst [vmem:[#allocation2 + $0x390] sm:$0xff] %v2394
  %2403 = vst [vmem:[#allocation2 + $0x398] sm:$0xff] %v2395
  %2404 = vst [vmem:[#allocation2 + $0x3a0] sm:$0xff] %v2396
  %2405 = vst [vmem:[#allocation2 + $0x3a8] sm:$0xff] %v2397
  %2406 = vst [vmem:[#allocation2 + $0x3b0] sm:$0xff] %v2398
  %2407 = vst [vmem:[#allocation2 + $0x3b8] sm:$0xff] %v2399
  %2408 = vrot.lane.b32.xlu0 %v1704, 121
  %v2409 = vpop.permute.xlu0 %2408
  %2410 = vrot.lane.b32.xlu0 %v1705, 121
  %v2411 = vpop.permute.xlu0 %2410
  %2412 = vrot.lane.b32.xlu0 %v1706, 121
  %v2413 = vpop.permute.xlu0 %2412
  %2414 = vrot.lane.b32.xlu0 %v1707, 121
  %v2415 = vpop.permute.xlu0 %2414
  %2416 = vrot.lane.b32.xlu0 %v1708, 121
  %v2417 = vpop.permute.xlu0 %2416
  %2418 = vrot.lane.b32.xlu0 %v1709, 121
  %v2419 = vpop.permute.xlu0 %2418
  %2420 = vrot.lane.b32.xlu0 %v1710, 121
  %v2421 = vpop.permute.xlu0 %2420
  %2422 = vrot.lane.b32.xlu0 %v1711, 121
  %v2423 = vpop.permute.xlu0 %2422
  %v2424 = vsel %vm765, %v2421, %v2423
  %v2425 = vsel %vm765, %v2419, %v2421
  %v2426 = vsel %vm765, %v2417, %v2419
  %v2427 = vsel %vm765, %v2415, %v2417
  %v2428 = vsel %vm765, %v2413, %v2415
  %v2429 = vsel %vm765, %v2411, %v2413
  %v2430 = vsel %vm765, %v2409, %v2411
  %v2431 = vsel %vm765, %v2423, %v2409
  %v2432 = vld [vmem:[%s1 + $0x3c0] sm:$0xff]
  %v2433 = vld [vmem:[%s1 + $0x3c8] sm:$0xff]
  %v2434 = vld [vmem:[%s1 + $0x3d0] sm:$0xff]
  %v2435 = vld [vmem:[%s1 + $0x3d8] sm:$0xff]
  %v2436 = vld [vmem:[%s1 + $0x3e0] sm:$0xff]
  %v2437 = vld [vmem:[%s1 + $0x3e8] sm:$0xff]
  %v2438 = vld [vmem:[%s1 + $0x3f0] sm:$0xff]
  %v2439 = vld [vmem:[%s1 + $0x3f8] sm:$0xff]
  %v2440 = vmul.f32 %v2430, %v2432
  %v2441 = vmul.f32 %v2429, %v2433
  %v2442 = vmul.f32 %v2428, %v2434
  %v2443 = vmul.f32 %v2427, %v2435
  %v2444 = vmul.f32 %v2426, %v2436
  %v2445 = vmul.f32 %v2425, %v2437
  %v2446 = vmul.f32 %v2424, %v2438
  %v2447 = vmul.f32 %v2431, %v2439
  %2448 = vst [vmem:[#allocation2 + $0x3c0] sm:$0xff] %v2440
  %2449 = vst [vmem:[#allocation2 + $0x3c8] sm:$0xff] %v2441
  %2450 = vst [vmem:[#allocation2 + $0x3d0] sm:$0xff] %v2442
  %2451 = vst [vmem:[#allocation2 + $0x3d8] sm:$0xff] %v2443
  %2452 = vst [vmem:[#allocation2 + $0x3e0] sm:$0xff] %v2444
  %2453 = vst [vmem:[#allocation2 + $0x3e8] sm:$0xff] %v2445
  %2454 = vst [vmem:[#allocation2 + $0x3f0] sm:$0xff] %v2446
  %2455 = vst [vmem:[#allocation2 + $0x3f8] sm:$0xff] %v2447
  %2456 = vrot.lane.b32.xlu0 %v1704, 120
  %v2457 = vpop.permute.xlu0 %2456
  %2458 = vrot.lane.b32.xlu0 %v1705, 120
  %v2459 = vpop.permute.xlu0 %2458
  %2460 = vrot.lane.b32.xlu0 %v1706, 120
  %v2461 = vpop.permute.xlu0 %2460
  %2462 = vrot.lane.b32.xlu0 %v1707, 120
  %v2463 = vpop.permute.xlu0 %2462
  %2464 = vrot.lane.b32.xlu0 %v1708, 120
  %v2465 = vpop.permute.xlu0 %2464
  %2466 = vrot.lane.b32.xlu0 %v1709, 120
  %v2467 = vpop.permute.xlu0 %2466
  %2468 = vrot.lane.b32.xlu0 %v1710, 120
  %v2469 = vpop.permute.xlu0 %2468
  %2470 = vrot.lane.b32.xlu0 %v1711, 120
  %v2471 = vpop.permute.xlu0 %2470
  %v2472 = vsel %vm814, %v2469, %v2471
  %v2473 = vsel %vm814, %v2467, %v2469
  %v2474 = vsel %vm814, %v2465, %v2467
  %v2475 = vsel %vm814, %v2463, %v2465
  %v2476 = vsel %vm814, %v2461, %v2463
  %v2477 = vsel %vm814, %v2459, %v2461
  %v2478 = vsel %vm814, %v2457, %v2459
  %v2479 = vsel %vm814, %v2471, %v2457
  %v2480 = vld [vmem:[%s1 + $0x400] sm:$0xff]
  %v2481 = vld [vmem:[%s1 + $0x408] sm:$0xff]
  %v2482 = vld [vmem:[%s1 + $0x410] sm:$0xff]
  %v2483 = vld [vmem:[%s1 + $0x418] sm:$0xff]
  %v2484 = vld [vmem:[%s1 + $0x420] sm:$0xff]
  %v2485 = vld [vmem:[%s1 + $0x428] sm:$0xff]
  %v2486 = vld [vmem:[%s1 + $0x430] sm:$0xff]
  %v2487 = vld [vmem:[%s1 + $0x438] sm:$0xff]
  %v2488 = vmul.f32 %v2478, %v2480
  %v2489 = vmul.f32 %v2477, %v2481
  %v2490 = vmul.f32 %v2476, %v2482
  %v2491 = vmul.f32 %v2475, %v2483
  %v2492 = vmul.f32 %v2474, %v2484
  %v2493 = vmul.f32 %v2473, %v2485
  %v2494 = vmul.f32 %v2472, %v2486
  %v2495 = vmul.f32 %v2479, %v2487
  %2496 = vst [vmem:[#allocation2 + $0x400] sm:$0xff] %v2488
  %2497 = vst [vmem:[#allocation2 + $0x408] sm:$0xff] %v2489
  %2498 = vst [vmem:[#allocation2 + $0x410] sm:$0xff] %v2490
  %2499 = vst [vmem:[#allocation2 + $0x418] sm:$0xff] %v2491
  %2500 = vst [vmem:[#allocation2 + $0x420] sm:$0xff] %v2492
  %2501 = vst [vmem:[#allocation2 + $0x428] sm:$0xff] %v2493
  %2502 = vst [vmem:[#allocation2 + $0x430] sm:$0xff] %v2494
  %2503 = vst [vmem:[#allocation2 + $0x438] sm:$0xff] %v2495
  %2504 = vrot.lane.b32.xlu0 %v1704, 119
  %v2505 = vpop.permute.xlu0 %2504
  %2506 = vrot.lane.b32.xlu0 %v1705, 119
  %v2507 = vpop.permute.xlu0 %2506
  %2508 = vrot.lane.b32.xlu0 %v1706, 119
  %v2509 = vpop.permute.xlu0 %2508
  %2510 = vrot.lane.b32.xlu0 %v1707, 119
  %v2511 = vpop.permute.xlu0 %2510
  %2512 = vrot.lane.b32.xlu0 %v1708, 119
  %v2513 = vpop.permute.xlu0 %2512
  %2514 = vrot.lane.b32.xlu0 %v1709, 119
  %v2515 = vpop.permute.xlu0 %2514
  %2516 = vrot.lane.b32.xlu0 %v1710, 119
  %v2517 = vpop.permute.xlu0 %2516
  %2518 = vrot.lane.b32.xlu0 %v1711, 119
  %v2519 = vpop.permute.xlu0 %2518
  %v2520 = vsel %vm863, %v2517, %v2519
  %v2521 = vsel %vm863, %v2515, %v2517
  %v2522 = vsel %vm863, %v2513, %v2515
  %v2523 = vsel %vm863, %v2511, %v2513
  %v2524 = vsel %vm863, %v2509, %v2511
  %v2525 = vsel %vm863, %v2507, %v2509
  %v2526 = vsel %vm863, %v2505, %v2507
  %v2527 = vsel %vm863, %v2519, %v2505
  %v2528 = vld [vmem:[%s1 + $0x440] sm:$0xff]
  %v2529 = vld [vmem:[%s1 + $0x448] sm:$0xff]
  %v2530 = vld [vmem:[%s1 + $0x450] sm:$0xff]
  %v2531 = vld [vmem:[%s1 + $0x458] sm:$0xff]
  %v2532 = vld [vmem:[%s1 + $0x460] sm:$0xff]
  %v2533 = vld [vmem:[%s1 + $0x468] sm:$0xff]
  %v2534 = vld [vmem:[%s1 + $0x470] sm:$0xff]
  %v2535 = vld [vmem:[%s1 + $0x478] sm:$0xff]
  %v2536 = vmul.f32 %v2526, %v2528
  %v2537 = vmul.f32 %v2525, %v2529
  %v2538 = vmul.f32 %v2524, %v2530
  %v2539 = vmul.f32 %v2523, %v2531
  %v2540 = vmul.f32 %v2522, %v2532
  %v2541 = vmul.f32 %v2521, %v2533
  %v2542 = vmul.f32 %v2520, %v2534
  %v2543 = vmul.f32 %v2527, %v2535
  %2544 = vst [vmem:[#allocation2 + $0x440] sm:$0xff] %v2536
  %2545 = vst [vmem:[#allocation2 + $0x448] sm:$0xff] %v2537
  %2546 = vst [vmem:[#allocation2 + $0x450] sm:$0xff] %v2538
  %2547 = vst [vmem:[#allocation2 + $0x458] sm:$0xff] %v2539
  %2548 = vst [vmem:[#allocation2 + $0x460] sm:$0xff] %v2540
  %2549 = vst [vmem:[#allocation2 + $0x468] sm:$0xff] %v2541
  %2550 = vst [vmem:[#allocation2 + $0x470] sm:$0xff] %v2542
  %2551 = vst [vmem:[#allocation2 + $0x478] sm:$0xff] %v2543
  %v2552 = vld [vmem:[%s1 + $0x480] sm:$0xff]
  %v2553 = vld [vmem:[%s1 + $0x488] sm:$0xff]
  %v2554 = vld [vmem:[%s1 + $0x490] sm:$0xff]
  %v2555 = vld [vmem:[%s1 + $0x498] sm:$0xff]
  %v2556 = vld [vmem:[%s1 + $0x4a0] sm:$0xff]
  %v2557 = vld [vmem:[%s1 + $0x4a8] sm:$0xff]
  %v2558 = vld [vmem:[%s1 + $0x4b0] sm:$0xff]
  %v2559 = vld [vmem:[%s1 + $0x4b8] sm:$0xff]
  %v2560 = vmul.f32 %v1734, %v2552
  %v2561 = vmul.f32 %v1733, %v2553
  %v2562 = vmul.f32 %v1732, %v2554
  %v2563 = vmul.f32 %v1731, %v2555
  %v2564 = vmul.f32 %v1730, %v2556
  %v2565 = vmul.f32 %v1729, %v2557
  %v2566 = vmul.f32 %v1728, %v2558
  %v2567 = vmul.f32 %v1735, %v2559
  %2568 = vst [vmem:[#allocation2 + $0x480] sm:$0xff] %v2560
  %2569 = vst [vmem:[#allocation2 + $0x488] sm:$0xff] %v2561
  %2570 = vst [vmem:[#allocation2 + $0x490] sm:$0xff] %v2562
  %2571 = vst [vmem:[#allocation2 + $0x498] sm:$0xff] %v2563
  %2572 = vst [vmem:[#allocation2 + $0x4a0] sm:$0xff] %v2564
  %2573 = vst [vmem:[#allocation2 + $0x4a8] sm:$0xff] %v2565
  %2574 = vst [vmem:[#allocation2 + $0x4b0] sm:$0xff] %v2566
  %2575 = vst [vmem:[#allocation2 + $0x4b8] sm:$0xff] %v2567
  %v2576 = vld [vmem:[%s1 + $0x4c0] sm:$0xff]
  %v2577 = vld [vmem:[%s1 + $0x4c8] sm:$0xff]
  %v2578 = vld [vmem:[%s1 + $0x4d0] sm:$0xff]
  %v2579 = vld [vmem:[%s1 + $0x4d8] sm:$0xff]
  %v2580 = vld [vmem:[%s1 + $0x4e0] sm:$0xff]
  %v2581 = vld [vmem:[%s1 + $0x4e8] sm:$0xff]
  %v2582 = vld [vmem:[%s1 + $0x4f0] sm:$0xff]
  %v2583 = vld [vmem:[%s1 + $0x4f8] sm:$0xff]
  %v2584 = vmul.f32 %v1782, %v2576
  %v2585 = vmul.f32 %v1781, %v2577
  %v2586 = vmul.f32 %v1780, %v2578
  %v2587 = vmul.f32 %v1779, %v2579
  %v2588 = vmul.f32 %v1778, %v2580
  %v2589 = vmul.f32 %v1777, %v2581
  %v2590 = vmul.f32 %v1776, %v2582
  %v2591 = vmul.f32 %v1783, %v2583
  %2592 = vst [vmem:[#allocation2 + $0x4c0] sm:$0xff] %v2584
  %2593 = vst [vmem:[#allocation2 + $0x4c8] sm:$0xff] %v2585
  %2594 = vst [vmem:[#allocation2 + $0x4d0] sm:$0xff] %v2586
  %2595 = vst [vmem:[#allocation2 + $0x4d8] sm:$0xff] %v2587
  %2596 = vst [vmem:[#allocation2 + $0x4e0] sm:$0xff] %v2588
  %2597 = vst [vmem:[#allocation2 + $0x4e8] sm:$0xff] %v2589
  %2598 = vst [vmem:[#allocation2 + $0x4f0] sm:$0xff] %v2590
  %2599 = vst [vmem:[#allocation2 + $0x4f8] sm:$0xff] %v2591
  %v2600 = vld [vmem:[%s1 + $0x500] sm:$0xff]
  %v2601 = vld [vmem:[%s1 + $0x508] sm:$0xff]
  %v2602 = vld [vmem:[%s1 + $0x510] sm:$0xff]
  %v2603 = vld [vmem:[%s1 + $0x518] sm:$0xff]
  %v2604 = vld [vmem:[%s1 + $0x520] sm:$0xff]
  %v2605 = vld [vmem:[%s1 + $0x528] sm:$0xff]
  %v2606 = vld [vmem:[%s1 + $0x530] sm:$0xff]
  %v2607 = vld [vmem:[%s1 + $0x538] sm:$0xff]
  %v2608 = vmul.f32 %v1830, %v2600
  %v2609 = vmul.f32 %v1829, %v2601
  %v2610 = vmul.f32 %v1828, %v2602
  %v2611 = vmul.f32 %v1827, %v2603
  %v2612 = vmul.f32 %v1826, %v2604
  %v2613 = vmul.f32 %v1825, %v2605
  %v2614 = vmul.f32 %v1824, %v2606
  %v2615 = vmul.f32 %v1831, %v2607
  %2616 = vst [vmem:[#allocation2 + $0x500] sm:$0xff] %v2608
  %2617 = vst [vmem:[#allocation2 + $0x508] sm:$0xff] %v2609
  %2618 = vst [vmem:[#allocation2 + $0x510] sm:$0xff] %v2610
  %2619 = vst [vmem:[#allocation2 + $0x518] sm:$0xff] %v2611
  %2620 = vst [vmem:[#allocation2 + $0x520] sm:$0xff] %v2612
  %2621 = vst [vmem:[#allocation2 + $0x528] sm:$0xff] %v2613
  %2622 = vst [vmem:[#allocation2 + $0x530] sm:$0xff] %v2614
  %2623 = vst [vmem:[#allocation2 + $0x538] sm:$0xff] %v2615
  %v2624 = vld [vmem:[%s1 + $0x540] sm:$0xff]
  %v2625 = vld [vmem:[%s1 + $0x548] sm:$0xff]
  %v2626 = vld [vmem:[%s1 + $0x550] sm:$0xff]
  %v2627 = vld [vmem:[%s1 + $0x558] sm:$0xff]
  %v2628 = vld [vmem:[%s1 + $0x560] sm:$0xff]
  %v2629 = vld [vmem:[%s1 + $0x568] sm:$0xff]
  %v2630 = vld [vmem:[%s1 + $0x570] sm:$0xff]
  %v2631 = vld [vmem:[%s1 + $0x578] sm:$0xff]
  %v2632 = vmul.f32 %v1878, %v2624
  %v2633 = vmul.f32 %v1877, %v2625
  %v2634 = vmul.f32 %v1876, %v2626
  %v2635 = vmul.f32 %v1875, %v2627
  %v2636 = vmul.f32 %v1874, %v2628
  %v2637 = vmul.f32 %v1873, %v2629
  %v2638 = vmul.f32 %v1872, %v2630
  %v2639 = vmul.f32 %v1879, %v2631
  %2640 = vst [vmem:[#allocation2 + $0x540] sm:$0xff] %v2632
  %2641 = vst [vmem:[#allocation2 + $0x548] sm:$0xff] %v2633
  %2642 = vst [vmem:[#allocation2 + $0x550] sm:$0xff] %v2634
  %2643 = vst [vmem:[#allocation2 + $0x558] sm:$0xff] %v2635
  %2644 = vst [vmem:[#allocation2 + $0x560] sm:$0xff] %v2636
  %2645 = vst [vmem:[#allocation2 + $0x568] sm:$0xff] %v2637
  %2646 = vst [vmem:[#allocation2 + $0x570] sm:$0xff] %v2638
  %2647 = vst [vmem:[#allocation2 + $0x578] sm:$0xff] %v2639
  %v2648 = vld [vmem:[%s1 + $0x580] sm:$0xff]
  %v2649 = vld [vmem:[%s1 + $0x588] sm:$0xff]
  %v2650 = vld [vmem:[%s1 + $0x590] sm:$0xff]
  %v2651 = vld [vmem:[%s1 + $0x598] sm:$0xff]
  %v2652 = vld [vmem:[%s1 + $0x5a0] sm:$0xff]
  %v2653 = vld [vmem:[%s1 + $0x5a8] sm:$0xff]
  %v2654 = vld [vmem:[%s1 + $0x5b0] sm:$0xff]
  %v2655 = vld [vmem:[%s1 + $0x5b8] sm:$0xff]
  %v2656 = vmul.f32 %v1926, %v2648
  %v2657 = vmul.f32 %v1925, %v2649
  %v2658 = vmul.f32 %v1924, %v2650
  %v2659 = vmul.f32 %v1923, %v2651
  %v2660 = vmul.f32 %v1922, %v2652
  %v2661 = vmul.f32 %v1921, %v2653
  %v2662 = vmul.f32 %v1920, %v2654
  %v2663 = vmul.f32 %v1927, %v2655
  %2664 = vst [vmem:[#allocation2 + $0x580] sm:$0xff] %v2656
  %2665 = vst [vmem:[#allocation2 + $0x588] sm:$0xff] %v2657
  %2666 = vst [vmem:[#allocation2 + $0x590] sm:$0xff] %v2658
  %2667 = vst [vmem:[#allocation2 + $0x598] sm:$0xff] %v2659
  %2668 = vst [vmem:[#allocation2 + $0x5a0] sm:$0xff] %v2660
  %2669 = vst [vmem:[#allocation2 + $0x5a8] sm:$0xff] %v2661
  %2670 = vst [vmem:[#allocation2 + $0x5b0] sm:$0xff] %v2662
  %2671 = vst [vmem:[#allocation2 + $0x5b8] sm:$0xff] %v2663
  %v2672 = vld [vmem:[%s1 + $0x5c0] sm:$0xff]
  %v2673 = vld [vmem:[%s1 + $0x5c8] sm:$0xff]
  %v2674 = vld [vmem:[%s1 + $0x5d0] sm:$0xff]
  %v2675 = vld [vmem:[%s1 + $0x5d8] sm:$0xff]
  %v2676 = vld [vmem:[%s1 + $0x5e0] sm:$0xff]
  %v2677 = vld [vmem:[%s1 + $0x5e8] sm:$0xff]
  %v2678 = vld [vmem:[%s1 + $0x5f0] sm:$0xff]
  %v2679 = vld [vmem:[%s1 + $0x5f8] sm:$0xff]
  %v2680 = vmul.f32 %v1974, %v2672
  %v2681 = vmul.f32 %v1973, %v2673
  %v2682 = vmul.f32 %v1972, %v2674
  %v2683 = vmul.f32 %v1971, %v2675
  %v2684 = vmul.f32 %v1970, %v2676
  %v2685 = vmul.f32 %v1969, %v2677
  %v2686 = vmul.f32 %v1968, %v2678
  %v2687 = vmul.f32 %v1975, %v2679
  %2688 = vst [vmem:[#allocation2 + $0x5c0] sm:$0xff] %v2680
  %2689 = vst [vmem:[#allocation2 + $0x5c8] sm:$0xff] %v2681
  %2690 = vst [vmem:[#allocation2 + $0x5d0] sm:$0xff] %v2682
  %2691 = vst [vmem:[#allocation2 + $0x5d8] sm:$0xff] %v2683
  %2692 = vst [vmem:[#allocation2 + $0x5e0] sm:$0xff] %v2684
  %2693 = vst [vmem:[#allocation2 + $0x5e8] sm:$0xff] %v2685
  %2694 = vst [vmem:[#allocation2 + $0x5f0] sm:$0xff] %v2686
  %2695 = vst [vmem:[#allocation2 + $0x5f8] sm:$0xff] %v2687
  %v2696 = vld [vmem:[%s1 + $0x600] sm:$0xff]
  %v2697 = vld [vmem:[%s1 + $0x608] sm:$0xff]
  %v2698 = vld [vmem:[%s1 + $0x610] sm:$0xff]
  %v2699 = vld [vmem:[%s1 + $0x618] sm:$0xff]
  %v2700 = vld [vmem:[%s1 + $0x620] sm:$0xff]
  %v2701 = vld [vmem:[%s1 + $0x628] sm:$0xff]
  %v2702 = vld [vmem:[%s1 + $0x630] sm:$0xff]
  %v2703 = vld [vmem:[%s1 + $0x638] sm:$0xff]
  %v2704 = vmul.f32 %v2022, %v2696
  %v2705 = vmul.f32 %v2021, %v2697
  %v2706 = vmul.f32 %v2020, %v2698
  %v2707 = vmul.f32 %v2019, %v2699
  %v2708 = vmul.f32 %v2018, %v2700
  %v2709 = vmul.f32 %v2017, %v2701
  %v2710 = vmul.f32 %v2016, %v2702
  %v2711 = vmul.f32 %v2023, %v2703
  %2712 = vst [vmem:[#allocation2 + $0x600] sm:$0xff] %v2704
  %2713 = vst [vmem:[#allocation2 + $0x608] sm:$0xff] %v2705
  %2714 = vst [vmem:[#allocation2 + $0x610] sm:$0xff] %v2706
  %2715 = vst [vmem:[#allocation2 + $0x618] sm:$0xff] %v2707
  %2716 = vst [vmem:[#allocation2 + $0x620] sm:$0xff] %v2708
  %2717 = vst [vmem:[#allocation2 + $0x628] sm:$0xff] %v2709
  %2718 = vst [vmem:[#allocation2 + $0x630] sm:$0xff] %v2710
  %2719 = vst [vmem:[#allocation2 + $0x638] sm:$0xff] %v2711
  %v2720 = vld [vmem:[%s1 + $0x640] sm:$0xff]
  %v2721 = vld [vmem:[%s1 + $0x648] sm:$0xff]
  %v2722 = vld [vmem:[%s1 + $0x650] sm:$0xff]
  %v2723 = vld [vmem:[%s1 + $0x658] sm:$0xff]
  %v2724 = vld [vmem:[%s1 + $0x660] sm:$0xff]
  %v2725 = vld [vmem:[%s1 + $0x668] sm:$0xff]
  %v2726 = vld [vmem:[%s1 + $0x670] sm:$0xff]
  %v2727 = vld [vmem:[%s1 + $0x678] sm:$0xff]
  %v2728 = vmul.f32 %v2070, %v2720
  %v2729 = vmul.f32 %v2069, %v2721
  %v2730 = vmul.f32 %v2068, %v2722
  %v2731 = vmul.f32 %v2067, %v2723
  %v2732 = vmul.f32 %v2066, %v2724
  %v2733 = vmul.f32 %v2065, %v2725
  %v2734 = vmul.f32 %v2064, %v2726
  %v2735 = vmul.f32 %v2071, %v2727
  %2736 = vst [vmem:[#allocation2 + $0x640] sm:$0xff] %v2728
  %2737 = vst [vmem:[#allocation2 + $0x648] sm:$0xff] %v2729
  %2738 = vst [vmem:[#allocation2 + $0x650] sm:$0xff] %v2730
  %2739 = vst [vmem:[#allocation2 + $0x658] sm:$0xff] %v2731
  %2740 = vst [vmem:[#allocation2 + $0x660] sm:$0xff] %v2732
  %2741 = vst [vmem:[#allocation2 + $0x668] sm:$0xff] %v2733
  %2742 = vst [vmem:[#allocation2 + $0x670] sm:$0xff] %v2734
  %2743 = vst [vmem:[#allocation2 + $0x678] sm:$0xff] %v2735
  %v2744 = vld [vmem:[%s1 + $0x680] sm:$0xff]
  %v2745 = vld [vmem:[%s1 + $0x688] sm:$0xff]
  %v2746 = vld [vmem:[%s1 + $0x690] sm:$0xff]
  %v2747 = vld [vmem:[%s1 + $0x698] sm:$0xff]
  %v2748 = vld [vmem:[%s1 + $0x6a0] sm:$0xff]
  %v2749 = vld [vmem:[%s1 + $0x6a8] sm:$0xff]
  %v2750 = vld [vmem:[%s1 + $0x6b0] sm:$0xff]
  %v2751 = vld [vmem:[%s1 + $0x6b8] sm:$0xff]
  %v2752 = vmul.f32 %v2118, %v2744
  %v2753 = vmul.f32 %v2117, %v2745
  %v2754 = vmul.f32 %v2116, %v2746
  %v2755 = vmul.f32 %v2115, %v2747
  %v2756 = vmul.f32 %v2114, %v2748
  %v2757 = vmul.f32 %v2113, %v2749
  %v2758 = vmul.f32 %v2112, %v2750
  %v2759 = vmul.f32 %v2119, %v2751
  %2760 = vst [vmem:[#allocation2 + $0x680] sm:$0xff] %v2752
  %2761 = vst [vmem:[#allocation2 + $0x688] sm:$0xff] %v2753
  %2762 = vst [vmem:[#allocation2 + $0x690] sm:$0xff] %v2754
  %2763 = vst [vmem:[#allocation2 + $0x698] sm:$0xff] %v2755
  %2764 = vst [vmem:[#allocation2 + $0x6a0] sm:$0xff] %v2756
  %2765 = vst [vmem:[#allocation2 + $0x6a8] sm:$0xff] %v2757
  %2766 = vst [vmem:[#allocation2 + $0x6b0] sm:$0xff] %v2758
  %2767 = vst [vmem:[#allocation2 + $0x6b8] sm:$0xff] %v2759
  %v2768 = vld [vmem:[%s5] sm:$0xff]
  %v2769 = vld [vmem:[%s5 + $0x8] sm:$0xff]
  %v2770 = vld [vmem:[#allocation2] sm:$0xff]
  %v2771 = vld [vmem:[#allocation2 + $0x8] sm:$0xff]
  %v2772 = vld [vmem:[#allocation2 + $0x10] sm:$0xff]
  %v2773 = vld [vmem:[#allocation2 + $0x18] sm:$0xff]
  %v2774 = vld [vmem:[#allocation2 + $0x20] sm:$0xff]
  %v2775 = vld [vmem:[#allocation2 + $0x28] sm:$0xff]
  %v2776 = vld [vmem:[#allocation2 + $0x30] sm:$0xff]
  %v2777 = vld [vmem:[#allocation2 + $0x38] sm:$0xff]
  %v2778 = vld [vmem:[#allocation2 + $0x40] sm:$0xff]
  %v2779 = vld [vmem:[#allocation2 + $0x48] sm:$0xff]
  %v2780 = vld [vmem:[#allocation2 + $0x50] sm:$0xff]
  %v2781 = vld [vmem:[#allocation2 + $0x58] sm:$0xff]
  %v2782 = vld [vmem:[#allocation2 + $0x60] sm:$0xff]
  %v2783 = vld [vmem:[#allocation2 + $0x68] sm:$0xff]
  %v2784 = vld [vmem:[#allocation2 + $0x70] sm:$0xff]
  %v2785 = vld [vmem:[#allocation2 + $0x78] sm:$0xff]
  %v2786 = vld [vmem:[#allocation2 + $0x80] sm:$0xff]
  %v2787 = vld [vmem:[#allocation2 + $0x88] sm:$0xff]
  %v2788 = vld [vmem:[#allocation2 + $0x90] sm:$0xff]
  %v2789 = vld [vmem:[#allocation2 + $0x98] sm:$0xff]
  %v2790 = vld [vmem:[#allocation2 + $0xa0] sm:$0xff]
  %v2791 = vld [vmem:[#allocation2 + $0xa8] sm:$0xff]
  %v2792 = vld [vmem:[#allocation2 + $0xb0] sm:$0xff]
  %v2793 = vld [vmem:[#allocation2 + $0xb8] sm:$0xff]
  %v2794 = vld [vmem:[#allocation2 + $0xc0] sm:$0xff]
  %v2795 = vld [vmem:[#allocation2 + $0xc8] sm:$0xff]
  %v2796 = vld [vmem:[#allocation2 + $0xd0] sm:$0xff]
  %v2797 = vld [vmem:[#allocation2 + $0xd8] sm:$0xff]
  %v2798 = vld [vmem:[#allocation2 + $0xe0] sm:$0xff]
  %v2799 = vld [vmem:[#allocation2 + $0xe8] sm:$0xff]
  %v2800 = vld [vmem:[#allocation2 + $0xf0] sm:$0xff]
  %v2801 = vld [vmem:[#allocation2 + $0xf8] sm:$0xff]
  %v2802 = vld [vmem:[#allocation2 + $0x100] sm:$0xff]
  %v2803 = vld [vmem:[#allocation2 + $0x108] sm:$0xff]
  %v2804 = vld [vmem:[#allocation2 + $0x110] sm:$0xff]
  %v2805 = vld [vmem:[#allocation2 + $0x118] sm:$0xff]
  %v2806 = vld [vmem:[#allocation2 + $0x120] sm:$0xff]
  %v2807 = vld [vmem:[#allocation2 + $0x128] sm:$0xff]
  %v2808 = vld [vmem:[#allocation2 + $0x130] sm:$0xff]
  %v2809 = vld [vmem:[#allocation2 + $0x138] sm:$0xff]
  %v2810 = vld [vmem:[#allocation2 + $0x140] sm:$0xff]
  %v2811 = vld [vmem:[#allocation2 + $0x148] sm:$0xff]
  %v2812 = vld [vmem:[#allocation2 + $0x150] sm:$0xff]
  %v2813 = vld [vmem:[#allocation2 + $0x158] sm:$0xff]
  %v2814 = vld [vmem:[#allocation2 + $0x160] sm:$0xff]
  %v2815 = vld [vmem:[#allocation2 + $0x168] sm:$0xff]
  %v2816 = vld [vmem:[#allocation2 + $0x170] sm:$0xff]
  %v2817 = vld [vmem:[#allocation2 + $0x178] sm:$0xff]
  %v2818 = vld [vmem:[#allocation2 + $0x180] sm:$0xff]
  %v2819 = vld [vmem:[#allocation2 + $0x188] sm:$0xff]
  %v2820 = vld [vmem:[#allocation2 + $0x190] sm:$0xff]
  %v2821 = vld [vmem:[#allocation2 + $0x198] sm:$0xff]
  %v2822 = vld [vmem:[#allocation2 + $0x1a0] sm:$0xff]
  %v2823 = vld [vmem:[#allocation2 + $0x1a8] sm:$0xff]
  %v2824 = vld [vmem:[#allocation2 + $0x1b0] sm:$0xff]
  %v2825 = vld [vmem:[#allocation2 + $0x1b8] sm:$0xff]
  %v2826 = vld [vmem:[#allocation2 + $0x1c0] sm:$0xff]
  %v2827 = vld [vmem:[#allocation2 + $0x1c8] sm:$0xff]
  %v2828 = vld [vmem:[#allocation2 + $0x1d0] sm:$0xff]
  %v2829 = vld [vmem:[#allocation2 + $0x1d8] sm:$0xff]
  %v2830 = vld [vmem:[#allocation2 + $0x1e0] sm:$0xff]
  %v2831 = vld [vmem:[#allocation2 + $0x1e8] sm:$0xff]
  %v2832 = vld [vmem:[#allocation2 + $0x1f0] sm:$0xff]
  %v2833 = vld [vmem:[#allocation2 + $0x1f8] sm:$0xff]
  %v2834 = vld [vmem:[#allocation2 + $0x200] sm:$0xff]
  %v2835 = vld [vmem:[#allocation2 + $0x208] sm:$0xff]
  %v2836 = vld [vmem:[#allocation2 + $0x210] sm:$0xff]
  %v2837 = vld [vmem:[#allocation2 + $0x218] sm:$0xff]
  %v2838 = vld [vmem:[#allocation2 + $0x220] sm:$0xff]
  %v2839 = vld [vmem:[#allocation2 + $0x228] sm:$0xff]
  %v2840 = vld [vmem:[#allocation2 + $0x230] sm:$0xff]
  %v2841 = vld [vmem:[#allocation2 + $0x238] sm:$0xff]
  %v2842 = vld [vmem:[#allocation2 + $0x240] sm:$0xff]
  %v2843 = vld [vmem:[#allocation2 + $0x248] sm:$0xff]
  %v2844 = vld [vmem:[#allocation2 + $0x250] sm:$0xff]
  %v2845 = vld [vmem:[#allocation2 + $0x258] sm:$0xff]
  %v2846 = vld [vmem:[#allocation2 + $0x260] sm:$0xff]
  %v2847 = vld [vmem:[#allocation2 + $0x268] sm:$0xff]
  %v2848 = vld [vmem:[#allocation2 + $0x270] sm:$0xff]
  %v2849 = vld [vmem:[#allocation2 + $0x278] sm:$0xff]
  %v2850 = vld [vmem:[#allocation2 + $0x280] sm:$0xff]
  %v2851 = vld [vmem:[#allocation2 + $0x288] sm:$0xff]
  %v2852 = vld [vmem:[#allocation2 + $0x290] sm:$0xff]
  %v2853 = vld [vmem:[#allocation2 + $0x298] sm:$0xff]
  %v2854 = vld [vmem:[#allocation2 + $0x2a0] sm:$0xff]
  %v2855 = vld [vmem:[#allocation2 + $0x2a8] sm:$0xff]
  %v2856 = vld [vmem:[#allocation2 + $0x2b0] sm:$0xff]
  %v2857 = vld [vmem:[#allocation2 + $0x2b8] sm:$0xff]
  %v2858 = vld [vmem:[#allocation2 + $0x2c0] sm:$0xff]
  %v2859 = vld [vmem:[#allocation2 + $0x2c8] sm:$0xff]
  %v2860 = vld [vmem:[#allocation2 + $0x2d0] sm:$0xff]
  %v2861 = vld [vmem:[#allocation2 + $0x2d8] sm:$0xff]
  %v2862 = vld [vmem:[#allocation2 + $0x2e0] sm:$0xff]
  %v2863 = vld [vmem:[#allocation2 + $0x2e8] sm:$0xff]
  %v2864 = vld [vmem:[#allocation2 + $0x2f0] sm:$0xff]
  %v2865 = vld [vmem:[#allocation2 + $0x2f8] sm:$0xff]
  %v2866 = vld [vmem:[#allocation2 + $0x300] sm:$0xff]
  %v2867 = vld [vmem:[#allocation2 + $0x308] sm:$0xff]
  %v2868 = vld [vmem:[#allocation2 + $0x310] sm:$0xff]
  %v2869 = vld [vmem:[#allocation2 + $0x318] sm:$0xff]
  %v2870 = vld [vmem:[#allocation2 + $0x320] sm:$0xff]
  %v2871 = vld [vmem:[#allocation2 + $0x328] sm:$0xff]
  %v2872 = vld [vmem:[#allocation2 + $0x330] sm:$0xff]
  %v2873 = vld [vmem:[#allocation2 + $0x338] sm:$0xff]
  %v2874 = vld [vmem:[#allocation2 + $0x340] sm:$0xff]
  %v2875 = vld [vmem:[#allocation2 + $0x348] sm:$0xff]
  %v2876 = vld [vmem:[#allocation2 + $0x350] sm:$0xff]
  %v2877 = vld [vmem:[#allocation2 + $0x358] sm:$0xff]
  %v2878 = vld [vmem:[#allocation2 + $0x360] sm:$0xff]
  %v2879 = vld [vmem:[#allocation2 + $0x368] sm:$0xff]
  %v2880 = vld [vmem:[#allocation2 + $0x370] sm:$0xff]
  %v2881 = vld [vmem:[#allocation2 + $0x378] sm:$0xff]
  %v2882 = vld [vmem:[#allocation2 + $0x380] sm:$0xff]
  %v2883 = vld [vmem:[#allocation2 + $0x388] sm:$0xff]
  %v2884 = vld [vmem:[#allocation2 + $0x390] sm:$0xff]
  %v2885 = vld [vmem:[#allocation2 + $0x398] sm:$0xff]
  %v2886 = vld [vmem:[#allocation2 + $0x3a0] sm:$0xff]
  %v2887 = vld [vmem:[#allocation2 + $0x3a8] sm:$0xff]
  %v2888 = vld [vmem:[#allocation2 + $0x3b0] sm:$0xff]
  %v2889 = vld [vmem:[#allocation2 + $0x3b8] sm:$0xff]
  %v2890 = vld [vmem:[#allocation2 + $0x3c0] sm:$0xff]
  %v2891 = vld [vmem:[#allocation2 + $0x3c8] sm:$0xff]
  %v2892 = vld [vmem:[#allocation2 + $0x3d0] sm:$0xff]
  %v2893 = vld [vmem:[#allocation2 + $0x3d8] sm:$0xff]
  %v2894 = vld [vmem:[#allocation2 + $0x3e0] sm:$0xff]
  %v2895 = vld [vmem:[#allocation2 + $0x3e8] sm:$0xff]
  %v2896 = vld [vmem:[#allocation2 + $0x3f0] sm:$0xff]
  %v2897 = vld [vmem:[#allocation2 + $0x3f8] sm:$0xff]
  %v2898 = vld [vmem:[#allocation2 + $0x400] sm:$0xff]
  %v2899 = vld [vmem:[#allocation2 + $0x408] sm:$0xff]
  %v2900 = vld [vmem:[#allocation2 + $0x410] sm:$0xff]
  %v2901 = vld [vmem:[#allocation2 + $0x418] sm:$0xff]
  %v2902 = vld [vmem:[#allocation2 + $0x420] sm:$0xff]
  %v2903 = vld [vmem:[#allocation2 + $0x428] sm:$0xff]
  %v2904 = vld [vmem:[#allocation2 + $0x430] sm:$0xff]
  %v2905 = vld [vmem:[#allocation2 + $0x438] sm:$0xff]
  %v2906 = vld [vmem:[#allocation2 + $0x440] sm:$0xff]
  %v2907 = vld [vmem:[#allocation2 + $0x448] sm:$0xff]
  %v2908 = vld [vmem:[#allocation2 + $0x450] sm:$0xff]
  %v2909 = vld [vmem:[#allocation2 + $0x458] sm:$0xff]
  %v2910 = vld [vmem:[#allocation2 + $0x460] sm:$0xff]
  %v2911 = vld [vmem:[#allocation2 + $0x468] sm:$0xff]
  %v2912 = vld [vmem:[#allocation2 + $0x470] sm:$0xff]
  %v2913 = vld [vmem:[#allocation2 + $0x478] sm:$0xff]
  %v2914 = vld [vmem:[#allocation2 + $0x480] sm:$0xff]
  %v2915 = vld [vmem:[#allocation2 + $0x488] sm:$0xff]
  %v2916 = vld [vmem:[#allocation2 + $0x490] sm:$0xff]
  %v2917 = vld [vmem:[#allocation2 + $0x498] sm:$0xff]
  %v2918 = vld [vmem:[#allocation2 + $0x4a0] sm:$0xff]
  %v2919 = vld [vmem:[#allocation2 + $0x4a8] sm:$0xff]
  %v2920 = vld [vmem:[#allocation2 + $0x4b0] sm:$0xff]
  %v2921 = vld [vmem:[#allocation2 + $0x4b8] sm:$0xff]
  %v2922 = vld [vmem:[#allocation2 + $0x4c0] sm:$0xff]
  %v2923 = vld [vmem:[#allocation2 + $0x4c8] sm:$0xff]
  %v2924 = vld [vmem:[#allocation2 + $0x4d0] sm:$0xff]
  %v2925 = vld [vmem:[#allocation2 + $0x4d8] sm:$0xff]
  %v2926 = vld [vmem:[#allocation2 + $0x4e0] sm:$0xff]
  %v2927 = vld [vmem:[#allocation2 + $0x4e8] sm:$0xff]
  %v2928 = vld [vmem:[#allocation2 + $0x4f0] sm:$0xff]
  %v2929 = vld [vmem:[#allocation2 + $0x4f8] sm:$0xff]
  %v2930 = vld [vmem:[#allocation2 + $0x500] sm:$0xff]
  %v2931 = vld [vmem:[#allocation2 + $0x508] sm:$0xff]
  %v2932 = vld [vmem:[#allocation2 + $0x510] sm:$0xff]
  %v2933 = vld [vmem:[#allocation2 + $0x518] sm:$0xff]
  %v2934 = vld [vmem:[#allocation2 + $0x520] sm:$0xff]
  %v2935 = vld [vmem:[#allocation2 + $0x528] sm:$0xff]
  %v2936 = vld [vmem:[#allocation2 + $0x530] sm:$0xff]
  %v2937 = vld [vmem:[#allocation2 + $0x538] sm:$0xff]
  %v2938 = vld [vmem:[#allocation2 + $0x540] sm:$0xff]
  %v2939 = vld [vmem:[#allocation2 + $0x548] sm:$0xff]
  %v2940 = vld [vmem:[#allocation2 + $0x550] sm:$0xff]
  %v2941 = vld [vmem:[#allocation2 + $0x558] sm:$0xff]
  %v2942 = vld [vmem:[#allocation2 + $0x560] sm:$0xff]
  %v2943 = vld [vmem:[#allocation2 + $0x568] sm:$0xff]
  %v2944 = vld [vmem:[#allocation2 + $0x570] sm:$0xff]
  %v2945 = vld [vmem:[#allocation2 + $0x578] sm:$0xff]
  %v2946 = vld [vmem:[#allocation2 + $0x580] sm:$0xff]
  %v2947 = vld [vmem:[#allocation2 + $0x588] sm:$0xff]
  %v2948 = vld [vmem:[#allocation2 + $0x590] sm:$0xff]
  %v2949 = vld [vmem:[#allocation2 + $0x598] sm:$0xff]
  %v2950 = vld [vmem:[#allocation2 + $0x5a0] sm:$0xff]
  %v2951 = vld [vmem:[#allocation2 + $0x5a8] sm:$0xff]
  %v2952 = vld [vmem:[#allocation2 + $0x5b0] sm:$0xff]
  %v2953 = vld [vmem:[#allocation2 + $0x5b8] sm:$0xff]
  %v2954 = vld [vmem:[#allocation2 + $0x5c0] sm:$0xff]
  %v2955 = vld [vmem:[#allocation2 + $0x5c8] sm:$0xff]
  %v2956 = vld [vmem:[#allocation2 + $0x5d0] sm:$0xff]
  %v2957 = vld [vmem:[#allocation2 + $0x5d8] sm:$0xff]
  %v2958 = vld [vmem:[#allocation2 + $0x5e0] sm:$0xff]
  %v2959 = vld [vmem:[#allocation2 + $0x5e8] sm:$0xff]
  %v2960 = vld [vmem:[#allocation2 + $0x5f0] sm:$0xff]
  %v2961 = vld [vmem:[#allocation2 + $0x5f8] sm:$0xff]
  %v2962 = vld [vmem:[#allocation2 + $0x600] sm:$0xff]
  %v2963 = vld [vmem:[#allocation2 + $0x608] sm:$0xff]
  %v2964 = vld [vmem:[#allocation2 + $0x610] sm:$0xff]
  %v2965 = vld [vmem:[#allocation2 + $0x618] sm:$0xff]
  %v2966 = vld [vmem:[#allocation2 + $0x620] sm:$0xff]
  %v2967 = vld [vmem:[#allocation2 + $0x628] sm:$0xff]
  %v2968 = vld [vmem:[#allocation2 + $0x630] sm:$0xff]
  %v2969 = vld [vmem:[#allocation2 + $0x638] sm:$0xff]
  %v2970 = vld [vmem:[#allocation2 + $0x640] sm:$0xff]
  %v2971 = vld [vmem:[#allocation2 + $0x648] sm:$0xff]
  %v2972 = vld [vmem:[#allocation2 + $0x650] sm:$0xff]
  %v2973 = vld [vmem:[#allocation2 + $0x658] sm:$0xff]
  %v2974 = vld [vmem:[#allocation2 + $0x660] sm:$0xff]
  %v2975 = vld [vmem:[#allocation2 + $0x668] sm:$0xff]
  %v2976 = vld [vmem:[#allocation2 + $0x670] sm:$0xff]
  %v2977 = vld [vmem:[#allocation2 + $0x678] sm:$0xff]
  %v2978 = vld [vmem:[#allocation2 + $0x680] sm:$0xff]
  %v2979 = vld [vmem:[#allocation2 + $0x688] sm:$0xff]
  %v2980 = vld [vmem:[#allocation2 + $0x690] sm:$0xff]
  %v2981 = vld [vmem:[#allocation2 + $0x698] sm:$0xff]
  %v2982 = vld [vmem:[#allocation2 + $0x6a0] sm:$0xff]
  %v2983 = vld [vmem:[#allocation2 + $0x6a8] sm:$0xff]
  %v2984 = vld [vmem:[#allocation2 + $0x6b0] sm:$0xff]
  %v2985 = vld [vmem:[#allocation2 + $0x6b8] sm:$0xff]
  %v2987 = vsel %vm1330, %v2769, 0
  %2989 = vmatprep.subr.mxu0 %v2771
  %2990 = vmatpush1.msra.mxu0 %v2770
  %2991 = vmatprep.subr.mxu0 %v2779
  %2992 = vmatpush1.msra.mxu0 %v2778
  %2993 = vmatprep.subr.mxu0 %v2787
  %2994 = vmatpush1.msra.mxu0 %v2786
  %2995 = vmatprep.subr.mxu0 %v2795
  %2996 = vmatpush1.msra.mxu0 %v2794
  %2997 = vmatprep.subr.mxu0 %v2803
  %2998 = vmatpush1.msra.mxu0 %v2802
  %2999 = vmatprep.subr.mxu0 %v2811
  %3000 = vmatpush1.msra.mxu0 %v2810
  %3001 = vmatprep.subr.mxu0 %v2819
  %3002 = vmatpush1.msra.mxu0 %v2818
  %3003 = vmatprep.subr.mxu0 %v2827
  %3004 = vmatpush1.msra.mxu0 %v2826
  %3005 = vmatprep.subr.mxu0 %v2835
  %3006 = vmatpush1.msra.mxu0 %v2834
  %3007 = vmatprep.subr.mxu0 %v2843
  %3008 = vmatpush1.msra.mxu0 %v2842
  %3009 = vmatprep.subr.mxu0 %v2851
  %3010 = vmatpush1.msra.mxu0 %v2850
  %3011 = vmatprep.subr.mxu0 %v2859
  %3012 = vmatpush1.msra.mxu0 %v2858
  %3013 = vmatprep.subr.mxu0 %v2867
  %3014 = vmatpush1.msra.mxu0 %v2866
  %3015 = vmatprep.subr.mxu0 %v2875
  %3016 = vmatpush1.msra.mxu0 %v2874
  %3017 = vmatprep.subr.mxu0 %v2883
  %3018 = vmatpush1.msra.mxu0 %v2882
  %3019 = vmatprep.subr.mxu0 %v2891
  %3020 = vmatpush1.msra.mxu0 %v2890
  %3021 = vmatprep.subr.mxu0 %v2899
  %3022 = vmatpush1.msra.mxu0 %v2898
  %3023 = vmatprep.subr.mxu0 %v2907
  %3024 = vmatpush1.msra.mxu0 %v2906
  %3025 = vmatprep.subr.mxu0 %v2915
  %3026 = vmatpush1.msra.mxu0 %v2914
  %3027 = vmatprep.subr.mxu0 %v2923
  %3028 = vmatpush1.msra.mxu0 %v2922
  %3029 = vmatprep.subr.mxu0 %v2931
  %3030 = vmatpush1.msra.mxu0 %v2930
  %3031 = vmatprep.subr.mxu0 %v2939
  %3032 = vmatpush1.msra.mxu0 %v2938
  %3033 = vmatprep.subr.mxu0 %v2947
  %3034 = vmatpush1.msra.mxu0 %v2946
  %3035 = vmatprep.subr.mxu0 %v2955
  %3036 = vmatpush1.msra.mxu0 %v2954
  %3037 = vmatprep.subr.mxu0 %v2963
  %3038 = vmatpush1.msra.mxu0 %v2962
  %3039 = vmatprep.subr.mxu0 %v2971
  %3040 = vmatpush1.msra.mxu0 %v2970
  %3041 = vmatprep.subr.mxu0 %v2979
  %3042 = vmatpush1.msra.mxu0 %v2978
  %3043 = vmatprep.subr.mxu0 0.0
  %3044 = vmatpush1.msra.mxu0 0.0
  %3045 = vmatprep.subr.mxu0 0.0
  %3046 = vmatpush1.msra.mxu0 0.0
  %3047 = vmatprep.subr.mxu0 0.0
  %3048 = vmatpush1.msra.mxu0 0.0
  %3049 = vmatprep.subr.mxu0 0.0
  %3050 = vmatpush1.msra.mxu0 0.0
  %3051 = vmatprep.subr.mxu0 0.0
  %3052 = vmatpush1.msra.mxu0 0.0
  %3053 = vmatprep.mubr.f32.mxu0 %v2987
  %3054 = vmatmul.mubr.f32.gmra.mrb[0].mxu0 %v2768
  %v3055 = vpop.f32.mrb[0].mxu0
  %v3056 = vadd.f32 0.0, %v3055
  %v3057 = vpop.f32.mrb[0].mxu0
  %v3058 = vadd.f32 0.0, %v3057
  %3059 = vdwg.mxu0
  %3060 = vmatprep.subr.mxu0 %v2773
  %3061 = vmatpush1.msra.mxu0 %v2772
  %3062 = vmatprep.subr.mxu0 %v2781
  %3063 = vmatpush1.msra.mxu0 %v2780
  %3064 = vmatprep.subr.mxu0 %v2789
  %3065 = vmatpush1.msra.mxu0 %v2788
  %3066 = vmatprep.subr.mxu0 %v2797
  %3067 = vmatpush1.msra.mxu0 %v2796
  %3068 = vmatprep.subr.mxu0 %v2805
  %3069 = vmatpush1.msra.mxu0 %v2804
  %3070 = vmatprep.subr.mxu0 %v2813
  %3071 = vmatpush1.msra.mxu0 %v2812
  %3072 = vmatprep.subr.mxu0 %v2821
  %3073 = vmatpush1.msra.mxu0 %v2820
  %3074 = vmatprep.subr.mxu0 %v2829
  %3075 = vmatpush1.msra.mxu0 %v2828
  %3076 = vmatprep.subr.mxu0 %v2837
  %3077 = vmatpush1.msra.mxu0 %v2836
  %3078 = vmatprep.subr.mxu0 %v2845
  %3079 = vmatpush1.msra.mxu0 %v2844
  %3080 = vmatprep.subr.mxu0 %v2853
  %3081 = vmatpush1.msra.mxu0 %v2852
  %3082 = vmatprep.subr.mxu0 %v2861
  %3083 = vmatpush1.msra.mxu0 %v2860
  %3084 = vmatprep.subr.mxu0 %v2869
  %3085 = vmatpush1.msra.mxu0 %v2868
  %3086 = vmatprep.subr.mxu0 %v2877
  %3087 = vmatpush1.msra.mxu0 %v2876
  %3088 = vmatprep.subr.mxu0 %v2885
  %3089 = vmatpush1.msra.mxu0 %v2884
  %3090 = vmatprep.subr.mxu0 %v2893
  %3091 = vmatpush1.msra.mxu0 %v2892
  %3092 = vmatprep.subr.mxu0 %v2901
  %3093 = vmatpush1.msra.mxu0 %v2900
  %3094 = vmatprep.subr.mxu0 %v2909
  %3095 = vmatpush1.msra.mxu0 %v2908
  %3096 = vmatprep.subr.mxu0 %v2917
  %3097 = vmatpush1.msra.mxu0 %v2916
  %3098 = vmatprep.subr.mxu0 %v2925
  %3099 = vmatpush1.msra.mxu0 %v2924
  %3100 = vmatprep.subr.mxu0 %v2933
  %3101 = vmatpush1.msra.mxu0 %v2932
  %3102 = vmatprep.subr.mxu0 %v2941
  %3103 = vmatpush1.msra.mxu0 %v2940
  %3104 = vmatprep.subr.mxu0 %v2949
  %3105 = vmatpush1.msra.mxu0 %v2948
  %3106 = vmatprep.subr.mxu0 %v2957
  %3107 = vmatpush1.msra.mxu0 %v2956
  %3108 = vmatprep.subr.mxu0 %v2965
  %3109 = vmatpush1.msra.mxu0 %v2964
  %3110 = vmatprep.subr.mxu0 %v2973
  %3111 = vmatpush1.msra.mxu0 %v2972
  %3112 = vmatprep.subr.mxu0 %v2981
  %3113 = vmatpush1.msra.mxu0 %v2980
  %3114 = vmatprep.subr.mxu0 0.0
  %3115 = vmatpush1.msra.mxu0 0.0
  %3116 = vmatprep.subr.mxu0 0.0
  %3117 = vmatpush1.msra.mxu0 0.0
  %3118 = vmatprep.subr.mxu0 0.0
  %3119 = vmatpush1.msra.mxu0 0.0
  %3120 = vmatprep.subr.mxu0 0.0
  %3121 = vmatpush1.msra.mxu0 0.0
  %3122 = vmatprep.subr.mxu0 0.0
  %3123 = vmatpush1.msra.mxu0 0.0
  %3124 = vmatprep.mubr.f32.mxu0 %v2987
  %3125 = vmatmul.mubr.f32.gmra.mrb[0].mxu0 %v2768
  %v3126 = vpop.f32.mrb[0].mxu0
  %v3127 = vadd.f32 0.0, %v3126
  %v3128 = vpop.f32.mrb[0].mxu0
  %v3129 = vadd.f32 0.0, %v3128
  %3130 = vdwg.mxu0
  %3131 = vmatprep.subr.mxu0 %v2775
  %3132 = vmatpush1.msra.mxu0 %v2774
  %3133 = vmatprep.subr.mxu0 %v2783
  %3134 = vmatpush1.msra.mxu0 %v2782
  %3135 = vmatprep.subr.mxu0 %v2791
  %3136 = vmatpush1.msra.mxu0 %v2790
  %3137 = vmatprep.subr.mxu0 %v2799
  %3138 = vmatpush1.msra.mxu0 %v2798
  %3139 = vmatprep.subr.mxu0 %v2807
  %3140 = vmatpush1.msra.mxu0 %v2806
  %3141 = vmatprep.subr.mxu0 %v2815
  %3142 = vmatpush1.msra.mxu0 %v2814
  %3143 = vmatprep.subr.mxu0 %v2823
  %3144 = vmatpush1.msra.mxu0 %v2822
  %3145 = vmatprep.subr.mxu0 %v2831
  %3146 = vmatpush1.msra.mxu0 %v2830
  %3147 = vmatprep.subr.mxu0 %v2839
  %3148 = vmatpush1.msra.mxu0 %v2838
  %3149 = vmatprep.subr.mxu0 %v2847
  %3150 = vmatpush1.msra.mxu0 %v2846
  %3151 = vmatprep.subr.mxu0 %v2855
  %3152 = vmatpush1.msra.mxu0 %v2854
  %3153 = vmatprep.subr.mxu0 %v2863
  %3154 = vmatpush1.msra.mxu0 %v2862
  %3155 = vmatprep.subr.mxu0 %v2871
  %3156 = vmatpush1.msra.mxu0 %v2870
  %3157 = vmatprep.subr.mxu0 %v2879
  %3158 = vmatpush1.msra.mxu0 %v2878
  %3159 = vmatprep.subr.mxu0 %v2887
  %3160 = vmatpush1.msra.mxu0 %v2886
  %3161 = vmatprep.subr.mxu0 %v2895
  %3162 = vmatpush1.msra.mxu0 %v2894
  %3163 = vmatprep.subr.mxu0 %v2903
  %3164 = vmatpush1.msra.mxu0 %v2902
  %3165 = vmatprep.subr.mxu0 %v2911
  %3166 = vmatpush1.msra.mxu0 %v2910
  %3167 = vmatprep.subr.mxu0 %v2919
  %3168 = vmatpush1.msra.mxu0 %v2918
  %3169 = vmatprep.subr.mxu0 %v2927
  %3170 = vmatpush1.msra.mxu0 %v2926
  %3171 = vmatprep.subr.mxu0 %v2935
  %3172 = vmatpush1.msra.mxu0 %v2934
  %3173 = vmatprep.subr.mxu0 %v2943
  %3174 = vmatpush1.msra.mxu0 %v2942
  %3175 = vmatprep.subr.mxu0 %v2951
  %3176 = vmatpush1.msra.mxu0 %v2950
  %3177 = vmatprep.subr.mxu0 %v2959
  %3178 = vmatpush1.msra.mxu0 %v2958
  %3179 = vmatprep.subr.mxu0 %v2967
  %3180 = vmatpush1.msra.mxu0 %v2966
  %3181 = vmatprep.subr.mxu0 %v2975
  %3182 = vmatpush1.msra.mxu0 %v2974
  %3183 = vmatprep.subr.mxu0 %v2983
  %3184 = vmatpush1.msra.mxu0 %v2982
  %3185 = vmatprep.subr.mxu0 0.0
  %3186 = vmatpush1.msra.mxu0 0.0
  %3187 = vmatprep.subr.mxu0 0.0
  %3188 = vmatpush1.msra.mxu0 0.0
  %3189 = vmatprep.subr.mxu0 0.0
  %3190 = vmatpush1.msra.mxu0 0.0
  %3191 = vmatprep.subr.mxu0 0.0
  %3192 = vmatpush1.msra.mxu0 0.0
  %3193 = vmatprep.subr.mxu0 0.0
  %3194 = vmatpush1.msra.mxu0 0.0
  %3195 = vmatprep.mubr.f32.mxu0 %v2987
  %3196 = vmatmul.mubr.f32.gmra.mrb[0].mxu0 %v2768
  %v3197 = vpop.f32.mrb[0].mxu0
  %v3198 = vadd.f32 0.0, %v3197
  %v3199 = vpop.f32.mrb[0].mxu0
  %v3200 = vadd.f32 0.0, %v3199
  %3201 = vdwg.mxu0
  %3202 = vmatprep.subr.mxu0 %v2777
  %3203 = vmatpush1.msra.mxu0 %v2776
  %3204 = vmatprep.subr.mxu0 %v2785
  %3205 = vmatpush1.msra.mxu0 %v2784
  %3206 = vmatprep.subr.mxu0 %v2793
  %3207 = vmatpush1.msra.mxu0 %v2792
  %3208 = vmatprep.subr.mxu0 %v2801
  %3209 = vmatpush1.msra.mxu0 %v2800
  %3210 = vmatprep.subr.mxu0 %v2809
  %3211 = vmatpush1.msra.mxu0 %v2808
  %3212 = vmatprep.subr.mxu0 %v2817
  %3213 = vmatpush1.msra.mxu0 %v2816
  %3214 = vmatprep.subr.mxu0 %v2825
  %3215 = vmatpush1.msra.mxu0 %v2824
  %3216 = vmatprep.subr.mxu0 %v2833
  %3217 = vmatpush1.msra.mxu0 %v2832
  %3218 = vmatprep.subr.mxu0 %v2841
  %3219 = vmatpush1.msra.mxu0 %v2840
  %3220 = vmatprep.subr.mxu0 %v2849
  %3221 = vmatpush1.msra.mxu0 %v2848
  %3222 = vmatprep.subr.mxu0 %v2857
  %3223 = vmatpush1.msra.mxu0 %v2856
  %3224 = vmatprep.subr.mxu0 %v2865
  %3225 = vmatpush1.msra.mxu0 %v2864
  %3226 = vmatprep.subr.mxu0 %v2873
  %3227 = vmatpush1.msra.mxu0 %v2872
  %3228 = vmatprep.subr.mxu0 %v2881
  %3229 = vmatpush1.msra.mxu0 %v2880
  %3230 = vmatprep.subr.mxu0 %v2889
  %3231 = vmatpush1.msra.mxu0 %v2888
  %3232 = vmatprep.subr.mxu0 %v2897
  %3233 = vmatpush1.msra.mxu0 %v2896
  %3234 = vmatprep.subr.mxu0 %v2905
  %3235 = vmatpush1.msra.mxu0 %v2904
  %3236 = vmatprep.subr.mxu0 %v2913
  %3237 = vmatpush1.msra.mxu0 %v2912
  %3238 = vmatprep.subr.mxu0 %v2921
  %3239 = vmatpush1.msra.mxu0 %v2920
  %3240 = vmatprep.subr.mxu0 %v2929
  %3241 = vmatpush1.msra.mxu0 %v2928
  %3242 = vmatprep.subr.mxu0 %v2937
  %3243 = vmatpush1.msra.mxu0 %v2936
  %3244 = vmatprep.subr.mxu0 %v2945
  %3245 = vmatpush1.msra.mxu0 %v2944
  %3246 = vmatprep.subr.mxu0 %v2953
  %3247 = vmatpush1.msra.mxu0 %v2952
  %3248 = vmatprep.subr.mxu0 %v2961
  %3249 = vmatpush1.msra.mxu0 %v2960
  %3250 = vmatprep.subr.mxu0 %v2969
  %3251 = vmatpush1.msra.mxu0 %v2968
  %3252 = vmatprep.subr.mxu0 %v2977
  %3253 = vmatpush1.msra.mxu0 %v2976
  %3254 = vmatprep.subr.mxu0 %v2985
  %3255 = vmatpush1.msra.mxu0 %v2984
  %3256 = vmatprep.subr.mxu0 0.0
  %3257 = vmatpush1.msra.mxu0 0.0
  %3258 = vmatprep.subr.mxu0 0.0
  %3259 = vmatpush1.msra.mxu0 0.0
  %3260 = vmatprep.subr.mxu0 0.0
  %3261 = vmatpush1.msra.mxu0 0.0
  %3262 = vmatprep.subr.mxu0 0.0
  %3263 = vmatpush1.msra.mxu0 0.0
  %3264 = vmatprep.subr.mxu0 0.0
  %3265 = vmatpush1.msra.mxu0 0.0
  %3266 = vmatprep.mubr.f32.mxu0 %v2987
  %3267 = vmatmul.mubr.f32.gmra.mrb[0].mxu0 %v2768
  %v3268 = vpop.f32.mrb[0].mxu0
  %v3269 = vadd.f32 0.0, %v3268
  %v3270 = vpop.f32.mrb[0].mxu0
  %v3271 = vadd.f32 0.0, %v3270
  %3272 = vdwg.mxu0
  %v3273 = vadd.f32 %v3056, %v3058
  %v3274 = vadd.f32 %v3273, %v3127
  %v3275 = vadd.f32 %v3274, %v3129
  %3276 = vadd.xlane.f32.xlu0 %v3275
  %v3277 = vpop.xlane.xlu0 %3276
  %v3278 = vmul.f32 %v3277, 0.001953125
  %v3279 = vmul.f32 %v3056, %v3056
  %v3280 = vmul.f32 %v3058, %v3058
  %v3281 = vmul.f32 %v3127, %v3127
  %v3282 = vmul.f32 %v3129, %v3129
  %v3283 = vadd.f32 %v3279, %v3280
  %v3284 = vadd.f32 %v3283, %v3281
  %v3285 = vadd.f32 %v3284, %v3282
  %3286 = vadd.xlane.f32.xlu0 %v3285
  %v3287 = vpop.xlane.xlu0 %3286
  %v3288 = vmul.f32 %v3287, 0.001953125
  %v3289 = vmul.f32 %v3278, %v3278
  %v3290 = vsub.f32 %v3288, %v3289
  %v3291 = vmax.f32 %v3290, 0.0
  %v3292 = vsub.f32 %v3056, %v3278
  %v3293 = vsub.f32 %v3058, %v3278
  %v3294 = vsub.f32 %v3127, %v3278
  %v3295 = vsub.f32 %v3129, %v3278
  %v3296 = vadd.f32 %v3291, 1e-05
  %v3297 = vrsqrt.pop %v3296
  %v3298 = vmul.f32 %v3292, %v3297
  %v3299 = vmul.f32 %v3293, %v3297
  %v3300 = vmul.f32 %v3294, %v3297
  %v3301 = vmul.f32 %v3295, %v3297
  %v3302 = vadd.f32 %v3198, %v3200
  %v3303 = vadd.f32 %v3302, %v3269
  %v3304 = vadd.f32 %v3303, %v3271
  %3305 = vadd.xlane.f32.xlu0 %v3304
  %v3306 = vpop.xlane.xlu0 %3305
  %v3307 = vmul.f32 %v3306, 0.001953125
  %v3308 = vmul.f32 %v3198, %v3198
  %v3309 = vmul.f32 %v3200, %v3200
  %v3310 = vmul.f32 %v3269, %v3269
  %v3311 = vmul.f32 %v3271, %v3271
  %v3312 = vadd.f32 %v3308, %v3309
  %v3313 = vadd.f32 %v3312, %v3310
  %v3314 = vadd.f32 %v3313, %v3311
  %3315 = vadd.xlane.f32.xlu0 %v3314
  %v3316 = vpop.xlane.xlu0 %3315
  %v3317 = vmul.f32 %v3316, 0.001953125
  %v3318 = vmul.f32 %v3307, %v3307
  %v3319 = vsub.f32 %v3317, %v3318
  %v3320 = vmax.f32 %v3319, 0.0
  %v3321 = vsub.f32 %v3198, %v3307
  %v3322 = vsub.f32 %v3200, %v3307
  %v3323 = vsub.f32 %v3269, %v3307
  %v3324 = vsub.f32 %v3271, %v3307
  %v3325 = vadd.f32 %v3320, 1e-05
  %v3326 = vrsqrt.pop %v3325
  %v3327 = vmul.f32 %v3321, %v3326
  %v3328 = vmul.f32 %v3322, %v3326
  %v3329 = vmul.f32 %v3323, %v3326
  %v3330 = vmul.f32 %v3324, %v3326
  %v3331 = vld [vmem:[%s6] sm:$0xff]
  %3333 = vset.pattern.permute.xlu0 0
  %3334 = vperm.xlu0 %3333, %v3331
  %v3335 = vpop.permute.xlu0 %3334
  %v3337 = vmul.f32 %v3298, %v3335
  %v3338 = vmul.f32 %v3299, %v3335
  %v3339 = vmul.f32 %v3300, %v3335
  %v3340 = vmul.f32 %v3301, %v3335
  %v3341 = vmul.f32 %v3327, %v3335
  %v3342 = vmul.f32 %v3328, %v3335
  %v3343 = vmul.f32 %v3329, %v3335
  %v3344 = vmul.f32 %v3330, %v3335
  %v3345 = vld [vmem:[%s7] sm:$0xff]
  %3347 = vset.pattern.permute.xlu0 0
  %3348 = vperm.xlu0 %3347, %v3345
  %v3349 = vpop.permute.xlu0 %3348
  %v3351 = vadd.f32 %v3337, %v3349
  %v3352 = vadd.f32 %v3338, %v3349
  %v3353 = vadd.f32 %v3339, %v3349
  %v3354 = vadd.f32 %v3340, %v3349
  %v3355 = vadd.f32 %v3341, %v3349
  %v3356 = vadd.f32 %v3342, %v3349
  %v3357 = vadd.f32 %v3343, %v3349
  %v3358 = vadd.f32 %v3344, %v3349
  %v3359 = vadd.f32 %v3351, %v1704
  %v3360 = vadd.f32 %v3352, %v1705
  %v3361 = vadd.f32 %v3353, %v1706
  %v3362 = vadd.f32 %v3354, %v1707
  %v3363 = vadd.f32 %v3355, %v1708
  %v3364 = vadd.f32 %v3356, %v1709
  %v3365 = vadd.f32 %v3357, %v1710
  %v3366 = vadd.f32 %v3358, %v1711
  %v3367 = vmax.f32 %v3359, 0.0
  %v3368 = vmax.f32 %v3360, 0.0
  %v3369 = vmax.f32 %v3361, 0.0
  %v3370 = vmax.f32 %v3362, 0.0
  %v3371 = vmax.f32 %v3363, 0.0
  %v3372 = vmax.f32 %v3364, 0.0
  %v3373 = vmax.f32 %v3365, 0.0
  %v3374 = vmax.f32 %v3366, 0.0
  %3375 = vst [vmem:[%s8] sm:$0xff] %v3367
  %3376 = vst [vmem:[%s8 + $0x8] sm:$0xff] %v3368
  %3377 = vst [vmem:[%s8 + $0x10] sm:$0xff] %v3369
  %3378 = vst [vmem:[%s8 + $0x18] sm:$0xff] %v3370
  %3379 = vst [vmem:[%s8 + $0x20] sm:$0xff] %v3371
  %3380 = vst [vmem:[%s8 + $0x28] sm:$0xff] %v3372
  %3381 = vst [vmem:[%s8 + $0x30] sm:$0xff] %v3373
  %3382 = vst [vmem:[%s8 + $0x38] sm:$0xff] %v3374
  // Predicated region
  $region34: #{double_conv_pallas.1} parent=0 // pred_check
    _
  $region35: #{double_conv_pallas.1} parent=0 // pred_check_branch
    %3384 = sbr.rel (0) target = $region37
  $region36: #{double_conv_pallas.1} parent=0 // pred_region
    _
  $region37: #{double_conv_pallas.1} parent=0 // pred_fallthru
    _
  // Predicated region
  $region38: #{double_conv_pallas.1} parent=0 // pred_check
    _
  $region39: #{double_conv_pallas.1} parent=0 // pred_check_branch
    %3386 = sbr.rel (0) target = $region41
  $region40: #{double_conv_pallas.1} parent=0 // pred_region
    _
  $region41: #{double_conv_pallas.1} parent=0 // pred_fallthru
    _

</llo_original>
